<compile_context>
chip_gen: v7x
topology: tpu7x:2x2x1
jax: 0.10.0
libtpu: 0.0.40
codegen_flags: <defaults>
</compile_context>

<pallas_src>
import functools

import numpy as np
import jax
import jax.numpy as jnp
from jax.experimental import pallas as pl
from jax.experimental.pallas import tpu as pltpu

NUM_GROUPS = 32
EPS = 1e-6


# --------------------------------------------------------------------------
# Hardware-aware sizing helpers
# --------------------------------------------------------------------------
@functools.lru_cache(maxsize=None)
def _vmem_limit_bytes():
    """~75% of this chip's VMEM (v7x: ~48 of 64 MiB, v5e/v6e: ~96 of 128 MiB)."""
    try:
        cap = int(pltpu.get_tpu_info().vmem_capacity_bytes)
        return (cap * 3) // 4
    except Exception:
        return 48 * 1024 * 1024          # conservative fallback: safe even on v7x


@functools.lru_cache(maxsize=None)
def _single_buffer_ok():
    """Probe once whether pipeline_mode=pl.Buffered(1) compiles+runs on this JAX/Mosaic."""
    try:
        with jax.ensure_compile_time_eval():   # stay eager even if probed under a jit trace
            def _k(a_ref, o_ref):
                o_ref[...] = a_ref[...]
            out = pl.pallas_call(
                _k,
                grid=(2,),
                out_shape=jax.ShapeDtypeStruct((16, 128), jnp.float32),
                in_specs=[pl.BlockSpec((8, 128), lambda i: (0, 0),
                                       pipeline_mode=pl.Buffered(1))],
                out_specs=pl.BlockSpec((8, 128), lambda i: (i, 0)),
            )(jnp.ones((8, 128), jnp.float32))
            jax.block_until_ready(out)
        return True
    except Exception:
        return False


def _const_spec(shape, index_map):
    """BlockSpec for a grid-invariant operand: single-buffer it to reclaim VMEM."""
    if _single_buffer_ok():
        return pl.BlockSpec(shape, index_map, pipeline_mode=pl.Buffered(1))
    return pl.BlockSpec(shape, index_map)


def _pick_tile_rows(H, W, c_in, c_out):
    """Largest divisor Th of H (with H/Th >= 2 so both v7x TCs get work) whose full
    per-grid-step VMEM footprint fits the per-chip budget.

    Accounts for double-buffered bf16 I/O blocks + halo rows + worst-case skip operand,
    single-buffered bf16 weights, and the in-kernel intermediates (f32 hx, its bf16 copy,
    one shifted copy, f32 accumulator) which are ~5x the input tile and are what actually
    bound Th on v7x's 64 MiB.
    """
    c = max(c_in, c_out)
    weights = 9 * c * c * 2 + c * c * 2                 # conv3x3 + nin, bf16
    budget = max(int(_vmem_limit_bytes() * 0.6) - weights, 1 << 20)
    best = 1
    for th in range(1, H + 1):
        if H % th != 0:
            continue
        if H >= 2 and th > H // 2:
            continue                                     # keep >= 2 row-blocks (megacore)
        per_step = (
            2 * th * W * c * 2                # input block, bf16, double-buffered
            + 2 * 2 * W * c * 2               # two 1-row halos, double-buffered
            + 2 * th * W * c * 4              # output block (worst-case f32), double-buffered
            + 2 * th * W * c * 2              # skip block, bf16, double-buffered
            + (th + 2) * W * c * (4 + 2 + 2)  # hx f32 + bf16 cast + shifted copy
            + 2 * th * W * c * 4              # f32 accumulator + matmul staging
        )
        if per_step <= budget:
            best = max(best, th)
    return best


# --------------------------------------------------------------------------
# Kernel 1: partial GroupNorm statistics (per-(batch, row-block) sum / sumsq)
# --------------------------------------------------------------------------
def _gn_partial_stats_kernel(x_ref, sum_ref, sq_ref):
    C = x_ref.shape[-1]
    x = x_ref[...].astype(jnp.float32).reshape(-1, C)          # (Th*W, C)
    sum_ref[...] = jnp.sum(x, axis=0).reshape(1, 1, 1, C)
    sq_ref[...] = jnp.sum(x * x, axis=0).reshape(1, 1, 1, C)


def gn_partial_stats(x_nhwc, tile_rows):
    N, H, W, C = x_nhwc.shape
    Th = tile_rows
    nHb = H // Th
    return pl.pallas_call(
        _gn_partial_stats_kernel,
        grid=(N, nHb),
        out_shape=(jax.ShapeDtypeStruct((N, nHb, 1, C), jnp.float32),
                   jax.ShapeDtypeStruct((N, nHb, 1, C), jnp.float32)),
        in_specs=[pl.BlockSpec((1, Th, W, C), lambda n, h: (n, h, 0, 0))],
        out_specs=(pl.BlockSpec((1, 1, 1, C), lambda n, h: (n, h, 0, 0)),
                   pl.BlockSpec((1, 1, 1, C), lambda n, h: (n, h, 0, 0))),
        compiler_params=pltpu.CompilerParams(
            dimension_semantics=("parallel", "parallel"),
            vmem_limit_bytes=_vmem_limit_bytes()),
    )(x_nhwc)


def finalize_group_stats(psum, psq, pixels):
    """(N, nHb, 1, C) partials -> per-(batch, channel) group mean / rstd, shaped (N,1,C)."""
    N = psum.shape[0]
    C = psum.shape[-1]
    gsz = C // NUM_GROUPS
    s = psum.sum(axis=(1, 2)).reshape(N, NUM_GROUPS, gsz).sum(-1)      # (N, G)
    q = psq.sum(axis=(1, 2)).reshape(N, NUM_GROUPS, gsz).sum(-1)
    inv_n = 1.0 / float(pixels * gsz)
    mean_g = s * inv_n
    var_g = jnp.maximum(q * inv_n - mean_g * mean_g, 0.0)   # clamp single-pass cancellation
    rstd_g = jax.lax.rsqrt(var_g + EPS)
    mean = jnp.repeat(mean_g, gsz, axis=-1).reshape(N, 1, C)
    rstd = jnp.repeat(rstd_g, gsz, axis=-1).reshape(N, 1, C)
    return mean, rstd


# --------------------------------------------------------------------------
# Kernel 2: fused GroupNorm-apply + SiLU + 3x3 "same" conv
#           (+ optional residual / 1x1 nin shortcut, + optional GN-stat partials)
# --------------------------------------------------------------------------
def _shift_w(a, dx):
    """s[:, w, :] = a[:, w + dx - 1, :], zero-padded at the W edges (dx in 0..2)."""
    if dx == 1:
        return a
    zcol = jnp.zeros_like(a[:, :1, :])
    if dx == 0:                                   # needs column w-1; w=0 -> zero pad
        return jnp.concatenate([zcol, a[:, :-1, :]], axis=1)
    return jnp.concatenate([a[:, 1:, :], zcol], axis=1)   # dx == 2


def _gn_silu_conv3x3_kernel(*refs, Th, W, Cin, Cout, add_skip, nin, emit_stats):
    it = iter(refs)
    x_ref = next(it); xt_ref = next(it); xb_ref = next(it)
    mean_ref = next(it); rstd_ref = next(it)
    gamma_ref = next(it); beta_ref = next(it)
    w_ref = next(it); bias_ref = next(it)
    x0_ref = next(it) if add_skip else None
    wnin_ref = next(it) if (add_skip and nin) else None
    bnin_ref = next(it) if (add_skip and nin) else None
    o_ref = next(it)
    sum_ref = next(it) if emit_stats else None
    sq_ref = next(it) if emit_stats else None

    # ---- fused GroupNorm (precomputed stats) + SiLU on tile + row halos ----
    scale = rstd_ref[...] * gamma_ref[...]                        # (1, 1, Cin) f32
    shift = beta_ref[...] - mean_ref[...] * scale                 # (1, 1, Cin) f32

    xc = x_ref[...].reshape(Th, W, Cin)
    xt = xt_ref[...].reshape(1, W, Cin)
    xb = xb_ref[...].reshape(1, W, Cin)
    hx = jnp.concatenate([xt, xc, xb], axis=0).astype(jnp.float32)  # (Th+2, W, Cin)
    hx = hx * scale + shift
    hx = hx * jax.nn.sigmoid(hx)                                   # SiLU

    # Halo rows outside the image are zero *after* norm+SiLU (conv zero padding).
    hblk = pl.program_id(1)
    row = jax.lax.broadcasted_iota(jnp.int32, (Th + 2, 1, 1), 0)
    kill = ((row == 0) & (hblk == 0)) | \
           ((row == Th + 1) & (hblk == pl.num_programs(1) - 1))
    hx = jnp.where(kill, 0.0, hx).astype(jnp.bfloat16)

    # ---- 3x3 conv = 9 shifted (Th*W, Cin) x (Cin, Cout) bf16 MXU matmuls ----
    w = w_ref[...]                                                 # (3,3,Cin,Cout) bf16
    acc = jnp.broadcast_to(                                        # init acc with bias
        bias_ref[...].reshape(1, Cout).astype(jnp.float32), (Th * W, Cout))
    for dx in range(3):
        shifted = _shift_w(hx, dx)                                 # (Th+2, W, Cin)
        for dy in range(3):
            rows = shifted[dy:dy + Th].reshape(Th * W, Cin)        # contiguous reshape
            acc = acc + jnp.dot(rows, w[dy, dx],
                                preferred_element_type=jnp.float32)

    # ---- partial GroupNorm stats of the f32 conv output (feeds norm2 with no
    #      extra HBM pass over h1) ----
    if emit_stats:
        sum_ref[...] = jnp.sum(acc, axis=0).reshape(1, 1, 1, Cout)
        sq_ref[...] = jnp.sum(acc * acc, axis=0).reshape(1, 1, 1, Cout)

    # ---- fused residual / 1x1 nin shortcut ----
    if add_skip:
        cin0 = x0_ref.shape[-1]
        x0 = x0_ref[...].reshape(Th * W, cin0)                     # bf16
        if nin:
            acc = acc + jnp.dot(x0, wnin_ref[...],
                                preferred_element_type=jnp.float32)
            acc = acc + bnin_ref[...].reshape(1, Cout)
        else:
            acc = acc + x0.astype(jnp.float32)

    o_ref[...] = acc.reshape(1, Th, W, Cout).astype(o_ref.dtype)


def gn_silu_conv3x3(x_nhwc, mean, rstd, gamma, beta, w_oihw, bias, tile_rows, *,
                    skip=None, w_nin=None, b_nin=None,
                    out_dtype=jnp.float32, emit_stats=False):
    N, H, W, Cin = x_nhwc.shape
    Cout = w_oihw.shape[0]
    assert w_oihw.shape[2] == 3 and w_oihw.shape[3] == 3
    Th = tile_rows
    assert 1 <= Th <= H and H % Th == 0, "tile_rows must divide H"
    nHb = H // Th

    w_hwio = jnp.transpose(w_oihw, (2, 3, 1, 0)).astype(jnp.bfloat16)   # (3,3,Cin,Cout)
    gamma3 = gamma.reshape(1, 1, Cin).astype(jnp.float32)
    beta3 = beta.reshape(1, 1, Cin).astype(jnp.float32)
    bias3 = bias.reshape(1, 1, Cout).astype(jnp.float32)

    add_skip = skip is not None
    nin = w_nin is not None

    def idx_x(n, h):
        return (n, h, 0, 0)

    def idx_top(n, h):                  # top halo row, clamped (zeroed in-kernel at border)
        return (n, jnp.maximum(h * Th - 1, 0), 0, 0)

    def idx_bot(n, h):                  # bottom halo row, clamped
        return (n, jnp.minimum(h * Th + Th, H - 1), 0, 0)

    def idx_batch(n, h):
        return (n, 0, 0)

    def idx_const3(n, h):
        return (0, 0, 0)

    in_specs = [
        pl.BlockSpec((1, Th, W, Cin), idx_x),
        pl.BlockSpec((1, 1, W, Cin), idx_top),
        pl.BlockSpec((1, 1, W, Cin), idx_bot),
        pl.BlockSpec((1, 1, Cin), idx_batch),                        # mean (varies with n)
        pl.BlockSpec((1, 1, Cin), idx_batch),                        # rstd
        _const_spec((1, 1, Cin), idx_const3),                        # gamma (single-buffer)
        _const_spec((1, 1, Cin), idx_const3),                        # beta
        _const_spec((3, 3, Cin, Cout), lambda n, h: (0, 0, 0, 0)),   # conv weights
        _const_spec((1, 1, Cout), idx_const3),                       # bias
    ]
    args = [x_nhwc, x_nhwc, x_nhwc, mean, rstd, gamma3, beta3, w_hwio, bias3]

    if add_skip:
        Cin0 = skip.shape[-1]
        in_specs.append(pl.BlockSpec((1, Th, W, Cin0), idx_x))
        args.append(skip)
        if nin:
            wnin2 = jnp.transpose(w_nin.reshape(Cout, Cin0), (1, 0)).astype(jnp.bfloat16)
            in_specs.append(_const_spec((Cin0, Cout), lambda n, h: (0, 0)))
            args.append(wnin2)
            in_specs.append(_const_spec((1, 1, Cout), idx_const3))
            args.append(b_nin.reshape(1, 1, Cout).astype(jnp.float32))
        else:
            assert Cin0 == Cout, "identity shortcut needs matching channels"

    out_shapes = [jax.ShapeDtypeStruct((N, H, W, Cout), out_dtype)]
    out_specs = [pl.BlockSpec((1, Th, W, Cout), idx_x)]
    if emit_stats:
        out_shapes += [jax.ShapeDtypeStruct((N, nHb, 1, Cout), jnp.float32)] * 2
        out_specs += [pl.BlockSpec((1, 1, 1, Cout), lambda n, h: (n, h, 0, 0))] * 2

    kernel = functools.partial(_gn_silu_conv3x3_kernel, Th=Th, W=W, Cin=Cin,
                               Cout=Cout, add_skip=add_skip, nin=nin,
                               emit_stats=emit_stats)

    return pl.pallas_call(
        kernel,
        grid=(N, nHb),
        out_shape=tuple(out_shapes) if emit_stats else out_shapes[0],
        in_specs=in_specs,
        out_specs=tuple(out_specs) if emit_stats else out_specs[0],
        compiler_params=pltpu.CompilerParams(
            dimension_semantics=("parallel", "parallel"),
            vmem_limit_bytes=_vmem_limit_bytes()),
    )(*args)


# --------------------------------------------------------------------------
# ResnetBlock forward (NCHW in / NCHW out, like PyTorch)
# --------------------------------------------------------------------------
@functools.partial(jax.jit, static_argnames=("tile_rows",))
def resnet_block_forward(x_nchw, params, tile_rows=None):
    x = jnp.transpose(x_nchw, (0, 2, 3, 1)).astype(jnp.bfloat16)   # NCHW -> NHWC bf16
    N, H, W, Cin = x.shape
    Cout = params["w1"].shape[0]
    assert Cin % NUM_GROUPS == 0 and Cout % NUM_GROUPS == 0
    Th = _pick_tile_rows(H, W, Cin, Cout) if tile_rows is None else tile_rows

    ps1, pq1 = gn_partial_stats(x, Th)
    m1, r1 = finalize_group_stats(ps1, pq1, H * W)
    h1, ps2, pq2 = gn_silu_conv3x3(x, m1, r1, params["g1"], params["b1"],
                                   params["w1"], params["bb1"], Th,
                                   out_dtype=jnp.bfloat16, emit_stats=True)
    m2, r2 = finalize_group_stats(ps2, pq2, H * W)
    # Dropout(p=0.0) == identity at inference; nothing to compute.
    out = gn_silu_conv3x3(h1, m2, r2, params["g2"], params["b2"],
                          params["w2"], params["bb2"], Th,
                          skip=x, w_nin=params.get("w_nin"), b_nin=params.get("b_nin"),
                          out_dtype=jnp.float32)
    return jnp.transpose(out, (0, 3, 1, 2))                        # NHWC -> NCHW


# --------------------------------------------------------------------------
# Pure-JAX f32 reference (mirrors the PyTorch module), for correctness check
# --------------------------------------------------------------------------
def _ref_forward(x, p):
    def gn(x, gamma, beta):
        N, C, H, W = x.shape
        xr = x.reshape(N, NUM_GROUPS, C // NUM_GROUPS, H, W)
        mean = xr.mean(axis=(2, 3, 4), keepdims=True)
        var = xr.var(axis=(2, 3, 4), keepdims=True)
        xn = ((xr - mean) / jnp.sqrt(var + EPS)).reshape(N, C, H, W)
        return xn * gamma[None, :, None, None] + beta[None, :, None, None]

    def silu(v):
        return v * jax.nn.sigmoid(v)

    def conv(v, w, b, pad):
        y = jax.lax.conv_general_dilated(
            v, w, (1, 1), [(pad, pad), (pad, pad)],
            dimension_numbers=("NCHW", "OIHW", "NCHW"))
        return y + b[None, :, None, None]

    h = silu(gn(x, p["g1"], p["b1"]))
    h = conv(h, p["w1"], p["bb1"], 1)
    h = silu(gn(h, p["g2"], p["b2"]))
    h = conv(h, p["w2"], p["bb2"], 1)
    sc = conv(x, p["w_nin"], p["b_nin"], 0) if p.get("w_nin") is not None else x
    return sc + h


def _make_params(key, c_in, c_out):
    ks = jax.random.split(key, 10)
    return {
        "g1": 1.0 + 0.1 * jax.random.normal(ks[0], (c_in,), jnp.float32),
        "b1": 0.1 * jax.random.normal(ks[1], (c_in,), jnp.float32),
        "w1": 0.05 * jax.random.normal(ks[2], (c_out, c_in, 3, 3), jnp.float32),
        "bb1": 0.05 * jax.random.normal(ks[3], (c_out,), jnp.float32),
        "g2": 1.0 + 0.1 * jax.random.normal(ks[4], (c_out,), jnp.float32),
        "b2": 0.1 * jax.random.normal(ks[5], (c_out,), jnp.float32),
        "w2": 0.05 * jax.random.normal(ks[6], (c_out, c_out, 3, 3), jnp.float32),
        "bb2": 0.05 * jax.random.normal(ks[7], (c_out,), jnp.float32),
        "w_nin": (0.05 * jax.random.normal(ks[8], (c_out, c_in, 1, 1), jnp.float32)
                  if c_in != c_out else None),
        "b_nin": (0.05 * jax.random.normal(ks[9], (c_out,), jnp.float32)
                  if c_in != c_out else None),
    }


if __name__ == "__main__":
    key = jax.random.PRNGKey(0)
    # Channels must be multiples of 32 (GroupNorm with 32 groups).
    configs = [
        # (N, C_in, C_out, H, W, tile_rows or None for the auto picker)
        (2, 32, 64, 16, 16, 4),      # 1x1 nin-shortcut path; top/interior/bottom halo tiles
        (1, 64, 64, 16, 16, None),   # identity-shortcut path; hardware-derived tile rows
        (1, 128, 128, 32, 32, 8),    # lane-dense (C=128) path
    ]
    for (N, c_in, c_out, H, W, th) in configs:
        key, kx, kp = jax.random.split(key, 3)
        x = jax.random.normal(kx, (N, c_in, H, W), jnp.float32)
        params = _make_params(kp, c_in, c_out)
        out = jax.block_until_ready(resnet_block_forward(x, params, tile_rows=th))
        ref = jax.block_until_ready(_ref_forward(x, params))
        # bf16 activations + bf16 MXU operands (f32 accumulation) -> loose-ish tolerance.
        np.testing.assert_allclose(np.asarray(out), np.asarray(ref),
                                   rtol=5e-2, atol=5e-2)
    print("KERNEL_OK")
</pallas_src>

<mosaic_0001>
module attributes {stable_mosaic.version = 11 : i64} {
  func.func @_gn_partial_stats_kernel(%arg0: i32, %arg1: i32, %arg2: memref<1x4x16x32xbf16, #tpu.memory_space<vmem>>, %arg3: memref<1x1x1x32xf32, #tpu.memory_space<vmem>>, %arg4: memref<1x1x1x32xf32, #tpu.memory_space<vmem>>) attributes {dimension_semantics = [#tpu.dimension_semantics<parallel>, #tpu.dimension_semantics<parallel>], iteration_bounds = array<i64: 2, 4>, scalar_prefetch = 0 : i64, scratch_operands = 0 : i64, tpu.core_type = #tpu.core_type<tc>, window_params = [{transform_indices = @transform_0, window_bounds = array<i64: 1, 4, 16, 32>}, {transform_indices = @transform_1, window_bounds = array<i64: 1, 1, 1, 32>}, {transform_indices = @transform_2, window_bounds = array<i64: 1, 1, 1, 32>}]} {
    %c0 = arith.constant 0 : index
    %c0_0 = arith.constant 0 : index
    %c0_1 = arith.constant 0 : index
    %c0_2 = arith.constant 0 : index
    %0 = vector.load %arg2[%c0, %c0_0, %c0_1, %c0_2] : memref<1x4x16x32xbf16, #tpu.memory_space<vmem>>, vector<1x4x16x32xbf16>
    %1 = arith.extf %0 : vector<1x4x16x32xbf16> to vector<1x4x16x32xf32>
    %2 = vector.shape_cast %1 : vector<1x4x16x32xf32> to vector<64x32xf32>
    %cst = arith.constant dense<0.000000e+00> : vector<32xf32>
    %3 = vector.multi_reduction <add>, %2, %cst [0] : vector<64x32xf32> to vector<32xf32>
    %4 = vector.shape_cast %3 : vector<32xf32> to vector<1x1x1x32xf32>
    %c0_3 = arith.constant 0 : index
    %c0_4 = arith.constant 0 : index
    %c0_5 = arith.constant 0 : index
    %c0_6 = arith.constant 0 : index
    %5 = vector.load %arg3[%c0_3, %c0_4, %c0_5, %c0_6] : memref<1x1x1x32xf32, #tpu.memory_space<vmem>>, vector<1x1x1x32xf32>
    tpu.vector_store %arg3[%c0_3, %c0_4, %c0_5, %c0_6], %4 {strides = array<i32>} : memref<1x1x1x32xf32, #tpu.memory_space<vmem>>, vector<1x1x1x32xf32>,
    %6 = arith.mulf %2, %2 : vector<64x32xf32>
    %cst_7 = arith.constant dense<0.000000e+00> : vector<32xf32>
    %7 = vector.multi_reduction <add>, %6, %cst_7 [0] : vector<64x32xf32> to vector<32xf32>
    %8 = vector.shape_cast %7 : vector<32xf32> to vector<1x1x1x32xf32>
    %c0_8 = arith.constant 0 : index
    %c0_9 = arith.constant 0 : index
    %c0_10 = arith.constant 0 : index
    %c0_11 = arith.constant 0 : index
    %9 = vector.load %arg4[%c0_8, %c0_9, %c0_10, %c0_11] : memref<1x1x1x32xf32, #tpu.memory_space<vmem>>, vector<1x1x1x32xf32>
    tpu.vector_store %arg4[%c0_8, %c0_9, %c0_10, %c0_11], %8 {strides = array<i32>} : memref<1x1x1x32xf32, #tpu.memory_space<vmem>>, vector<1x1x1x32xf32>,
    return
  }
  func.func @transform_0(%arg0: i32, %arg1: i32) -> (i32, i32, i32, i32) {
    %c0_i32 = arith.constant 0 : i32
    %c0_i32_0 = arith.constant 0 : i32
    %c0_i32_1 = arith.constant 0 : i32
    return %arg0, %arg1, %c0_i32, %c0_i32_0 : i32, i32, i32, i32
  }
  func.func @transform_1(%arg0: i32, %arg1: i32) -> (i32, i32, i32, i32) {
    %c0_i32 = arith.constant 0 : i32
    %c0_i32_0 = arith.constant 0 : i32
    %c0_i32_1 = arith.constant 0 : i32
    return %arg0, %arg1, %c0_i32, %c0_i32_0 : i32, i32, i32, i32
  }
  func.func @transform_2(%arg0: i32, %arg1: i32) -> (i32, i32, i32, i32) {
    %c0_i32 = arith.constant 0 : i32
    %c0_i32_0 = arith.constant 0 : i32
    %c0_i32_1 = arith.constant 0 : i32
    return %arg0, %arg1, %c0_i32, %c0_i32_0 : i32, i32, i32, i32
  }
}

module attributes {stable_mosaic.version = 11 : i64} {
  func.func @_gn_silu_conv3x3_kernel(%arg0: i32, %arg1: i32, %arg2: memref<1x4x16x32xbf16, #tpu.memory_space<vmem>>, %arg3: memref<1x1x16x32xbf16, #tpu.memory_space<vmem>>, %arg4: memref<1x1x16x32xbf16, #tpu.memory_space<vmem>>, %arg5: memref<1x1x32xf32, #tpu.memory_space<vmem>>, %arg6: memref<1x1x32xf32, #tpu.memory_space<vmem>>, %arg7: memref<1x1x32xf32, #tpu.memory_space<vmem>>, %arg8: memref<1x1x32xf32, #tpu.memory_space<vmem>>, %arg9: memref<3x3x32x64xbf16, #tpu.memory_space<vmem>>, %arg10: memref<1x1x64xf32, #tpu.memory_space<vmem>>, %arg11: memref<1x4x16x64xbf16, #tpu.memory_space<vmem>>, %arg12: memref<1x1x1x64xf32, #tpu.memory_space<vmem>>, %arg13: memref<1x1x1x64xf32, #tpu.memory_space<vmem>>) attributes {dimension_semantics = [#tpu.dimension_semantics<parallel>, #tpu.dimension_semantics<parallel>], iteration_bounds = array<i64: 2, 4>, scalar_prefetch = 0 : i64, scratch_operands = 0 : i64, tpu.core_type = #tpu.core_type<tc>, window_params = [{transform_indices = @transform_0, window_bounds = array<i64: 1, 4, 16, 32>}, {transform_indices = @transform_1, window_bounds = array<i64: 1, 1, 16, 32>}, {transform_indices = @transform_2, window_bounds = array<i64: 1, 1, 16, 32>}, {transform_indices = @transform_3, window_bounds = array<i64: 1, 1, 32>}, {transform_indices = @transform_4, window_bounds = array<i64: 1, 1, 32>}, {pipeline_mode = #tpu.pipeline_mode<synchronous>, transform_indices = @transform_5, window_bounds = array<i64: 1, 1, 32>}, {pipeline_mode = #tpu.pipeline_mode<synchronous>, transform_indices = @transform_6, window_bounds = array<i64: 1, 1, 32>}, {pipeline_mode = #tpu.pipeline_mode<synchronous>, transform_indices = @transform_7, window_bounds = array<i64: 3, 3, 32, 64>}, {pipeline_mode = #tpu.pipeline_mode<synchronous>, transform_indices = @transform_8, window_bounds = array<i64: 1, 1, 64>}, {transform_indices = @transform_9, window_bounds = array<i64: 1, 4, 16, 64>}, {transform_indices = @transform_10, window_bounds = array<i64: 1, 1, 1, 64>}, {transform_indices = @transform_11, window_bounds = array<i64: 1, 1, 1, 64>}]} {
    %c0 = arith.constant 0 : index
    %c0_0 = arith.constant 0 : index
    %c0_1 = arith.constant 0 : index
    %0 = vector.load %arg6[%c0, %c0_0, %c0_1] : memref<1x1x32xf32, #tpu.memory_space<vmem>>, vector<1x1x32xf32>
    %c0_2 = arith.constant 0 : index
    %c0_3 = arith.constant 0 : index
    %c0_4 = arith.constant 0 : index
    %1 = vector.load %arg7[%c0_2, %c0_3, %c0_4] : memref<1x1x32xf32, #tpu.memory_space<vmem>>, vector<1x1x32xf32>
    %2 = arith.mulf %0, %1 : vector<1x1x32xf32>
    %c0_5 = arith.constant 0 : index
    %c0_6 = arith.constant 0 : index
    %c0_7 = arith.constant 0 : index
    %3 = vector.load %arg8[%c0_5, %c0_6, %c0_7] : memref<1x1x32xf32, #tpu.memory_space<vmem>>, vector<1x1x32xf32>
    %c0_8 = arith.constant 0 : index
    %c0_9 = arith.constant 0 : index
    %c0_10 = arith.constant 0 : index
    %4 = vector.load %arg5[%c0_8, %c0_9, %c0_10] : memref<1x1x32xf32, #tpu.memory_space<vmem>>, vector<1x1x32xf32>
    %5 = arith.mulf %4, %2 : vector<1x1x32xf32>
    %6 = arith.subf %3, %5 : vector<1x1x32xf32>
    %c0_11 = arith.constant 0 : index
    %c0_12 = arith.constant 0 : index
    %c0_13 = arith.constant 0 : index
    %c0_14 = arith.constant 0 : index
    %7 = vector.load %arg2[%c0_11, %c0_12, %c0_13, %c0_14] : memref<1x4x16x32xbf16, #tpu.memory_space<vmem>>, vector<1x4x16x32xbf16>
    %8 = vector.shape_cast %7 : vector<1x4x16x32xbf16> to vector<4x16x32xbf16>
    %c0_15 = arith.constant 0 : index
    %c0_16 = arith.constant 0 : index
    %c0_17 = arith.constant 0 : index
    %c0_18 = arith.constant 0 : index
    %9 = vector.load %arg3[%c0_15, %c0_16, %c0_17, %c0_18] : memref<1x1x16x32xbf16, #tpu.memory_space<vmem>>, vector<1x1x16x32xbf16>
    %10 = vector.shape_cast %9 : vector<1x1x16x32xbf16> to vector<1x16x32xbf16>
    %c0_19 = arith.constant 0 : index
    %c0_20 = arith.constant 0 : index
    %c0_21 = arith.constant 0 : index
    %c0_22 = arith.constant 0 : index
    %11 = vector.load %arg4[%c0_19, %c0_20, %c0_21, %c0_22] : memref<1x1x16x32xbf16, #tpu.memory_space<vmem>>, vector<1x1x16x32xbf16>
    %12 = vector.shape_cast %11 : vector<1x1x16x32xbf16> to vector<1x16x32xbf16>
    %13 = tpu.concatenate %10, %8, %12 in 0 : vector<1x16x32xbf16>, vector<4x16x32xbf16>, vector<1x16x32xbf16> -> vector<6x16x32xbf16>
    %14 = arith.extf %13 : vector<6x16x32xbf16> to vector<6x16x32xf32>
    %15 = vector.broadcast %2 : vector<1x1x32xf32> to vector<6x16x32xf32>
    %16 = arith.mulf %14, %15 : vector<6x16x32xf32>
    %17 = vector.broadcast %6 : vector<1x1x32xf32> to vector<6x16x32xf32>
    %18 = arith.addf %16, %17 : vector<6x16x32xf32>
    %19 = arith.negf %18 : vector<6x16x32xf32>
    %20 = math.exp %19 : vector<6x16x32xf32>
    %cst = arith.constant 1.000000e+00 : f32
    %21 = vector.broadcast %cst : f32 to vector<6x16x32xf32>
    %22 = arith.addf %21, %20 : vector<6x16x32xf32>
    %23 = arith.divf %21, %22 : vector<6x16x32xf32>
    %24 = arith.mulf %18, %23 : vector<6x16x32xf32>
    %25 = tpu.iota {dimensions = array<i32: 0>} : vector<6x1x1xi32>
    %c0_i32 = arith.constant 0 : i32
    %26 = vector.broadcast %c0_i32 : i32 to vector<6x1x1xi32>
    %27 = arith.cmpi eq, %25, %26 : vector<6x1x1xi32>
    %c0_i32_23 = arith.constant 0 : i32
    %28 = arith.cmpi eq, %arg1, %c0_i32_23 : i32
    %29 = vector.broadcast %28 : i1 to vector<6x1x1xi1>
    %30 = arith.andi %27, %29 : vector<6x1x1xi1>
    %c5_i32 = arith.constant 5 : i32
    %31 = vector.broadcast %c5_i32 : i32 to vector<6x1x1xi32>
    %32 = arith.cmpi eq, %25, %31 : vector<6x1x1xi32>
    %c3_i32 = arith.constant 3 : i32
    %33 = arith.cmpi eq, %arg1, %c3_i32 : i32
    %34 = vector.broadcast %33 : i1 to vector<6x1x1xi1>
    %35 = arith.andi %32, %34 : vector<6x1x1xi1>
    %36 = arith.ori %30, %35 : vector<6x1x1xi1>
    %cst_24 = arith.constant 0.000000e+00 : f32
    %37 = vector.shape_cast %36 : vector<6x1x1xi1> to vector<6x1x1xi1>
    %38 = vector.broadcast %37 : vector<6x1x1xi1> to vector<6x16x32xi1>
    %39 = vector.broadcast %cst_24 : f32 to vector<6x16x32xf32>
    %40 = arith.select %38, %39, %24 : vector<6x16x32xi1>, vector<6x16x32xf32>
    %41 = arith.truncf %40 : vector<6x16x32xf32> to vector<6x16x32xbf16>
    %c0_25 = arith.constant 0 : index
    %c0_26 = arith.constant 0 : index
    %c0_27 = arith.constant 0 : index
    %c0_28 = arith.constant 0 : index
    %42 = vector.load %arg9[%c0_25, %c0_26, %c0_27, %c0_28] : memref<3x3x32x64xbf16, #tpu.memory_space<vmem>>, vector<3x3x32x64xbf16>
    %c0_29 = arith.constant 0 : index
    %c0_30 = arith.constant 0 : index
    %c0_31 = arith.constant 0 : index
    %43 = vector.load %arg10[%c0_29, %c0_30, %c0_31] : memref<1x1x64xf32, #tpu.memory_space<vmem>>, vector<1x1x64xf32>
    %44 = vector.shape_cast %43 : vector<1x1x64xf32> to vector<1x64xf32>
    %45 = vector.shape_cast %44 : vector<1x64xf32> to vector<1x64xf32>
    %46 = vector.broadcast %45 : vector<1x64xf32> to vector<64x64xf32>
    %cst_32 = arith.constant 0.000000e+00 : bf16
    %47 = vector.broadcast %cst_32 : bf16 to vector<6x1x32xbf16>
    %48 = vector.extract_strided_slice %41 {offsets = [0, 0, 0], sizes = [6, 15, 32], strides = [1, 1, 1]} : vector<6x16x32xbf16> to vector<6x15x32xbf16>
    %49 = tpu.concatenate %47, %48 in 1 : vector<6x1x32xbf16>, vector<6x15x32xbf16> -> vector<6x16x32xbf16>
    %50 = vector.extract_strided_slice %49 {offsets = [0, 0, 0], sizes = [4, 16, 32], strides = [1, 1, 1]} : vector<6x16x32xbf16> to vector<4x16x32xbf16>
    %51 = vector.shape_cast %50 : vector<4x16x32xbf16> to vector<64x32xbf16>
    %52 = vector.extract_strided_slice %42 {offsets = [0, 0, 0, 0], sizes = [1, 1, 32, 64], strides = [1, 1, 1, 1]} : vector<3x3x32x64xbf16> to vector<1x1x32x64xbf16>
    %53 = vector.shape_cast %52 : vector<1x1x32x64xbf16> to vector<32x64xbf16>
    %cst_33 = arith.constant dense<0.000000e+00> : vector<64x64xf32>
    %54 = tpu.matmul %51, %53, %cst_33 {dimension_numbers = #tpu.dot_dimension_numbers<[1], [0], [0], [1], [0, 0, 1, 1], [], []>} : vector<64x32xbf16>, vector<32x64xbf16>, vector<64x64xf32> -> vector<64x64xf32>
    %55 = arith.addf %46, %54 : vector<64x64xf32>
    %56 = vector.extract_strided_slice %49 {offsets = [1, 0, 0], sizes = [4, 16, 32], strides = [1, 1, 1]} : vector<6x16x32xbf16> to vector<4x16x32xbf16>
    %57 = vector.shape_cast %56 : vector<4x16x32xbf16> to vector<64x32xbf16>
    %58 = vector.extract_strided_slice %42 {offsets = [1, 0, 0, 0], sizes = [1, 1, 32, 64], strides = [1, 1, 1, 1]} : vector<3x3x32x64xbf16> to vector<1x1x32x64xbf16>
    %59 = vector.shape_cast %58 : vector<1x1x32x64xbf16> to vector<32x64xbf16>
    %cst_34 = arith.constant dense<0.000000e+00> : vector<64x64xf32>
    %60 = tpu.matmul %57, %59, %cst_34 {dimension_numbers = #tpu.dot_dimension_numbers<[1], [0], [0], [1], [0, 0, 1, 1], [], []>} : vector<64x32xbf16>, vector<32x64xbf16>, vector<64x64xf32> -> vector<64x64xf32>
    %61 = arith.addf %55, %60 : vector<64x64xf32>
    %62 = vector.extract_strided_slice %49 {offsets = [2, 0, 0], sizes = [4, 16, 32], strides = [1, 1, 1]} : vector<6x16x32xbf16> to vector<4x16x32xbf16>
    %63 = vector.shape_cast %62 : vector<4x16x32xbf16> to vector<64x32xbf16>
    %64 = vector.extract_strided_slice %42 {offsets = [2, 0, 0, 0], sizes = [1, 1, 32, 64], strides = [1, 1, 1, 1]} : vector<3x3x32x64xbf16> to vector<1x1x32x64xbf16>
    %65 = vector.shape_cast %64 : vector<1x1x32x64xbf16> to vector<32x64xbf16>
    %cst_35 = arith.constant dense<0.000000e+00> : vector<64x64xf32>
    %66 = tpu.matmul %63, %65, %cst_35 {dimension_numbers = #tpu.dot_dimension_numbers<[1], [0], [0], [1], [0, 0, 1, 1], [], []>} : vector<64x32xbf16>, vector<32x64xbf16>, vector<64x64xf32> -> vector<64x64xf32>
    %67 = arith.addf %61, %66 : vector<64x64xf32>
    %68 = vector.extract_strided_slice %41 {offsets = [0, 0, 0], sizes = [4, 16, 32], strides = [1, 1, 1]} : vector<6x16x32xbf16> to vector<4x16x32xbf16>
    %69 = vector.shape_cast %68 : vector<4x16x32xbf16> to vector<64x32xbf16>
    %70 = vector.extract_strided_slice %42 {offsets = [0, 1, 0, 0], sizes = [1, 1, 32, 64], strides = [1, 1, 1, 1]} : vector<3x3x32x64xbf16> to vector<1x1x32x64xbf16>
    %71 = vector.shape_cast %70 : vector<1x1x32x64xbf16> to vector<32x64xbf16>
    %cst_36 = arith.constant dense<0.000000e+00> : vector<64x64xf32>
    %72 = tpu.matmul %69, %71, %cst_36 {dimension_numbers = #tpu.dot_dimension_numbers<[1], [0], [0], [1], [0, 0, 1, 1], [], []>} : vector<64x32xbf16>, vector<32x64xbf16>, vector<64x64xf32> -> vector<64x64xf32>
    %73 = arith.addf %67, %72 : vector<64x64xf32>
    %74 = vector.extract_strided_slice %41 {offsets = [1, 0, 0], sizes = [4, 16, 32], strides = [1, 1, 1]} : vector<6x16x32xbf16> to vector<4x16x32xbf16>
    %75 = vector.shape_cast %74 : vector<4x16x32xbf16> to vector<64x32xbf16>
    %76 = vector.extract_strided_slice %42 {offsets = [1, 1, 0, 0], sizes = [1, 1, 32, 64], strides = [1, 1, 1, 1]} : vector<3x3x32x64xbf16> to vector<1x1x32x64xbf16>
    %77 = vector.shape_cast %76 : vector<1x1x32x64xbf16> to vector<32x64xbf16>
    %cst_37 = arith.constant dense<0.000000e+00> : vector<64x64xf32>
    %78 = tpu.matmul %75, %77, %cst_37 {dimension_numbers = #tpu.dot_dimension_numbers<[1], [0], [0], [1], [0, 0, 1, 1], [], []>} : vector<64x32xbf16>, vector<32x64xbf16>, vector<64x64xf32> -> vector<64x64xf32>
    %79 = arith.addf %73, %78 : vector<64x64xf32>
    %80 = vector.extract_strided_slice %41 {offsets = [2, 0, 0], sizes = [4, 16, 32], strides = [1, 1, 1]} : vector<6x16x32xbf16> to vector<4x16x32xbf16>
    %81 = vector.shape_cast %80 : vector<4x16x32xbf16> to vector<64x32xbf16>
    %82 = vector.extract_strided_slice %42 {offsets = [2, 1, 0, 0], sizes = [1, 1, 32, 64], strides = [1, 1, 1, 1]} : vector<3x3x32x64xbf16> to vector<1x1x32x64xbf16>
    %83 = vector.shape_cast %82 : vector<1x1x32x64xbf16> to vector<32x64xbf16>
    %cst_38 = arith.constant dense<0.000000e+00> : vector<64x64xf32>
    %84 = tpu.matmul %81, %83, %cst_38 {dimension_numbers = #tpu.dot_dimension_numbers<[1], [0], [0], [1], [0, 0, 1, 1], [], []>} : vector<64x32xbf16>, vector<32x64xbf16>, vector<64x64xf32> -> vector<64x64xf32>
    %85 = arith.addf %79, %84 : vector<64x64xf32>
    %cst_39 = arith.constant 0.000000e+00 : bf16
    %86 = vector.broadcast %cst_39 : bf16 to vector<6x1x32xbf16>
    %87 = vector.extract_strided_slice %41 {offsets = [0, 1, 0], sizes = [6, 15, 32], strides = [1, 1, 1]} : vector<6x16x32xbf16> to vector<6x15x32xbf16>
    %88 = tpu.concatenate %87, %86 in 1 : vector<6x15x32xbf16>, vector<6x1x32xbf16> -> vector<6x16x32xbf16>
    %89 = vector.extract_strided_slice %88 {offsets = [0, 0, 0], sizes = [4, 16, 32], strides = [1, 1, 1]} : vector<6x16x32xbf16> to vector<4x16x32xbf16>
    %90 = vector.shape_cast %89 : vector<4x16x32xbf16> to vector<64x32xbf16>
    %91 = vector.extract_strided_slice %42 {offsets = [0, 2, 0, 0], sizes = [1, 1, 32, 64], strides = [1, 1, 1, 1]} : vector<3x3x32x64xbf16> to vector<1x1x32x64xbf16>
    %92 = vector.shape_cast %91 : vector<1x1x32x64xbf16> to vector<32x64xbf16>
    %cst_40 = arith.constant dense<0.000000e+00> : vector<64x64xf32>
    %93 = tpu.matmul %90, %92, %cst_40 {dimension_numbers = #tpu.dot_dimension_numbers<[1], [0], [0], [1], [0, 0, 1, 1], [], []>} : vector<64x32xbf16>, vector<32x64xbf16>, vector<64x64xf32> -> vector<64x64xf32>
    %94 = arith.addf %85, %93 : vector<64x64xf32>
    %95 = vector.extract_strided_slice %88 {offsets = [1, 0, 0], sizes = [4, 16, 32], strides = [1, 1, 1]} : vector<6x16x32xbf16> to vector<4x16x32xbf16>
    %96 = vector.shape_cast %95 : vector<4x16x32xbf16> to vector<64x32xbf16>
    %97 = vector.extract_strided_slice %42 {offsets = [1, 2, 0, 0], sizes = [1, 1, 32, 64], strides = [1, 1, 1, 1]} : vector<3x3x32x64xbf16> to vector<1x1x32x64xbf16>
    %98 = vector.shape_cast %97 : vector<1x1x32x64xbf16> to vector<32x64xbf16>
    %cst_41 = arith.constant dense<0.000000e+00> : vector<64x64xf32>
    %99 = tpu.matmul %96, %98, %cst_41 {dimension_numbers = #tpu.dot_dimension_numbers<[1], [0], [0], [1], [0, 0, 1, 1], [], []>} : vector<64x32xbf16>, vector<32x64xbf16>, vector<64x64xf32> -> vector<64x64xf32>
    %100 = arith.addf %94, %99 : vector<64x64xf32>
    %101 = vector.extract_strided_slice %88 {offsets = [2, 0, 0], sizes = [4, 16, 32], strides = [1, 1, 1]} : vector<6x16x32xbf16> to vector<4x16x32xbf16>
    %102 = vector.shape_cast %101 : vector<4x16x32xbf16> to vector<64x32xbf16>
    %103 = vector.extract_strided_slice %42 {offsets = [2, 2, 0, 0], sizes = [1, 1, 32, 64], strides = [1, 1, 1, 1]} : vector<3x3x32x64xbf16> to vector<1x1x32x64xbf16>
    %104 = vector.shape_cast %103 : vector<1x1x32x64xbf16> to vector<32x64xbf16>
    %cst_42 = arith.constant dense<0.000000e+00> : vector<64x64xf32>
    %105 = tpu.matmul %102, %104, %cst_42 {dimension_numbers = #tpu.dot_dimension_numbers<[1], [0], [0], [1], [0, 0, 1, 1], [], []>} : vector<64x32xbf16>, vector<32x64xbf16>, vector<64x64xf32> -> vector<64x64xf32>
    %106 = arith.addf %100, %105 : vector<64x64xf32>
    %cst_43 = arith.constant dense<0.000000e+00> : vector<64xf32>
    %107 = vector.multi_reduction <add>, %106, %cst_43 [0] : vector<64x64xf32> to vector<64xf32>
    %108 = vector.shape_cast %107 : vector<64xf32> to vector<1x1x1x64xf32>
    %c0_44 = arith.constant 0 : index
    %c0_45 = arith.constant 0 : index
    %c0_46 = arith.constant 0 : index
    %c0_47 = arith.constant 0 : index
    %109 = vector.load %arg12[%c0_44, %c0_45, %c0_46, %c0_47] : memref<1x1x1x64xf32, #tpu.memory_space<vmem>>, vector<1x1x1x64xf32>
    tpu.vector_store %arg12[%c0_44, %c0_45, %c0_46, %c0_47], %108 {strides = array<i32>} : memref<1x1x1x64xf32, #tpu.memory_space<vmem>>, vector<1x1x1x64xf32>,
    %110 = arith.mulf %106, %106 : vector<64x64xf32>
    %cst_48 = arith.constant dense<0.000000e+00> : vector<64xf32>
    %111 = vector.multi_reduction <add>, %110, %cst_48 [0] : vector<64x64xf32> to vector<64xf32>
    %112 = vector.shape_cast %111 : vector<64xf32> to vector<1x1x1x64xf32>
    %c0_49 = arith.constant 0 : index
    %c0_50 = arith.constant 0 : index
    %c0_51 = arith.constant 0 : index
    %c0_52 = arith.constant 0 : index
    %113 = vector.load %arg13[%c0_49, %c0_50, %c0_51, %c0_52] : memref<1x1x1x64xf32, #tpu.memory_space<vmem>>, vector<1x1x1x64xf32>
    tpu.vector_store %arg13[%c0_49, %c0_50, %c0_51, %c0_52], %112 {strides = array<i32>} : memref<1x1x1x64xf32, #tpu.memory_space<vmem>>, vector<1x1x1x64xf32>,
    %114 = vector.shape_cast %106 : vector<64x64xf32> to vector<1x4x16x64xf32>
    %115 = arith.truncf %114 : vector<1x4x16x64xf32> to vector<1x4x16x64xbf16>
    %c0_53 = arith.constant 0 : index
    %c0_54 = arith.constant 0 : index
    %c0_55 = arith.constant 0 : index
    %c0_56 = arith.constant 0 : index
    %116 = vector.load %arg11[%c0_53, %c0_54, %c0_55, %c0_56] : memref<1x4x16x64xbf16, #tpu.memory_space<vmem>>, vector<1x4x16x64xbf16>
    tpu.vector_store %arg11[%c0_53, %c0_54, %c0_55, %c0_56], %115 {strides = array<i32>} : memref<1x4x16x64xbf16, #tpu.memory_space<vmem>>, vector<1x4x16x64xbf16>,
    return
  }
  func.func @transform_0(%arg0: i32, %arg1: i32) -> (i32, i32, i32, i32) {
    %c0_i32 = arith.constant 0 : i32
    %c0_i32_0 = arith.constant 0 : i32
    %c0_i32_1 = arith.constant 0 : i32
    return %arg0, %arg1, %c0_i32, %c0_i32_0 : i32, i32, i32, i32
  }
  func.func @transform_1(%arg0: i32, %arg1: i32) -> (i32, i32, i32, i32) {
    %c4_i32 = arith.constant 4 : i32
    %0 = arith.muli %arg1, %c4_i32 : i32
    %c1_i32 = arith.constant 1 : i32
    %1 = arith.subi %0, %c1_i32 : i32
    %c0_i32 = arith.constant 0 : i32
    %2 = arith.maxsi %1, %c0_i32 : i32
    %c0_i32_0 = arith.constant 0 : i32
    %c0_i32_1 = arith.constant 0 : i32
    %c0_i32_2 = arith.constant 0 : i32
    return %arg0, %2, %c0_i32_0, %c0_i32_1 : i32, i32, i32, i32
  }
  func.func @transform_2(%arg0: i32, %arg1: i32) -> (i32, i32, i32, i32) {
    %c4_i32 = arith.constant 4 : i32
    %0 = arith.muli %arg1, %c4_i32 : i32
    %c4_i32_0 = arith.constant 4 : i32
    %1 = arith.addi %0, %c4_i32_0 : i32
    %c15_i32 = arith.constant 15 : i32
    %2 = arith.minsi %1, %c15_i32 : i32
    %c0_i32 = arith.constant 0 : i32
    %c0_i32_1 = arith.constant 0 : i32
    %c0_i32_2 = arith.constant 0 : i32
    return %arg0, %2, %c0_i32, %c0_i32_1 : i32, i32, i32, i32
  }
  func.func @transform_3(%arg0: i32, %arg1: i32) -> (i32, i32, i32) {
    %c0_i32 = arith.constant 0 : i32
    %c0_i32_0 = arith.constant 0 : i32
    %c0_i32_1 = arith.constant 0 : i32
    return %arg0, %c0_i32, %c0_i32_0 : i32, i32, i32
  }
  func.func @transform_4(%arg0: i32, %arg1: i32) -> (i32, i32, i32) {
    %c0_i32 = arith.constant 0 : i32
    %c0_i32_0 = arith.constant 0 : i32
    %c0_i32_1 = arith.constant 0 : i32
    return %arg0, %c0_i32, %c0_i32_0 : i32, i32, i32
  }
  func.func @transform_5(%arg0: i32, %arg1: i32) -> (i32, i32, i32) {
    %c0_i32 = arith.constant 0 : i32
    %c0_i32_0 = arith.constant 0 : i32
    %c0_i32_1 = arith.constant 0 : i32
    %c0_i32_2 = arith.constant 0 : i32
    return %c0_i32, %c0_i32_0, %c0_i32_1 : i32, i32, i32
  }
  func.func @transform_6(%arg0: i32, %arg1: i32) -> (i32, i32, i32) {
    %c0_i32 = arith.constant 0 : i32
    %c0_i32_0 = arith.constant 0 : i32
    %c0_i32_1 = arith.constant 0 : i32
    %c0_i32_2 = arith.constant 0 : i32
    return %c0_i32, %c0_i32_0, %c0_i32_1 : i32, i32, i32
  }
  func.func @transform_7(%arg0: i32, %arg1: i32) -> (i32, i32, i32, i32) {
    %c0_i32 = arith.constant 0 : i32
    %c0_i32_0 = arith.constant 0 : i32
    %c0_i32_1 = arith.constant 0 : i32
    %c0_i32_2 = arith.constant 0 : i32
    %c0_i32_3 = arith.constant 0 : i32
    return %c0_i32, %c0_i32_0, %c0_i32_1, %c0_i32_2 : i32, i32, i32, i32
  }
  func.func @transform_8(%arg0: i32, %arg1: i32) -> (i32, i32, i32) {
    %c0_i32 = arith.constant 0 : i32
    %c0_i32_0 = arith.constant 0 : i32
    %c0_i32_1 = arith.constant 0 : i32
    %c0_i32_2 = arith.constant 0 : i32
    return %c0_i32, %c0_i32_0, %c0_i32_1 : i32, i32, i32
  }
  func.func @transform_9(%arg0: i32, %arg1: i32) -> (i32, i32, i32, i32) {
    %c0_i32 = arith.constant 0 : i32
    %c0_i32_0 = arith.constant 0 : i32
    %c0_i32_1 = arith.constant 0 : i32
    return %arg0, %arg1, %c0_i32, %c0_i32_0 : i32, i32, i32, i32
  }
  func.func @transform_10(%arg0: i32, %arg1: i32) -> (i32, i32, i32, i32) {
    %c0_i32 = arith.constant 0 : i32
    %c0_i32_0 = arith.constant 0 : i32
    %c0_i32_1 = arith.constant 0 : i32
    return %arg0, %arg1, %c0_i32, %c0_i32_0 : i32, i32, i32, i32
  }
  func.func @transform_11(%arg0: i32, %arg1: i32) -> (i32, i32, i32, i32) {
    %c0_i32 = arith.constant 0 : i32
    %c0_i32_0 = arith.constant 0 : i32
    %c0_i32_1 = arith.constant 0 : i32
    return %arg0, %arg1, %c0_i32, %c0_i32_0 : i32, i32, i32, i32
  }
}

module attributes {stable_mosaic.version = 11 : i64} {
  func.func @_gn_silu_conv3x3_kernel(%arg0: i32, %arg1: i32, %arg2: memref<1x4x16x64xbf16, #tpu.memory_space<vmem>>, %arg3: memref<1x1x16x64xbf16, #tpu.memory_space<vmem>>, %arg4: memref<1x1x16x64xbf16, #tpu.memory_space<vmem>>, %arg5: memref<1x1x64xf32, #tpu.memory_space<vmem>>, %arg6: memref<1x1x64xf32, #tpu.memory_space<vmem>>, %arg7: memref<1x1x64xf32, #tpu.memory_space<vmem>>, %arg8: memref<1x1x64xf32, #tpu.memory_space<vmem>>, %arg9: memref<3x3x64x64xbf16, #tpu.memory_space<vmem>>, %arg10: memref<1x1x64xf32, #tpu.memory_space<vmem>>, %arg11: memref<1x4x16x32xbf16, #tpu.memory_space<vmem>>, %arg12: memref<32x64xbf16, #tpu.memory_space<vmem>>, %arg13: memref<1x1x64xf32, #tpu.memory_space<vmem>>, %arg14: memref<1x4x16x64xf32, #tpu.memory_space<vmem>>) attributes {dimension_semantics = [#tpu.dimension_semantics<parallel>, #tpu.dimension_semantics<parallel>], iteration_bounds = array<i64: 2, 4>, scalar_prefetch = 0 : i64, scratch_operands = 0 : i64, tpu.core_type = #tpu.core_type<tc>, window_params = [{transform_indices = @transform_0, window_bounds = array<i64: 1, 4, 16, 64>}, {transform_indices = @transform_1, window_bounds = array<i64: 1, 1, 16, 64>}, {transform_indices = @transform_2, window_bounds = array<i64: 1, 1, 16, 64>}, {transform_indices = @transform_3, window_bounds = array<i64: 1, 1, 64>}, {transform_indices = @transform_4, window_bounds = array<i64: 1, 1, 64>}, {pipeline_mode = #tpu.pipeline_mode<synchronous>, transform_indices = @transform_5, window_bounds = array<i64: 1, 1, 64>}, {pipeline_mode = #tpu.pipeline_mode<synchronous>, transform_indices = @transform_6, window_bounds = array<i64: 1, 1, 64>}, {pipeline_mode = #tpu.pipeline_mode<synchronous>, transform_indices = @transform_7, window_bounds = array<i64: 3, 3, 64, 64>}, {pipeline_mode = #tpu.pipeline_mode<synchronous>, transform_indices = @transform_8, window_bounds = array<i64: 1, 1, 64>}, {transform_indices = @transform_9, window_bounds = array<i64: 1, 4, 16, 32>}, {pipeline_mode = #tpu.pipeline_mode<synchronous>, transform_indices = @transform_10, window_bounds = array<i64: 32, 64>}, {pipeline_mode = #tpu.pipeline_mode<synchronous>, transform_indices = @transform_11, window_bounds = array<i64: 1, 1, 64>}, {transform_indices = @transform_12, window_bounds = array<i64: 1, 4, 16, 64>}]} {
    %c0 = arith.constant 0 : index
    %c0_0 = arith.constant 0 : index
    %c0_1 = arith.constant 0 : index
    %0 = vector.load %arg6[%c0, %c0_0, %c0_1] : memref<1x1x64xf32, #tpu.memory_space<vmem>>, vector<1x1x64xf32>
    %c0_2 = arith.constant 0 : index
    %c0_3 = arith.constant 0 : index
    %c0_4 = arith.constant 0 : index
    %1 = vector.load %arg7[%c0_2, %c0_3, %c0_4] : memref<1x1x64xf32, #tpu.memory_space<vmem>>, vector<1x1x64xf32>
    %2 = arith.mulf %0, %1 : vector<1x1x64xf32>
    %c0_5 = arith.constant 0 : index
    %c0_6 = arith.constant 0 : index
    %c0_7 = arith.constant 0 : index
    %3 = vector.load %arg8[%c0_5, %c0_6, %c0_7] : memref<1x1x64xf32, #tpu.memory_space<vmem>>, vector<1x1x64xf32>
    %c0_8 = arith.constant 0 : index
    %c0_9 = arith.constant 0 : index
    %c0_10 = arith.constant 0 : index
    %4 = vector.load %arg5[%c0_8, %c0_9, %c0_10] : memref<1x1x64xf32, #tpu.memory_space<vmem>>, vector<1x1x64xf32>
    %5 = arith.mulf %4, %2 : vector<1x1x64xf32>
    %6 = arith.subf %3, %5 : vector<1x1x64xf32>
    %c0_11 = arith.constant 0 : index
    %c0_12 = arith.constant 0 : index
    %c0_13 = arith.constant 0 : index
    %c0_14 = arith.constant 0 : index
    %7 = vector.load %arg2[%c0_11, %c0_12, %c0_13, %c0_14] : memref<1x4x16x64xbf16, #tpu.memory_space<vmem>>, vector<1x4x16x64xbf16>
    %8 = vector.shape_cast %7 : vector<1x4x16x64xbf16> to vector<4x16x64xbf16>
    %c0_15 = arith.constant 0 : index
    %c0_16 = arith.constant 0 : index
    %c0_17 = arith.constant 0 : index
    %c0_18 = arith.constant 0 : index
    %9 = vector.load %arg3[%c0_15, %c0_16, %c0_17, %c0_18] : memref<1x1x16x64xbf16, #tpu.memory_space<vmem>>, vector<1x1x16x64xbf16>
    %10 = vector.shape_cast %9 : vector<1x1x16x64xbf16> to vector<1x16x64xbf16>
    %c0_19 = arith.constant 0 : index
    %c0_20 = arith.constant 0 : index
    %c0_21 = arith.constant 0 : index
    %c0_22 = arith.constant 0 : index
    %11 = vector.load %arg4[%c0_19, %c0_20, %c0_21, %c0_22] : memref<1x1x16x64xbf16, #tpu.memory_space<vmem>>, vector<1x1x16x64xbf16>
    %12 = vector.shape_cast %11 : vector<1x1x16x64xbf16> to vector<1x16x64xbf16>
    %13 = tpu.concatenate %10, %8, %12 in 0 : vector<1x16x64xbf16>, vector<4x16x64xbf16>, vector<1x16x64xbf16> -> vector<6x16x64xbf16>
    %14 = arith.extf %13 : vector<6x16x64xbf16> to vector<6x16x64xf32>
    %15 = vector.broadcast %2 : vector<1x1x64xf32> to vector<6x16x64xf32>
    %16 = arith.mulf %14, %15 : vector<6x16x64xf32>
    %17 = vector.broadcast %6 : vector<1x1x64xf32> to vector<6x16x64xf32>
    %18 = arith.addf %16, %17 : vector<6x16x64xf32>
    %19 = arith.negf %18 : vector<6x16x64xf32>
    %20 = math.exp %19 : vector<6x16x64xf32>
    %cst = arith.constant 1.000000e+00 : f32
    %21 = vector.broadcast %cst : f32 to vector<6x16x64xf32>
    %22 = arith.addf %21, %20 : vector<6x16x64xf32>
    %23 = arith.divf %21, %22 : vector<6x16x64xf32>
    %24 = arith.mulf %18, %23 : vector<6x16x64xf32>
    %25 = tpu.iota {dimensions = array<i32: 0>} : vector<6x1x1xi32>
    %c0_i32 = arith.constant 0 : i32
    %26 = vector.broadcast %c0_i32 : i32 to vector<6x1x1xi32>
    %27 = arith.cmpi eq, %25, %26 : vector<6x1x1xi32>
    %c0_i32_23 = arith.constant 0 : i32
    %28 = arith.cmpi eq, %arg1, %c0_i32_23 : i32
    %29 = vector.broadcast %28 : i1 to vector<6x1x1xi1>
    %30 = arith.andi %27, %29 : vector<6x1x1xi1>
    %c5_i32 = arith.constant 5 : i32
    %31 = vector.broadcast %c5_i32 : i32 to vector<6x1x1xi32>
    %32 = arith.cmpi eq, %25, %31 : vector<6x1x1xi32>
    %c3_i32 = arith.constant 3 : i32
    %33 = arith.cmpi eq, %arg1, %c3_i32 : i32
    %34 = vector.broadcast %33 : i1 to vector<6x1x1xi1>
    %35 = arith.andi %32, %34 : vector<6x1x1xi1>
    %36 = arith.ori %30, %35 : vector<6x1x1xi1>
    %cst_24 = arith.constant 0.000000e+00 : f32
    %37 = vector.shape_cast %36 : vector<6x1x1xi1> to vector<6x1x1xi1>
    %38 = vector.broadcast %37 : vector<6x1x1xi1> to vector<6x16x64xi1>
    %39 = vector.broadcast %cst_24 : f32 to vector<6x16x64xf32>
    %40 = arith.select %38, %39, %24 : vector<6x16x64xi1>, vector<6x16x64xf32>
    %41 = arith.truncf %40 : vector<6x16x64xf32> to vector<6x16x64xbf16>
    %c0_25 = arith.constant 0 : index
    %c0_26 = arith.constant 0 : index
    %c0_27 = arith.constant 0 : index
    %c0_28 = arith.constant 0 : index
    %42 = vector.load %arg9[%c0_25, %c0_26, %c0_27, %c0_28] : memref<3x3x64x64xbf16, #tpu.memory_space<vmem>>, vector<3x3x64x64xbf16>
    %c0_29 = arith.constant 0 : index
    %c0_30 = arith.constant 0 : index
    %c0_31 = arith.constant 0 : index
    %43 = vector.load %arg10[%c0_29, %c0_30, %c0_31] : memref<1x1x64xf32, #tpu.memory_space<vmem>>, vector<1x1x64xf32>
    %44 = vector.shape_cast %43 : vector<1x1x64xf32> to vector<1x64xf32>
    %45 = vector.shape_cast %44 : vector<1x64xf32> to vector<1x64xf32>
    %46 = vector.broadcast %45 : vector<1x64xf32> to vector<64x64xf32>
    %cst_32 = arith.constant 0.000000e+00 : bf16
    %47 = vector.broadcast %cst_32 : bf16 to vector<6x1x64xbf16>
    %48 = vector.extract_strided_slice %41 {offsets = [0, 0, 0], sizes = [6, 15, 64], strides = [1, 1, 1]} : vector<6x16x64xbf16> to vector<6x15x64xbf16>
    %49 = tpu.concatenate %47, %48 in 1 : vector<6x1x64xbf16>, vector<6x15x64xbf16> -> vector<6x16x64xbf16>
    %50 = vector.extract_strided_slice %49 {offsets = [0, 0, 0], sizes = [4, 16, 64], strides = [1, 1, 1]} : vector<6x16x64xbf16> to vector<4x16x64xbf16>
    %51 = vector.shape_cast %50 : vector<4x16x64xbf16> to vector<64x64xbf16>
    %52 = vector.extract_strided_slice %42 {offsets = [0, 0, 0, 0], sizes = [1, 1, 64, 64], strides = [1, 1, 1, 1]} : vector<3x3x64x64xbf16> to vector<1x1x64x64xbf16>
    %53 = vector.shape_cast %52 : vector<1x1x64x64xbf16> to vector<64x64xbf16>
    %cst_33 = arith.constant dense<0.000000e+00> : vector<64x64xf32>
    %54 = tpu.matmul %51, %53, %cst_33 {dimension_numbers = #tpu.dot_dimension_numbers<[1], [0], [0], [1], [0, 0, 1, 1], [], []>} : vector<64x64xbf16>, vector<64x64xbf16>, vector<64x64xf32> -> vector<64x64xf32>
    %55 = arith.addf %46, %54 : vector<64x64xf32>
    %56 = vector.extract_strided_slice %49 {offsets = [1, 0, 0], sizes = [4, 16, 64], strides = [1, 1, 1]} : vector<6x16x64xbf16> to vector<4x16x64xbf16>
    %57 = vector.shape_cast %56 : vector<4x16x64xbf16> to vector<64x64xbf16>
    %58 = vector.extract_strided_slice %42 {offsets = [1, 0, 0, 0], sizes = [1, 1, 64, 64], strides = [1, 1, 1, 1]} : vector<3x3x64x64xbf16> to vector<1x1x64x64xbf16>
    %59 = vector.shape_cast %58 : vector<1x1x64x64xbf16> to vector<64x64xbf16>
    %cst_34 = arith.constant dense<0.000000e+00> : vector<64x64xf32>
    %60 = tpu.matmul %57, %59, %cst_34 {dimension_numbers = #tpu.dot_dimension_numbers<[1], [0], [0], [1], [0, 0, 1, 1], [], []>} : vector<64x64xbf16>, vector<64x64xbf16>, vector<64x64xf32> -> vector<64x64xf32>
    %61 = arith.addf %55, %60 : vector<64x64xf32>
    %62 = vector.extract_strided_slice %49 {offsets = [2, 0, 0], sizes = [4, 16, 64], strides = [1, 1, 1]} : vector<6x16x64xbf16> to vector<4x16x64xbf16>
    %63 = vector.shape_cast %62 : vector<4x16x64xbf16> to vector<64x64xbf16>
    %64 = vector.extract_strided_slice %42 {offsets = [2, 0, 0, 0], sizes = [1, 1, 64, 64], strides = [1, 1, 1, 1]} : vector<3x3x64x64xbf16> to vector<1x1x64x64xbf16>
    %65 = vector.shape_cast %64 : vector<1x1x64x64xbf16> to vector<64x64xbf16>
    %cst_35 = arith.constant dense<0.000000e+00> : vector<64x64xf32>
    %66 = tpu.matmul %63, %65, %cst_35 {dimension_numbers = #tpu.dot_dimension_numbers<[1], [0], [0], [1], [0, 0, 1, 1], [], []>} : vector<64x64xbf16>, vector<64x64xbf16>, vector<64x64xf32> -> vector<64x64xf32>
    %67 = arith.addf %61, %66 : vector<64x64xf32>
    %68 = vector.extract_strided_slice %41 {offsets = [0, 0, 0], sizes = [4, 16, 64], strides = [1, 1, 1]} : vector<6x16x64xbf16> to vector<4x16x64xbf16>
    %69 = vector.shape_cast %68 : vector<4x16x64xbf16> to vector<64x64xbf16>
    %70 = vector.extract_strided_slice %42 {offsets = [0, 1, 0, 0], sizes = [1, 1, 64, 64], strides = [1, 1, 1, 1]} : vector<3x3x64x64xbf16> to vector<1x1x64x64xbf16>
    %71 = vector.shape_cast %70 : vector<1x1x64x64xbf16> to vector<64x64xbf16>
    %cst_36 = arith.constant dense<0.000000e+00> : vector<64x64xf32>
    %72 = tpu.matmul %69, %71, %cst_36 {dimension_numbers = #tpu.dot_dimension_numbers<[1], [0], [0], [1], [0, 0, 1, 1], [], []>} : vector<64x64xbf16>, vector<64x64xbf16>, vector<64x64xf32> -> vector<64x64xf32>
    %73 = arith.addf %67, %72 : vector<64x64xf32>
    %74 = vector.extract_strided_slice %41 {offsets = [1, 0, 0], sizes = [4, 16, 64], strides = [1, 1, 1]} : vector<6x16x64xbf16> to vector<4x16x64xbf16>
    %75 = vector.shape_cast %74 : vector<4x16x64xbf16> to vector<64x64xbf16>
    %76 = vector.extract_strided_slice %42 {offsets = [1, 1, 0, 0], sizes = [1, 1, 64, 64], strides = [1, 1, 1, 1]} : vector<3x3x64x64xbf16> to vector<1x1x64x64xbf16>
    %77 = vector.shape_cast %76 : vector<1x1x64x64xbf16> to vector<64x64xbf16>
    %cst_37 = arith.constant dense<0.000000e+00> : vector<64x64xf32>
    %78 = tpu.matmul %75, %77, %cst_37 {dimension_numbers = #tpu.dot_dimension_numbers<[1], [0], [0], [1], [0, 0, 1, 1], [], []>} : vector<64x64xbf16>, vector<64x64xbf16>, vector<64x64xf32> -> vector<64x64xf32>
    %79 = arith.addf %73, %78 : vector<64x64xf32>
    %80 = vector.extract_strided_slice %41 {offsets = [2, 0, 0], sizes = [4, 16, 64], strides = [1, 1, 1]} : vector<6x16x64xbf16> to vector<4x16x64xbf16>
    %81 = vector.shape_cast %80 : vector<4x16x64xbf16> to vector<64x64xbf16>
    %82 = vector.extract_strided_slice %42 {offsets = [2, 1, 0, 0], sizes = [1, 1, 64, 64], strides = [1, 1, 1, 1]} : vector<3x3x64x64xbf16> to vector<1x1x64x64xbf16>
    %83 = vector.shape_cast %82 : vector<1x1x64x64xbf16> to vector<64x64xbf16>
    %cst_38 = arith.constant dense<0.000000e+00> : vector<64x64xf32>
    %84 = tpu.matmul %81, %83, %cst_38 {dimension_numbers = #tpu.dot_dimension_numbers<[1], [0], [0], [1], [0, 0, 1, 1], [], []>} : vector<64x64xbf16>, vector<64x64xbf16>, vector<64x64xf32> -> vector<64x64xf32>
    %85 = arith.addf %79, %84 : vector<64x64xf32>
    %cst_39 = arith.constant 0.000000e+00 : bf16
    %86 = vector.broadcast %cst_39 : bf16 to vector<6x1x64xbf16>
    %87 = vector.extract_strided_slice %41 {offsets = [0, 1, 0], sizes = [6, 15, 64], strides = [1, 1, 1]} : vector<6x16x64xbf16> to vector<6x15x64xbf16>
    %88 = tpu.concatenate %87, %86 in 1 : vector<6x15x64xbf16>, vector<6x1x64xbf16> -> vector<6x16x64xbf16>
    %89 = vector.extract_strided_slice %88 {offsets = [0, 0, 0], sizes = [4, 16, 64], strides = [1, 1, 1]} : vector<6x16x64xbf16> to vector<4x16x64xbf16>
    %90 = vector.shape_cast %89 : vector<4x16x64xbf16> to vector<64x64xbf16>
    %91 = vector.extract_strided_slice %42 {offsets = [0, 2, 0, 0], sizes = [1, 1, 64, 64], strides = [1, 1, 1, 1]} : vector<3x3x64x64xbf16> to vector<1x1x64x64xbf16>
    %92 = vector.shape_cast %91 : vector<1x1x64x64xbf16> to vector<64x64xbf16>
    %cst_40 = arith.constant dense<0.000000e+00> : vector<64x64xf32>
    %93 = tpu.matmul %90, %92, %cst_40 {dimension_numbers = #tpu.dot_dimension_numbers<[1], [0], [0], [1], [0, 0, 1, 1], [], []>} : vector<64x64xbf16>, vector<64x64xbf16>, vector<64x64xf32> -> vector<64x64xf32>
    %94 = arith.addf %85, %93 : vector<64x64xf32>
    %95 = vector.extract_strided_slice %88 {offsets = [1, 0, 0], sizes = [4, 16, 64], strides = [1, 1, 1]} : vector<6x16x64xbf16> to vector<4x16x64xbf16>
    %96 = vector.shape_cast %95 : vector<4x16x64xbf16> to vector<64x64xbf16>
    %97 = vector.extract_strided_slice %42 {offsets = [1, 2, 0, 0], sizes = [1, 1, 64, 64], strides = [1, 1, 1, 1]} : vector<3x3x64x64xbf16> to vector<1x1x64x64xbf16>
    %98 = vector.shape_cast %97 : vector<1x1x64x64xbf16> to vector<64x64xbf16>
    %cst_41 = arith.constant dense<0.000000e+00> : vector<64x64xf32>
    %99 = tpu.matmul %96, %98, %cst_41 {dimension_numbers = #tpu.dot_dimension_numbers<[1], [0], [0], [1], [0, 0, 1, 1], [], []>} : vector<64x64xbf16>, vector<64x64xbf16>, vector<64x64xf32> -> vector<64x64xf32>
    %100 = arith.addf %94, %99 : vector<64x64xf32>
    %101 = vector.extract_strided_slice %88 {offsets = [2, 0, 0], sizes = [4, 16, 64], strides = [1, 1, 1]} : vector<6x16x64xbf16> to vector<4x16x64xbf16>
    %102 = vector.shape_cast %101 : vector<4x16x64xbf16> to vector<64x64xbf16>
    %103 = vector.extract_strided_slice %42 {offsets = [2, 2, 0, 0], sizes = [1, 1, 64, 64], strides = [1, 1, 1, 1]} : vector<3x3x64x64xbf16> to vector<1x1x64x64xbf16>
    %104 = vector.shape_cast %103 : vector<1x1x64x64xbf16> to vector<64x64xbf16>
    %cst_42 = arith.constant dense<0.000000e+00> : vector<64x64xf32>
    %105 = tpu.matmul %102, %104, %cst_42 {dimension_numbers = #tpu.dot_dimension_numbers<[1], [0], [0], [1], [0, 0, 1, 1], [], []>} : vector<64x64xbf16>, vector<64x64xbf16>, vector<64x64xf32> -> vector<64x64xf32>
    %106 = arith.addf %100, %105 : vector<64x64xf32>
    %c0_43 = arith.constant 0 : index
    %c0_44 = arith.constant 0 : index
    %c0_45 = arith.constant 0 : index
    %c0_46 = arith.constant 0 : index
    %107 = vector.load %arg11[%c0_43, %c0_44, %c0_45, %c0_46] : memref<1x4x16x32xbf16, #tpu.memory_space<vmem>>, vector<1x4x16x32xbf16>
    %108 = vector.shape_cast %107 : vector<1x4x16x32xbf16> to vector<64x32xbf16>
    %c0_47 = arith.constant 0 : index
    %c0_48 = arith.constant 0 : index
    %109 = vector.load %arg12[%c0_47, %c0_48] : memref<32x64xbf16, #tpu.memory_space<vmem>>, vector<32x64xbf16>
    %cst_49 = arith.constant dense<0.000000e+00> : vector<64x64xf32>
    %110 = tpu.matmul %108, %109, %cst_49 {dimension_numbers = #tpu.dot_dimension_numbers<[1], [0], [0], [1], [0, 0, 1, 1], [], []>} : vector<64x32xbf16>, vector<32x64xbf16>, vector<64x64xf32> -> vector<64x64xf32>
    %111 = arith.addf %106, %110 : vector<64x64xf32>
    %c0_50 = arith.constant 0 : index
    %c0_51 = arith.constant 0 : index
    %c0_52 = arith.constant 0 : index
    %112 = vector.load %arg13[%c0_50, %c0_51, %c0_52] : memref<1x1x64xf32, #tpu.memory_space<vmem>>, vector<1x1x64xf32>
    %113 = vector.shape_cast %112 : vector<1x1x64xf32> to vector<1x64xf32>
    %114 = vector.broadcast %113 : vector<1x64xf32> to vector<64x64xf32>
    %115 = arith.addf %111, %114 : vector<64x64xf32>
    %116 = vector.shape_cast %115 : vector<64x64xf32> to vector<1x4x16x64xf32>
    %c0_53 = arith.constant 0 : index
    %c0_54 = arith.constant 0 : index
    %c0_55 = arith.constant 0 : index
    %c0_56 = arith.constant 0 : index
    %117 = vector.load %arg14[%c0_53, %c0_54, %c0_55, %c0_56] : memref<1x4x16x64xf32, #tpu.memory_space<vmem>>, vector<1x4x16x64xf32>
    tpu.vector_store %arg14[%c0_53, %c0_54, %c0_55, %c0_56], %116 {strides = array<i32>} : memref<1x4x16x64xf32, #tpu.memory_space<vmem>>, vector<1x4x16x64xf32>,
    return
  }
  func.func @transform_0(%arg0: i32, %arg1: i32) -> (i32, i32, i32, i32) {
    %c0_i32 = arith.constant 0 : i32
    %c0_i32_0 = arith.constant 0 : i32
    %c0_i32_1 = arith.constant 0 : i32
    return %arg0, %arg1, %c0_i32, %c0_i32_0 : i32, i32, i32, i32
  }
  func.func @transform_1(%arg0: i32, %arg1: i32) -> (i32, i32, i32, i32) {
    %c4_i32 = arith.constant 4 : i32
    %0 = arith.muli %arg1, %c4_i32 : i32
    %c1_i32 = arith.constant 1 : i32
    %1 = arith.subi %0, %c1_i32 : i32
    %c0_i32 = arith.constant 0 : i32
    %2 = arith.maxsi %1, %c0_i32 : i32
    %c0_i32_0 = arith.constant 0 : i32
    %c0_i32_1 = arith.constant 0 : i32
    %c0_i32_2 = arith.constant 0 : i32
    return %arg0, %2, %c0_i32_0, %c0_i32_1 : i32, i32, i32, i32
  }
  func.func @transform_2(%arg0: i32, %arg1: i32) -> (i32, i32, i32, i32) {
    %c4_i32 = arith.constant 4 : i32
    %0 = arith.muli %arg1, %c4_i32 : i32
    %c4_i32_0 = arith.constant 4 : i32
    %1 = arith.addi %0, %c4_i32_0 : i32
    %c15_i32 = arith.constant 15 : i32
    %2 = arith.minsi %1, %c15_i32 : i32
    %c0_i32 = arith.constant 0 : i32
    %c0_i32_1 = arith.constant 0 : i32
    %c0_i32_2 = arith.constant 0 : i32
    return %arg0, %2, %c0_i32, %c0_i32_1 : i32, i32, i32, i32
  }
  func.func @transform_3(%arg0: i32, %arg1: i32) -> (i32, i32, i32) {
    %c0_i32 = arith.constant 0 : i32
    %c0_i32_0 = arith.constant 0 : i32
    %c0_i32_1 = arith.constant 0 : i32
    return %arg0, %c0_i32, %c0_i32_0 : i32, i32, i32
  }
  func.func @transform_4(%arg0: i32, %arg1: i32) -> (i32, i32, i32) {
    %c0_i32 = arith.constant 0 : i32
    %c0_i32_0 = arith.constant 0 : i32
    %c0_i32_1 = arith.constant 0 : i32
    return %arg0, %c0_i32, %c0_i32_0 : i32, i32, i32
  }
  func.func @transform_5(%arg0: i32, %arg1: i32) -> (i32, i32, i32) {
    %c0_i32 = arith.constant 0 : i32
    %c0_i32_0 = arith.constant 0 : i32
    %c0_i32_1 = arith.constant 0 : i32
    %c0_i32_2 = arith.constant 0 : i32
    return %c0_i32, %c0_i32_0, %c0_i32_1 : i32, i32, i32
  }
  func.func @transform_6(%arg0: i32, %arg1: i32) -> (i32, i32, i32) {
    %c0_i32 = arith.constant 0 : i32
    %c0_i32_0 = arith.constant 0 : i32
    %c0_i32_1 = arith.constant 0 : i32
    %c0_i32_2 = arith.constant 0 : i32
    return %c0_i32, %c0_i32_0, %c0_i32_1 : i32, i32, i32
  }
  func.func @transform_7(%arg0: i32, %arg1: i32) -> (i32, i32, i32, i32) {
    %c0_i32 = arith.constant 0 : i32
    %c0_i32_0 = arith.constant 0 : i32
    %c0_i32_1 = arith.constant 0 : i32
    %c0_i32_2 = arith.constant 0 : i32
    %c0_i32_3 = arith.constant 0 : i32
    return %c0_i32, %c0_i32_0, %c0_i32_1, %c0_i32_2 : i32, i32, i32, i32
  }
  func.func @transform_8(%arg0: i32, %arg1: i32) -> (i32, i32, i32) {
    %c0_i32 = arith.constant 0 : i32
    %c0_i32_0 = arith.constant 0 : i32
    %c0_i32_1 = arith.constant 0 : i32
    %c0_i32_2 = arith.constant 0 : i32
    return %c0_i32, %c0_i32_0, %c0_i32_1 : i32, i32, i32
  }
  func.func @transform_9(%arg0: i32, %arg1: i32) -> (i32, i32, i32, i32) {
    %c0_i32 = arith.constant 0 : i32
    %c0_i32_0 = arith.constant 0 : i32
    %c0_i32_1 = arith.constant 0 : i32
    return %arg0, %arg1, %c0_i32, %c0_i32_0 : i32, i32, i32, i32
  }
  func.func @transform_10(%arg0: i32, %arg1: i32) -> (i32, i32) {
    %c0_i32 = arith.constant 0 : i32
    %c0_i32_0 = arith.constant 0 : i32
    %c0_i32_1 = arith.constant 0 : i32
    return %c0_i32, %c0_i32_0 : i32, i32
  }
  func.func @transform_11(%arg0: i32, %arg1: i32) -> (i32, i32, i32) {
    %c0_i32 = arith.constant 0 : i32
    %c0_i32_0 = arith.constant 0 : i32
    %c0_i32_1 = arith.constant 0 : i32
    %c0_i32_2 = arith.constant 0 : i32
    return %c0_i32, %c0_i32_0, %c0_i32_1 : i32, i32, i32
  }
  func.func @transform_12(%arg0: i32, %arg1: i32) -> (i32, i32, i32, i32) {
    %c0_i32 = arith.constant 0 : i32
    %c0_i32_0 = arith.constant 0 : i32
    %c0_i32_1 = arith.constant 0 : i32
    return %arg0, %arg1, %c0_i32, %c0_i32_0 : i32, i32, i32, i32
  }
}

</mosaic_0001>

<llo_original>
// kernel: resnet_block_forward.3
$region0: #{resnet_block_forward.3}
  #allocation0 [shape = 'u32[]', space=smem, size = 0x4, offset = 0x4, fixed_abs, tag = 'smem constant byte address 0x4 - core index']
  #allocation1 [shape = 'u32[144,128]{1,0:T(1,128)}', space=vmem, size = 0x12000, scoped, tag = 'internal scratch']
  %s0 = inlined_call_operand.vmem [shape: bf16[2,16,16,32], index: 0, kind: input, shape index: {}]
  %s1 = inlined_call_operand.vmem [shape: f32[2,4,1,32], index: 1, kind: output, shape index: {0}]
  %s2 = inlined_call_operand.vmem [shape: f32[2,4,1,32], index: 2, kind: output, shape index: {1}]
  %3 = xla_tuple %s1, %s2
  %s4 = sld [smem:[#allocation0]]
  $region45: #{resnet_block_forward.3} parent=0
    _
  %s6 = ssub.s32 1, %s4
  %s7 = scalar_select 0, %s6, %s4
  loop: start=0, step=1, limit=10
  $region2: #{resnet_block_forward.3} parent=0 // loop_pre_header
    _
  $region3: #{resnet_block_forward.3} parent=0 // loop_header
    %s9 = sphi 0, %s13
    %p10 = scmp.ge.s32.totalorder %s9, 10
    %s16 = sphi 0, %s28
    %s17 = sphi 0, %s24
    %s18 = sphi 0, %s16
    %s19 = sphi 0, %s17
    %s20 = sphi 0, %s18
    %s21 = sphi 0, %s19
    %s33 = sphi 0, %s35
    %s36 = sphi 0, %s33
    %s37 = sphi 0, %s36
    %s53 = sphi 0, %s37
    %s61 = sphi 0, %s63
    %s64 = sphi 0, %s61
    %s65 = sphi 0, %s64
    %s81 = sphi 0, %s65
    %s89 = sphi 0, %s91
    %s92 = sphi 0, %s89
    %s93 = sphi 0, %s92
    %s109 = sphi 0, %s93
  $region4: #{resnet_block_forward.3} parent=0 // loop_header_branch
    %12 = sbr.rel (%p10) target = $region8
  $region5: #{resnet_block_forward.3} parent=0 // loop_body
    %s14 = ssub.s32 %s9, 1
    %s15 = ssub.s32 %s9, 2
    %s22 = sadd.s32 1, %s17
    %p23 = scmp.ge.s32.totalorder %s22, 4
    %s24 = scalar_select %p23, 0, %s22
    %s25 = sadd.s32 1, %s16
    %s26 = scalar_select %p23, %s25, %s16
    %p27 = scmp.ge.s32.totalorder %s26, 2
    %s28 = scalar_select %p27, 0, %s26
    %s29 = ssub.s32 %s16, %s28
    %s30 = ssub.s32 %s17, %s24
    %s31 = sor.u32 %s29, %s30
    %p32 = scmp.eq.s32.totalorder %s31, 0
    %s34 = sadd.s32 %s33, 1
    %s35 = scalar_select %p32, %s33, %s34
    %p38 = pneg %p32
    %p39 = scmp.eq.s32.totalorder %s9, 7
    %p40 = por %p38, %p39
    %p41 = scmp.ne.s32.totalorder %s33, %s36
    %p42 = scmp.eq.s32.totalorder %s9, 0
    %p43 = por %p41, %p42
    %p44 = scmp.ne.s32.totalorder %s33, %s36
    %p45 = scmp.eq.s32.totalorder %s14, 7
    %p46 = por %p44, %p45
    %p47 = scmp.ne.s32.totalorder %s36, %s37
    %p48 = scmp.eq.s32.totalorder %s14, 0
    %p49 = por %p47, %p48
    %p50 = scmp.ne.s32.totalorder %s36, %s37
    %p51 = scmp.eq.s32.totalorder %s15, 7
    %p52 = por %p50, %p51
    %p54 = scmp.ne.s32.totalorder %s37, %s53
    %p55 = scmp.eq.s32.totalorder %s15, 0
    %p56 = por %p54, %p55
    %s57 = ssub.s32 %s16, %s28
    %s58 = ssub.s32 %s17, %s24
    %s59 = sor.u32 %s57, %s58
    %p60 = scmp.eq.s32.totalorder %s59, 0
    %s62 = sadd.s32 %s61, 1
    %s63 = scalar_select %p60, %s61, %s62
    %p66 = pneg %p60
    %p67 = scmp.eq.s32.totalorder %s9, 7
    %p68 = por %p66, %p67
    %p69 = scmp.ne.s32.totalorder %s61, %s64
    %p70 = scmp.eq.s32.totalorder %s9, 0
    %p71 = por %p69, %p70
    %p72 = scmp.ne.s32.totalorder %s61, %s64
    %p73 = scmp.eq.s32.totalorder %s14, 7
    %p74 = por %p72, %p73
    %p75 = scmp.ne.s32.totalorder %s64, %s65
    %p76 = scmp.eq.s32.totalorder %s14, 0
    %p77 = por %p75, %p76
    %p78 = scmp.ne.s32.totalorder %s64, %s65
    %p79 = scmp.eq.s32.totalorder %s15, 7
    %p80 = por %p78, %p79
    %p82 = scmp.ne.s32.totalorder %s65, %s81
    %p83 = scmp.eq.s32.totalorder %s15, 0
    %p84 = por %p82, %p83
    %s85 = ssub.s32 %s16, %s28
    %s86 = ssub.s32 %s17, %s24
    %s87 = sor.u32 %s85, %s86
    %p88 = scmp.eq.s32.totalorder %s87, 0
    %s90 = sadd.s32 %s89, 1
    %s91 = scalar_select %p88, %s89, %s90
    %p94 = pneg %p88
    %p95 = scmp.eq.s32.totalorder %s9, 7
    %p96 = por %p94, %p95
    %p97 = scmp.ne.s32.totalorder %s89, %s92
    %p98 = scmp.eq.s32.totalorder %s9, 0
    %p99 = por %p97, %p98
    %p100 = scmp.ne.s32.totalorder %s89, %s92
    %p101 = scmp.eq.s32.totalorder %s14, 7
    %p102 = por %p100, %p101
    %p103 = scmp.ne.s32.totalorder %s92, %s93
    %p104 = scmp.eq.s32.totalorder %s14, 0
    %p105 = por %p103, %p104
    %p106 = scmp.ne.s32.totalorder %s92, %s93
    %p107 = scmp.eq.s32.totalorder %s15, 7
    %p108 = por %p106, %p107
    %p110 = scmp.ne.s32.totalorder %s93, %s109
    %p111 = scmp.eq.s32.totalorder %s15, 0
    %p112 = por %p110, %p111
    %p113 = scmp.le.s32.totalorder 1, %s9
    %p114 = scmp.lt.s32.totalorder %s9, 9
    %p115 = pnand %p113, %p114
    %p116 = pneg %p115
    // Predicated region
    $region9: #{resnet_block_forward.3} parent=5 // pred_check
      _
    $region10: #{resnet_block_forward.3} parent=5 // pred_check_branch
      %118 = sbr.rel (%p115) target = $region12
    $region11: #{resnet_block_forward.3} parent=5 // pred_region
      %s119 = ssub.s32 %s9, 1
    $region12: #{resnet_block_forward.3} parent=5 // pred_fallthru
      _
    %p120 = scmp.lt.s32.totalorder %s9, 8
    // Predicated region
    $region13: #{resnet_block_forward.3} parent=5 // pred_check
      %p121 = pneg %p120
    $region14: #{resnet_block_forward.3} parent=5 // pred_check_branch
      %123 = sbr.rel (%p121) target = $region16
    $region15: #{resnet_block_forward.3} parent=5 // pred_region
      // Predicated region
      $region17: #{resnet_block_forward.3} parent=15 // pred_check
        %p124 = pneg %p43
      $region18: #{resnet_block_forward.3} parent=15 // pred_check_branch
        %126 = sbr.rel (%p124) target = $region20
      $region19: #{resnet_block_forward.3} parent=15 // pred_region
        %s127 = smul.u32 4, %s17
        %p128 = scmp.lt.s32.totalorder %s16, 1
        %s129 = scalar_select %p128, %s16, 1
        %p130 = scmp.lt.s32.totalorder %s127, 15
        %s131 = scalar_select %p130, %s127, 15
        %s132 = smul.addr %s131, 2
        %s133 = smul.addr %s129, 32
        %s134 = sadd.s32 %s132, %s133
        %s135 = smul.addr %s134, 4
        %s136 = scalar_lea.vmem %s0, %s135
        %s137 = smul.u32 4, %s17
      $region20: #{resnet_block_forward.3} parent=15 // pred_fallthru
        _
    $region16: #{resnet_block_forward.3} parent=5 // pred_fallthru
      _
    %p138 = scmp.le.s32.totalorder 1, %s9
    %p139 = scmp.lt.s32.totalorder %s9, 9
    %p140 = pnand %p138, %p139
    %p141 = pneg %p140
    // Predicated region
    $region21: #{resnet_block_forward.3} parent=5 // pred_check
      _
    $region22: #{resnet_block_forward.3} parent=5 // pred_check_branch
      %143 = sbr.rel (%p140) target = $region24
    $region23: #{resnet_block_forward.3} parent=5 // pred_region
      %s144 = ssub.s32 %s9, 1
      %s145 = smul.u32 4, %s19
      %p146 = scmp.lt.s32.totalorder %s18, 1
      %s147 = scalar_select %p146, %s18, 1
      %p148 = scmp.lt.s32.totalorder %s145, 15
      %s149 = scalar_select %p148, %s145, 15
      %s150 = smul.addr %s149, 2
      %s151 = smul.addr %s147, 32
      %s152 = sadd.s32 %s150, %s151
      %s153 = smul.addr %s152, 4
      %s154 = scalar_lea.vmem %s0, %s153
      %p155 = pneg %p49
      %p156 = pneg %p46
      %p157 = pneg %p77
      %p158 = pneg %p74
      %p159 = scmp.lt.s32.totalorder %s18, 1
      %s160 = scalar_select %p159, %s18, 1
      %p161 = scmp.lt.s32.totalorder %s19, 3
      %s162 = scalar_select %p161, %s19, 3
      %s163 = smul.addr %s160, 4
      %s164 = sadd.s32 %s162, %s163
      %s165 = scalar_lea.vmem %s1, %s164
      %p166 = pneg %p105
      %p167 = pneg %p102
      %p168 = scmp.lt.s32.totalorder %s18, 1
      %s169 = scalar_select %p168, %s18, 1
      %p170 = scmp.lt.s32.totalorder %s19, 3
      %s171 = scalar_select %p170, %s19, 3
      %s172 = smul.addr %s169, 4
      %s173 = sadd.s32 %s171, %s172
      %s174 = scalar_lea.vmem %s2, %s173
      %s175 = smul.u32 4, %s19
      %p176 = scmp.lt.s32.totalorder %s18, 1
      %s177 = scalar_select %p176, %s18, 1
      %p178 = scmp.lt.s32.totalorder %s175, 15
      %s179 = scalar_select %p178, %s175, 15
      %s180 = smul.addr %s179, 2
      %s181 = smul.addr %s177, 32
      %s182 = sadd.s32 %s180, %s181
      %s183 = smul.addr %s182, 4
      %s184 = scalar_lea.vmem %s0, %s183
      %s185 = smul.u32 4, %s19
      %p186 = scmp.lt.s32.totalorder %s18, 1
      %s187 = scalar_select %p186, %s18, 1
      %p188 = scmp.lt.s32.totalorder %s19, 3
      %s189 = scalar_select %p188, %s19, 3
      %s190 = smul.addr %s187, 4
      %s191 = sadd.s32 %s189, %s190
      %s192 = scalar_lea.vmem %s1, %s191
      %p193 = scmp.lt.s32.totalorder %s18, 1
      %s194 = scalar_select %p193, %s18, 1
      %p195 = scmp.lt.s32.totalorder %s19, 3
      %s196 = scalar_select %p195, %s19, 3
      %s197 = smul.addr %s194, 4
      %s198 = sadd.s32 %s196, %s197
      %s199 = scalar_lea.vmem %s2, %s198
      %v200 = vld [vmem:[%s184] sm:$0xf]
      %v201 = vld [vmem:[%s184 + $0x4] sm:$0xf]
      %v202 = vld [vmem:[%s184 + $0x8] sm:$0xf]
      %v203 = vld [vmem:[%s184 + $0xc] sm:$0xf]
      %v204 = vld [vmem:[%s184 + $0x10] sm:$0xf]
      %v205 = vld [vmem:[%s184 + $0x14] sm:$0xf]
      %v206 = vld [vmem:[%s184 + $0x18] sm:$0xf]
      %v207 = vld [vmem:[%s184 + $0x1c] sm:$0xf]
      %v208 = vunpack.c.l.bf16 %v200
      %v209 = vunpack.c.l.bf16 %v201
      %v210 = vunpack.c.l.bf16 %v202
      %v211 = vunpack.c.l.bf16 %v203
      %v212 = vunpack.c.l.bf16 %v204
      %v213 = vunpack.c.l.bf16 %v205
      %v214 = vunpack.c.l.bf16 %v206
      %v215 = vunpack.c.l.bf16 %v207
      %vm216 = vcmask 261120
      %v217 = vsel %vm216, %v208, 0.0
      %v218 = vsel %vm216, %v209, 0.0
      %v219 = vadd.f32 %v217, %v218
      %v220 = vsel %vm216, %v210, 0.0
      %v221 = vadd.f32 %v219, %v220
      %v222 = vsel %vm216, %v211, 0.0
      %v223 = vadd.f32 %v221, %v222
      %v224 = vsel %vm216, %v212, 0.0
      %v225 = vadd.f32 %v223, %v224
      %v226 = vsel %vm216, %v213, 0.0
      %v227 = vadd.f32 %v225, %v226
      %v228 = vsel %vm216, %v214, 0.0
      %v229 = vadd.f32 %v227, %v228
      %v230 = vsel %vm216, %v215, 0.0
      %v231 = vadd.f32 %v229, %v230
      %v232 = vrot.slane %v231, 4
      %v233 = vadd.f32 %v231, %v232
      %v234 = vrot.slane %v233, 2
      %v235 = vadd.f32 %v233, %v234
      %v236 = vrot.slane %v235, 1
      %v237 = vadd.f32 %v235, %v236
      %vm238 = vcmask 253952
      %239 = vst.msk [vmem:[%s192] sm:$0x1] %vm238, %v237
      %v240 = vmul.f32 %v208, %v208
      %v241 = vmul.f32 %v209, %v209
      %v242 = vmul.f32 %v210, %v210
      %v243 = vmul.f32 %v211, %v211
      %v244 = vmul.f32 %v212, %v212
      %v245 = vmul.f32 %v213, %v213
      %v246 = vmul.f32 %v214, %v214
      %v247 = vmul.f32 %v215, %v215
      %v248 = vsel %vm216, %v240, 0.0
      %v249 = vsel %vm216, %v241, 0.0
      %v250 = vadd.f32 %v248, %v249
      %v251 = vsel %vm216, %v242, 0.0
      %v252 = vadd.f32 %v250, %v251
      %v253 = vsel %vm216, %v243, 0.0
      %v254 = vadd.f32 %v252, %v253
      %v255 = vsel %vm216, %v244, 0.0
      %v256 = vadd.f32 %v254, %v255
      %v257 = vsel %vm216, %v245, 0.0
      %v258 = vadd.f32 %v256, %v257
      %v259 = vsel %vm216, %v246, 0.0
      %v260 = vadd.f32 %v258, %v259
      %v261 = vsel %vm216, %v247, 0.0
      %v262 = vadd.f32 %v260, %v261
      %v263 = vrot.slane %v262, 4
      %v264 = vadd.f32 %v262, %v263
      %v265 = vrot.slane %v264, 2
      %v266 = vadd.f32 %v264, %v265
      %v267 = vrot.slane %v266, 1
      %v268 = vadd.f32 %v266, %v267
      %269 = vst.msk [vmem:[%s199] sm:$0x1] %vm238, %v268
      %p270 = scmp.lt.s32.totalorder %s18, 1
      %s271 = scalar_select %p270, %s18, 1
      %p272 = scmp.lt.s32.totalorder %s19, 3
      %s273 = scalar_select %p272, %s19, 3
      %s274 = smul.addr %s271, 4
      %s275 = sadd.s32 %s273, %s274
      %s276 = scalar_lea.vmem %s1, %s275
      %p277 = scmp.lt.s32.totalorder %s18, 1
      %s278 = scalar_select %p277, %s18, 1
      %p279 = scmp.lt.s32.totalorder %s19, 3
      %s280 = scalar_select %p279, %s19, 3
      %s281 = smul.addr %s278, 4
      %s282 = sadd.s32 %s280, %s281
      %s283 = scalar_lea.vmem %s2, %s282
      // Predicated region
      $region25: #{resnet_block_forward.3} parent=23 // pred_check
        %p284 = pneg %p74
      $region26: #{resnet_block_forward.3} parent=23 // pred_check_branch
        %286 = sbr.rel (%p284) target = $region28
      $region27: #{resnet_block_forward.3} parent=23 // pred_region
        _
      $region28: #{resnet_block_forward.3} parent=23 // pred_fallthru
        _
      // Predicated region
      $region29: #{resnet_block_forward.3} parent=23 // pred_check
        %p287 = pneg %p102
      $region30: #{resnet_block_forward.3} parent=23 // pred_check_branch
        %289 = sbr.rel (%p287) target = $region32
      $region31: #{resnet_block_forward.3} parent=23 // pred_region
        _
      $region32: #{resnet_block_forward.3} parent=23 // pred_fallthru
        _
    $region24: #{resnet_block_forward.3} parent=5 // pred_fallthru
      _
    %p290 = scmp.le.s32.totalorder 2, %s9
    // Predicated region
    $region33: #{resnet_block_forward.3} parent=5 // pred_check
      %p291 = pneg %p290
    $region34: #{resnet_block_forward.3} parent=5 // pred_check_branch
      %293 = sbr.rel (%p291) target = $region36
    $region35: #{resnet_block_forward.3} parent=5 // pred_region
      %s294 = ssub.s32 %s9, 2
      // Predicated region
      $region37: #{resnet_block_forward.3} parent=35 // pred_check
        %p295 = pneg %p80
      $region38: #{resnet_block_forward.3} parent=35 // pred_check_branch
        %297 = sbr.rel (%p295) target = $region40
      $region39: #{resnet_block_forward.3} parent=35 // pred_region
        %p298 = scmp.lt.s32.totalorder %s20, 1
        %s299 = scalar_select %p298, %s20, 1
        %p300 = scmp.lt.s32.totalorder %s21, 3
        %s301 = scalar_select %p300, %s21, 3
        %s302 = smul.addr %s299, 4
        %s303 = sadd.s32 %s301, %s302
        %s304 = scalar_lea.vmem %s1, %s303
      $region40: #{resnet_block_forward.3} parent=35 // pred_fallthru
        _
      // Predicated region
      $region41: #{resnet_block_forward.3} parent=35 // pred_check
        %p305 = pneg %p108
      $region42: #{resnet_block_forward.3} parent=35 // pred_check_branch
        %307 = sbr.rel (%p305) target = $region44
      $region43: #{resnet_block_forward.3} parent=35 // pred_region
        %p308 = scmp.lt.s32.totalorder %s20, 1
        %s309 = scalar_select %p308, %s20, 1
        %p310 = scmp.lt.s32.totalorder %s21, 3
        %s311 = scalar_select %p310, %s21, 3
        %s312 = smul.addr %s309, 4
        %s313 = sadd.s32 %s311, %s312
        %s314 = scalar_lea.vmem %s2, %s313
      $region44: #{resnet_block_forward.3} parent=35 // pred_fallthru
        _
    $region36: #{resnet_block_forward.3} parent=5 // pred_fallthru
      _
  $region6: #{resnet_block_forward.3} parent=0 // loop_footer
    %s13 = sadd.s32 1, %s9
  $region7: #{resnet_block_forward.3} parent=0 // loop_footer_branch
    %8 = sbr.rel target = $region3
  $region8: #{resnet_block_forward.3} parent=0 // loop_exit
    _

// kernel: resnet_block_forward.4
$region0: #{resnet_block_forward.4}
  #allocation0 [shape = 'u32[]', space=smem, size = 0x4, offset = 0x4, fixed_abs, tag = 'smem constant byte address 0x4 - core index']
  #allocation1 [shape = 'u32[144,128]{1,0:T(1,128)}', space=vmem, size = 0x12000, scoped, tag = 'internal scratch']
  %s0 = inlined_call_operand.vmem [shape: bf16[2,16,16,32], index: 0, kind: input, shape index: {}, may-alias: {0,1,2}]
  %s1 = inlined_call_operand.vmem [shape: bf16[2,16,16,32], index: 1, kind: input, shape index: {}, may-alias: {0,1,2}]
  %s2 = inlined_call_operand.vmem [shape: bf16[2,16,16,32], index: 2, kind: input, shape index: {}, may-alias: {0,1,2}]
  %s3 = inlined_call_operand.vmem [shape: f32[2,1,32], index: 3, kind: input, shape index: {}]
  %s4 = inlined_call_operand.vmem [shape: f32[2,1,32], index: 4, kind: input, shape index: {}]
  %s5 = inlined_call_operand.vmem [shape: f32[1,1,32], index: 5, kind: input, shape index: {}]
  %s6 = inlined_call_operand.vmem [shape: f32[1,1,32], index: 6, kind: input, shape index: {}]
  %s7 = inlined_call_operand.vmem [shape: bf16[3,3,32,64], index: 7, kind: input, shape index: {}]
  %s8 = inlined_call_operand.vmem [shape: f32[1,1,64], index: 8, kind: input, shape index: {}]
  %s9 = inlined_call_operand.vmem [shape: bf16[2,16,16,64], index: 9, kind: output, shape index: {0}]
  %s10 = inlined_call_operand.vmem [shape: f32[2,4,1,64], index: 10, kind: output, shape index: {1}]
  %s11 = inlined_call_operand.vmem [shape: f32[2,4,1,64], index: 11, kind: output, shape index: {2}]
  %12 = xla_tuple %s9, %s10, %s11
  %s13 = sld [smem:[#allocation0]]
  $region85: #{resnet_block_forward.4} parent=0
    _
  %s15 = ssub.s32 1, %s13
  %s16 = scalar_select 0, %s15, %s13
  loop: start=0, step=1, limit=10
  $region2: #{resnet_block_forward.4} parent=0 // loop_pre_header
    _
  $region3: #{resnet_block_forward.4} parent=0 // loop_header
    %s18 = sphi 0, %s22
    %p19 = scmp.ge.s32.totalorder %s18, 10
    %s25 = sphi 0, %s37
    %s26 = sphi 0, %s33
    %s27 = sphi 0, %s25
    %s28 = sphi 0, %s26
    %s29 = sphi 0, %s27
    %s30 = sphi 0, %s28
    %s42 = sphi 0, %s44
    %s45 = sphi 0, %s42
    %s46 = sphi 0, %s45
    %s62 = sphi 0, %s46
    %s78 = sphi 0, %s80
    %s81 = sphi 0, %s78
    %s82 = sphi 0, %s81
    %s98 = sphi 0, %s82
    %s114 = sphi 0, %s116
    %s117 = sphi 0, %s114
    %s118 = sphi 0, %s117
    %s134 = sphi 0, %s118
    %s140 = sphi 0, %s142
    %s143 = sphi 0, %s140
    %s144 = sphi 0, %s143
    %s160 = sphi 0, %s144
    %s166 = sphi 0, %s168
    %s169 = sphi 0, %s166
    %s170 = sphi 0, %s169
    %s186 = sphi 0, %s170
    %s190 = sphi 0, %s190
    %s192 = sphi 0, %s190
    %s193 = sphi 0, %s192
    %s207 = sphi 0, %s193
    %s211 = sphi 0, %s211
    %s213 = sphi 0, %s211
    %s214 = sphi 0, %s213
    %s228 = sphi 0, %s214
    %s232 = sphi 0, %s232
    %s234 = sphi 0, %s232
    %s235 = sphi 0, %s234
    %s249 = sphi 0, %s235
    %s253 = sphi 0, %s253
    %s255 = sphi 0, %s253
    %s256 = sphi 0, %s255
    %s270 = sphi 0, %s256
    %s278 = sphi 0, %s280
    %s281 = sphi 0, %s278
    %s282 = sphi 0, %s281
    %s298 = sphi 0, %s282
    %s306 = sphi 0, %s308
    %s309 = sphi 0, %s306
    %s310 = sphi 0, %s309
    %s326 = sphi 0, %s310
    %s334 = sphi 0, %s336
    %s337 = sphi 0, %s334
    %s338 = sphi 0, %s337
    %s354 = sphi 0, %s338
  $region4: #{resnet_block_forward.4} parent=0 // loop_header_branch
    %21 = sbr.rel (%p19) target = $region8
  $region5: #{resnet_block_forward.4} parent=0 // loop_body
    %s23 = ssub.s32 %s18, 1
    %s24 = ssub.s32 %s18, 2
    %s31 = sadd.s32 1, %s26
    %p32 = scmp.ge.s32.totalorder %s31, 4
    %s33 = scalar_select %p32, 0, %s31
    %s34 = sadd.s32 1, %s25
    %s35 = scalar_select %p32, %s34, %s25
    %p36 = scmp.ge.s32.totalorder %s35, 2
    %s37 = scalar_select %p36, 0, %s35
    %s38 = ssub.s32 %s25, %s37
    %s39 = ssub.s32 %s26, %s33
    %s40 = sor.u32 %s38, %s39
    %p41 = scmp.eq.s32.totalorder %s40, 0
    %s43 = sadd.s32 %s42, 1
    %s44 = scalar_select %p41, %s42, %s43
    %p47 = pneg %p41
    %p48 = scmp.eq.s32.totalorder %s18, 7
    %p49 = por %p47, %p48
    %p50 = scmp.ne.s32.totalorder %s42, %s45
    %p51 = scmp.eq.s32.totalorder %s18, 0
    %p52 = por %p50, %p51
    %p53 = scmp.ne.s32.totalorder %s42, %s45
    %p54 = scmp.eq.s32.totalorder %s23, 7
    %p55 = por %p53, %p54
    %p56 = scmp.ne.s32.totalorder %s45, %s46
    %p57 = scmp.eq.s32.totalorder %s23, 0
    %p58 = por %p56, %p57
    %p59 = scmp.ne.s32.totalorder %s45, %s46
    %p60 = scmp.eq.s32.totalorder %s24, 7
    %p61 = por %p59, %p60
    %p63 = scmp.ne.s32.totalorder %s46, %s62
    %p64 = scmp.eq.s32.totalorder %s24, 0
    %p65 = por %p63, %p64
    %s66 = smul.u32 %s26, 4
    %s67 = ssub.s32 %s66, 1
    %p68 = scmp.gt.s32.totalorder %s67, 0
    %s69 = scalar_select %p68, %s67, 0
    %s70 = smul.u32 %s33, 4
    %s71 = ssub.s32 %s70, 1
    %p72 = scmp.gt.s32.totalorder %s71, 0
    %s73 = scalar_select %p72, %s71, 0
    %s74 = ssub.s32 %s25, %s37
    %s75 = ssub.s32 %s69, %s73
    %s76 = sor.u32 %s74, %s75
    %p77 = scmp.eq.s32.totalorder %s76, 0
    %s79 = sadd.s32 %s78, 1
    %s80 = scalar_select %p77, %s78, %s79
    %p83 = pneg %p77
    %p84 = scmp.eq.s32.totalorder %s18, 7
    %p85 = por %p83, %p84
    %p86 = scmp.ne.s32.totalorder %s78, %s81
    %p87 = scmp.eq.s32.totalorder %s18, 0
    %p88 = por %p86, %p87
    %p89 = scmp.ne.s32.totalorder %s78, %s81
    %p90 = scmp.eq.s32.totalorder %s23, 7
    %p91 = por %p89, %p90
    %p92 = scmp.ne.s32.totalorder %s81, %s82
    %p93 = scmp.eq.s32.totalorder %s23, 0
    %p94 = por %p92, %p93
    %p95 = scmp.ne.s32.totalorder %s81, %s82
    %p96 = scmp.eq.s32.totalorder %s24, 7
    %p97 = por %p95, %p96
    %p99 = scmp.ne.s32.totalorder %s82, %s98
    %p100 = scmp.eq.s32.totalorder %s24, 0
    %p101 = por %p99, %p100
    %s102 = smul.u32 %s26, 4
    %s103 = sadd.s32 %s102, 4
    %p104 = scmp.lt.s32.totalorder %s103, 15
    %s105 = scalar_select %p104, %s103, 15
    %s106 = smul.u32 %s33, 4
    %s107 = sadd.s32 %s106, 4
    %p108 = scmp.lt.s32.totalorder %s107, 15
    %s109 = scalar_select %p108, %s107, 15
    %s110 = ssub.s32 %s25, %s37
    %s111 = ssub.s32 %s105, %s109
    %s112 = sor.u32 %s110, %s111
    %p113 = scmp.eq.s32.totalorder %s112, 0
    %s115 = sadd.s32 %s114, 1
    %s116 = scalar_select %p113, %s114, %s115
    %p119 = pneg %p113
    %p120 = scmp.eq.s32.totalorder %s18, 7
    %p121 = por %p119, %p120
    %p122 = scmp.ne.s32.totalorder %s114, %s117
    %p123 = scmp.eq.s32.totalorder %s18, 0
    %p124 = por %p122, %p123
    %p125 = scmp.ne.s32.totalorder %s114, %s117
    %p126 = scmp.eq.s32.totalorder %s23, 7
    %p127 = por %p125, %p126
    %p128 = scmp.ne.s32.totalorder %s117, %s118
    %p129 = scmp.eq.s32.totalorder %s23, 0
    %p130 = por %p128, %p129
    %p131 = scmp.ne.s32.totalorder %s117, %s118
    %p132 = scmp.eq.s32.totalorder %s24, 7
    %p133 = por %p131, %p132
    %p135 = scmp.ne.s32.totalorder %s118, %s134
    %p136 = scmp.eq.s32.totalorder %s24, 0
    %p137 = por %p135, %p136
    %s138 = ssub.s32 %s25, %s37
    %p139 = scmp.eq.s32.totalorder %s138, 0
    %s141 = sadd.s32 %s140, 1
    %s142 = scalar_select %p139, %s140, %s141
    %p145 = pneg %p139
    %p146 = scmp.eq.s32.totalorder %s18, 7
    %p147 = por %p145, %p146
    %p148 = scmp.ne.s32.totalorder %s140, %s143
    %p149 = scmp.eq.s32.totalorder %s18, 0
    %p150 = por %p148, %p149
    %p151 = scmp.ne.s32.totalorder %s140, %s143
    %p152 = scmp.eq.s32.totalorder %s23, 7
    %p153 = por %p151, %p152
    %p154 = scmp.ne.s32.totalorder %s143, %s144
    %p155 = scmp.eq.s32.totalorder %s23, 0
    %p156 = por %p154, %p155
    %p157 = scmp.ne.s32.totalorder %s143, %s144
    %p158 = scmp.eq.s32.totalorder %s24, 7
    %p159 = por %p157, %p158
    %p161 = scmp.ne.s32.totalorder %s144, %s160
    %p162 = scmp.eq.s32.totalorder %s24, 0
    %p163 = por %p161, %p162
    %s164 = ssub.s32 %s25, %s37
    %p165 = scmp.eq.s32.totalorder %s164, 0
    %s167 = sadd.s32 %s166, 1
    %s168 = scalar_select %p165, %s166, %s167
    %p171 = pneg %p165
    %p172 = scmp.eq.s32.totalorder %s18, 7
    %p173 = por %p171, %p172
    %p174 = scmp.ne.s32.totalorder %s166, %s169
    %p175 = scmp.eq.s32.totalorder %s18, 0
    %p176 = por %p174, %p175
    %p177 = scmp.ne.s32.totalorder %s166, %s169
    %p178 = scmp.eq.s32.totalorder %s23, 7
    %p179 = por %p177, %p178
    %p180 = scmp.ne.s32.totalorder %s169, %s170
    %p181 = scmp.eq.s32.totalorder %s23, 0
    %p182 = por %p180, %p181
    %p183 = scmp.ne.s32.totalorder %s169, %s170
    %p184 = scmp.eq.s32.totalorder %s24, 7
    %p185 = por %p183, %p184
    %p187 = scmp.ne.s32.totalorder %s170, %s186
    %p188 = scmp.eq.s32.totalorder %s24, 0
    %p189 = por %p187, %p188
    %s191 = sadd.s32 %s190, 1
    %p194 = scmp.eq.s32.totalorder %s18, 7
    %p195 = scmp.ne.s32.totalorder %s190, %s192
    %p196 = scmp.eq.s32.totalorder %s18, 0
    %p197 = por %p195, %p196
    %p198 = scmp.ne.s32.totalorder %s190, %s192
    %p199 = scmp.eq.s32.totalorder %s23, 7
    %p200 = por %p198, %p199
    %p201 = scmp.ne.s32.totalorder %s192, %s193
    %p202 = scmp.eq.s32.totalorder %s23, 0
    %p203 = por %p201, %p202
    %p204 = scmp.ne.s32.totalorder %s192, %s193
    %p205 = scmp.eq.s32.totalorder %s24, 7
    %p206 = por %p204, %p205
    %p208 = scmp.ne.s32.totalorder %s193, %s207
    %p209 = scmp.eq.s32.totalorder %s24, 0
    %p210 = por %p208, %p209
    %s212 = sadd.s32 %s211, 1
    %p215 = scmp.eq.s32.totalorder %s18, 7
    %p216 = scmp.ne.s32.totalorder %s211, %s213
    %p217 = scmp.eq.s32.totalorder %s18, 0
    %p218 = por %p216, %p217
    %p219 = scmp.ne.s32.totalorder %s211, %s213
    %p220 = scmp.eq.s32.totalorder %s23, 7
    %p221 = por %p219, %p220
    %p222 = scmp.ne.s32.totalorder %s213, %s214
    %p223 = scmp.eq.s32.totalorder %s23, 0
    %p224 = por %p222, %p223
    %p225 = scmp.ne.s32.totalorder %s213, %s214
    %p226 = scmp.eq.s32.totalorder %s24, 7
    %p227 = por %p225, %p226
    %p229 = scmp.ne.s32.totalorder %s214, %s228
    %p230 = scmp.eq.s32.totalorder %s24, 0
    %p231 = por %p229, %p230
    %s233 = sadd.s32 %s232, 1
    %p236 = scmp.eq.s32.totalorder %s18, 7
    %p237 = scmp.ne.s32.totalorder %s232, %s234
    %p238 = scmp.eq.s32.totalorder %s18, 0
    %p239 = por %p237, %p238
    %p240 = scmp.ne.s32.totalorder %s232, %s234
    %p241 = scmp.eq.s32.totalorder %s23, 7
    %p242 = por %p240, %p241
    %p243 = scmp.ne.s32.totalorder %s234, %s235
    %p244 = scmp.eq.s32.totalorder %s23, 0
    %p245 = por %p243, %p244
    %p246 = scmp.ne.s32.totalorder %s234, %s235
    %p247 = scmp.eq.s32.totalorder %s24, 7
    %p248 = por %p246, %p247
    %p250 = scmp.ne.s32.totalorder %s235, %s249
    %p251 = scmp.eq.s32.totalorder %s24, 0
    %p252 = por %p250, %p251
    %s254 = sadd.s32 %s253, 1
    %p257 = scmp.eq.s32.totalorder %s18, 7
    %p258 = scmp.ne.s32.totalorder %s253, %s255
    %p259 = scmp.eq.s32.totalorder %s18, 0
    %p260 = por %p258, %p259
    %p261 = scmp.ne.s32.totalorder %s253, %s255
    %p262 = scmp.eq.s32.totalorder %s23, 7
    %p263 = por %p261, %p262
    %p264 = scmp.ne.s32.totalorder %s255, %s256
    %p265 = scmp.eq.s32.totalorder %s23, 0
    %p266 = por %p264, %p265
    %p267 = scmp.ne.s32.totalorder %s255, %s256
    %p268 = scmp.eq.s32.totalorder %s24, 7
    %p269 = por %p267, %p268
    %p271 = scmp.ne.s32.totalorder %s256, %s270
    %p272 = scmp.eq.s32.totalorder %s24, 0
    %p273 = por %p271, %p272
    %s274 = ssub.s32 %s25, %s37
    %s275 = ssub.s32 %s26, %s33
    %s276 = sor.u32 %s274, %s275
    %p277 = scmp.eq.s32.totalorder %s276, 0
    %s279 = sadd.s32 %s278, 1
    %s280 = scalar_select %p277, %s278, %s279
    %p283 = pneg %p277
    %p284 = scmp.eq.s32.totalorder %s18, 7
    %p285 = por %p283, %p284
    %p286 = scmp.ne.s32.totalorder %s278, %s281
    %p287 = scmp.eq.s32.totalorder %s18, 0
    %p288 = por %p286, %p287
    %p289 = scmp.ne.s32.totalorder %s278, %s281
    %p290 = scmp.eq.s32.totalorder %s23, 7
    %p291 = por %p289, %p290
    %p292 = scmp.ne.s32.totalorder %s281, %s282
    %p293 = scmp.eq.s32.totalorder %s23, 0
    %p294 = por %p292, %p293
    %p295 = scmp.ne.s32.totalorder %s281, %s282
    %p296 = scmp.eq.s32.totalorder %s24, 7
    %p297 = por %p295, %p296
    %p299 = scmp.ne.s32.totalorder %s282, %s298
    %p300 = scmp.eq.s32.totalorder %s24, 0
    %p301 = por %p299, %p300
    %s302 = ssub.s32 %s25, %s37
    %s303 = ssub.s32 %s26, %s33
    %s304 = sor.u32 %s302, %s303
    %p305 = scmp.eq.s32.totalorder %s304, 0
    %s307 = sadd.s32 %s306, 1
    %s308 = scalar_select %p305, %s306, %s307
    %p311 = pneg %p305
    %p312 = scmp.eq.s32.totalorder %s18, 7
    %p313 = por %p311, %p312
    %p314 = scmp.ne.s32.totalorder %s306, %s309
    %p315 = scmp.eq.s32.totalorder %s18, 0
    %p316 = por %p314, %p315
    %p317 = scmp.ne.s32.totalorder %s306, %s309
    %p318 = scmp.eq.s32.totalorder %s23, 7
    %p319 = por %p317, %p318
    %p320 = scmp.ne.s32.totalorder %s309, %s310
    %p321 = scmp.eq.s32.totalorder %s23, 0
    %p322 = por %p320, %p321
    %p323 = scmp.ne.s32.totalorder %s309, %s310
    %p324 = scmp.eq.s32.totalorder %s24, 7
    %p325 = por %p323, %p324
    %p327 = scmp.ne.s32.totalorder %s310, %s326
    %p328 = scmp.eq.s32.totalorder %s24, 0
    %p329 = por %p327, %p328
    %s330 = ssub.s32 %s25, %s37
    %s331 = ssub.s32 %s26, %s33
    %s332 = sor.u32 %s330, %s331
    %p333 = scmp.eq.s32.totalorder %s332, 0
    %s335 = sadd.s32 %s334, 1
    %s336 = scalar_select %p333, %s334, %s335
    %p339 = pneg %p333
    %p340 = scmp.eq.s32.totalorder %s18, 7
    %p341 = por %p339, %p340
    %p342 = scmp.ne.s32.totalorder %s334, %s337
    %p343 = scmp.eq.s32.totalorder %s18, 0
    %p344 = por %p342, %p343
    %p345 = scmp.ne.s32.totalorder %s334, %s337
    %p346 = scmp.eq.s32.totalorder %s23, 7
    %p347 = por %p345, %p346
    %p348 = scmp.ne.s32.totalorder %s337, %s338
    %p349 = scmp.eq.s32.totalorder %s23, 0
    %p350 = por %p348, %p349
    %p351 = scmp.ne.s32.totalorder %s337, %s338
    %p352 = scmp.eq.s32.totalorder %s24, 7
    %p353 = por %p351, %p352
    %p355 = scmp.ne.s32.totalorder %s338, %s354
    %p356 = scmp.eq.s32.totalorder %s24, 0
    %p357 = por %p355, %p356
    %p358 = scmp.le.s32.totalorder 1, %s18
    %p359 = scmp.lt.s32.totalorder %s18, 9
    %p360 = pnand %p358, %p359
    %p361 = pneg %p360
    // Predicated region
    $region9: #{resnet_block_forward.4} parent=5 // pred_check
      _
    $region10: #{resnet_block_forward.4} parent=5 // pred_check_branch
      %363 = sbr.rel (%p360) target = $region12
    $region11: #{resnet_block_forward.4} parent=5 // pred_region
      %s364 = ssub.s32 %s18, 1
      // Predicated region
      $region13: #{resnet_block_forward.4} parent=11 // pred_check
        %p365 = pneg %p203
      $region14: #{resnet_block_forward.4} parent=11 // pred_check_branch
        %367 = sbr.rel (%p365) target = $region16
      $region15: #{resnet_block_forward.4} parent=11 // pred_region
        _
      $region16: #{resnet_block_forward.4} parent=11 // pred_fallthru
        _
      // Predicated region
      $region17: #{resnet_block_forward.4} parent=11 // pred_check
        %p368 = pneg %p224
      $region18: #{resnet_block_forward.4} parent=11 // pred_check_branch
        %370 = sbr.rel (%p368) target = $region20
      $region19: #{resnet_block_forward.4} parent=11 // pred_region
        _
      $region20: #{resnet_block_forward.4} parent=11 // pred_fallthru
        _
      // Predicated region
      $region21: #{resnet_block_forward.4} parent=11 // pred_check
        %p371 = pneg %p245
      $region22: #{resnet_block_forward.4} parent=11 // pred_check_branch
        %373 = sbr.rel (%p371) target = $region24
      $region23: #{resnet_block_forward.4} parent=11 // pred_region
        _
      $region24: #{resnet_block_forward.4} parent=11 // pred_fallthru
        _
      // Predicated region
      $region25: #{resnet_block_forward.4} parent=11 // pred_check
        %p374 = pneg %p266
      $region26: #{resnet_block_forward.4} parent=11 // pred_check_branch
        %376 = sbr.rel (%p374) target = $region28
      $region27: #{resnet_block_forward.4} parent=11 // pred_region
        _
      $region28: #{resnet_block_forward.4} parent=11 // pred_fallthru
        _
    $region12: #{resnet_block_forward.4} parent=5 // pred_fallthru
      _
    %p377 = scmp.lt.s32.totalorder %s18, 8
    // Predicated region
    $region29: #{resnet_block_forward.4} parent=5 // pred_check
      %p378 = pneg %p377
    $region30: #{resnet_block_forward.4} parent=5 // pred_check_branch
      %380 = sbr.rel (%p378) target = $region32
    $region31: #{resnet_block_forward.4} parent=5 // pred_region
      // Predicated region
      $region33: #{resnet_block_forward.4} parent=31 // pred_check
        %p381 = pneg %p52
      $region34: #{resnet_block_forward.4} parent=31 // pred_check_branch
        %383 = sbr.rel (%p381) target = $region36
      $region35: #{resnet_block_forward.4} parent=31 // pred_region
        %s384 = smul.u32 4, %s26
        %p385 = scmp.lt.s32.totalorder %s25, 1
        %s386 = scalar_select %p385, %s25, 1
        %p387 = scmp.lt.s32.totalorder %s384, 15
        %s388 = scalar_select %p387, %s384, 15
        %s389 = smul.addr %s388, 2
        %s390 = smul.addr %s386, 32
        %s391 = sadd.s32 %s389, %s390
        %s392 = smul.addr %s391, 4
        %s393 = scalar_lea.vmem %s0, %s392
        %s394 = smul.u32 4, %s26
      $region36: #{resnet_block_forward.4} parent=31 // pred_fallthru
        _
      // Predicated region
      $region37: #{resnet_block_forward.4} parent=31 // pred_check
        %p395 = pneg %p88
      $region38: #{resnet_block_forward.4} parent=31 // pred_check_branch
        %397 = sbr.rel (%p395) target = $region40
      $region39: #{resnet_block_forward.4} parent=31 // pred_region
        %s398 = smul.u32 %s26, 4
        %s399 = ssub.s32 %s398, 1
        %p400 = scmp.gt.s32.totalorder %s399, 0
        %s401 = scalar_select %p400, %s399, 0
        %p402 = scmp.lt.s32.totalorder %s25, 1
        %s403 = scalar_select %p402, %s25, 1
        %p404 = scmp.lt.s32.totalorder %s401, 15
        %s405 = scalar_select %p404, %s401, 15
        %s406 = smul.addr %s405, 2
        %s407 = smul.addr %s403, 32
        %s408 = sadd.s32 %s406, %s407
        %s409 = smul.addr %s408, 4
        %s410 = scalar_lea.vmem %s1, %s409
        %s411 = smul.u32 %s26, 4
        %s412 = ssub.s32 %s411, 1
        %p413 = scmp.gt.s32.totalorder %s412, 0
        %s414 = scalar_select %p413, %s412, 0
      $region40: #{resnet_block_forward.4} parent=31 // pred_fallthru
        _
      // Predicated region
      $region41: #{resnet_block_forward.4} parent=31 // pred_check
        %p415 = pneg %p124
      $region42: #{resnet_block_forward.4} parent=31 // pred_check_branch
        %417 = sbr.rel (%p415) target = $region44
      $region43: #{resnet_block_forward.4} parent=31 // pred_region
        %s418 = smul.u32 %s26, 4
        %s419 = sadd.s32 %s418, 4
        %p420 = scmp.lt.s32.totalorder %s419, 15
        %s421 = scalar_select %p420, %s419, 15
        %p422 = scmp.lt.s32.totalorder %s25, 1
        %s423 = scalar_select %p422, %s25, 1
        %p424 = scmp.lt.s32.totalorder %s421, 15
        %s425 = scalar_select %p424, %s421, 15
        %s426 = smul.addr %s425, 2
        %s427 = smul.addr %s423, 32
        %s428 = sadd.s32 %s426, %s427
        %s429 = smul.addr %s428, 4
        %s430 = scalar_lea.vmem %s2, %s429
        %s431 = smul.u32 %s26, 4
        %s432 = sadd.s32 %s431, 4
        %p433 = scmp.lt.s32.totalorder %s432, 15
        %s434 = scalar_select %p433, %s432, 15
      $region44: #{resnet_block_forward.4} parent=31 // pred_fallthru
        _
      // Predicated region
      $region45: #{resnet_block_forward.4} parent=31 // pred_check
        %p435 = pneg %p150
      $region46: #{resnet_block_forward.4} parent=31 // pred_check_branch
        %437 = sbr.rel (%p435) target = $region48
      $region47: #{resnet_block_forward.4} parent=31 // pred_region
        %p438 = scmp.lt.s32.totalorder %s25, 1
        %s439 = scalar_select %p438, %s25, 1
        %s440 = scalar_lea.vmem %s3, %s439
      $region48: #{resnet_block_forward.4} parent=31 // pred_fallthru
        _
      // Predicated region
      $region49: #{resnet_block_forward.4} parent=31 // pred_check
        %p441 = pneg %p176
      $region50: #{resnet_block_forward.4} parent=31 // pred_check_branch
        %443 = sbr.rel (%p441) target = $region52
      $region51: #{resnet_block_forward.4} parent=31 // pred_region
        %p444 = scmp.lt.s32.totalorder %s25, 1
        %s445 = scalar_select %p444, %s25, 1
        %s446 = scalar_lea.vmem %s4, %s445
      $region52: #{resnet_block_forward.4} parent=31 // pred_fallthru
        _
    $region32: #{resnet_block_forward.4} parent=5 // pred_fallthru
      _
    %p447 = scmp.le.s32.totalorder 1, %s18
    %p448 = scmp.lt.s32.totalorder %s18, 9
    %p449 = pnand %p447, %p448
    %p450 = pneg %p449
    // Predicated region
    $region53: #{resnet_block_forward.4} parent=5 // pred_check
      _
    $region54: #{resnet_block_forward.4} parent=5 // pred_check_branch
      %452 = sbr.rel (%p449) target = $region56
    $region55: #{resnet_block_forward.4} parent=5 // pred_region
      %s453 = ssub.s32 %s18, 1
      %s454 = smul.u32 4, %s28
      %p455 = scmp.lt.s32.totalorder %s27, 1
      %s456 = scalar_select %p455, %s27, 1
      %p457 = scmp.lt.s32.totalorder %s454, 15
      %s458 = scalar_select %p457, %s454, 15
      %s459 = smul.addr %s458, 2
      %s460 = smul.addr %s456, 32
      %s461 = sadd.s32 %s459, %s460
      %s462 = smul.addr %s461, 4
      %s463 = scalar_lea.vmem %s0, %s462
      %p464 = pneg %p58
      %p465 = pneg %p55
      %s466 = smul.u32 %s28, 4
      %s467 = ssub.s32 %s466, 1
      %p468 = scmp.gt.s32.totalorder %s467, 0
      %s469 = scalar_select %p468, %s467, 0
      %p470 = scmp.lt.s32.totalorder %s27, 1
      %s471 = scalar_select %p470, %s27, 1
      %p472 = scmp.lt.s32.totalorder %s469, 15
      %s473 = scalar_select %p472, %s469, 15
      %s474 = smul.addr %s473, 2
      %s475 = smul.addr %s471, 32
      %s476 = sadd.s32 %s474, %s475
      %s477 = smul.addr %s476, 4
      %s478 = scalar_lea.vmem %s1, %s477
      %p479 = pneg %p94
      %p480 = pneg %p91
      %s481 = smul.u32 %s28, 4
      %s482 = sadd.s32 %s481, 4
      %p483 = scmp.lt.s32.totalorder %s482, 15
      %s484 = scalar_select %p483, %s482, 15
      %p485 = scmp.lt.s32.totalorder %s27, 1
      %s486 = scalar_select %p485, %s27, 1
      %p487 = scmp.lt.s32.totalorder %s484, 15
      %s488 = scalar_select %p487, %s484, 15
      %s489 = smul.addr %s488, 2
      %s490 = smul.addr %s486, 32
      %s491 = sadd.s32 %s489, %s490
      %s492 = smul.addr %s491, 4
      %s493 = scalar_lea.vmem %s2, %s492
      %p494 = pneg %p130
      %p495 = pneg %p127
      %p496 = scmp.lt.s32.totalorder %s27, 1
      %s497 = scalar_select %p496, %s27, 1
      %s498 = scalar_lea.vmem %s3, %s497
      %p499 = pneg %p156
      %p500 = pneg %p153
      %p501 = scmp.lt.s32.totalorder %s27, 1
      %s502 = scalar_select %p501, %s27, 1
      %s503 = scalar_lea.vmem %s4, %s502
      %p504 = pneg %p182
      %p505 = pneg %p179
      %p506 = pneg %p203
      %p507 = pneg %p200
      %p508 = pneg %p224
      %p509 = pneg %p221
      %p510 = pneg %p245
      %p511 = pneg %p242
      %p512 = pneg %p266
      %p513 = pneg %p263
      %p514 = pneg %p294
      %p515 = pneg %p291
      %s516 = smul.u32 4, %s28
      %p517 = scmp.lt.s32.totalorder %s27, 1
      %s518 = scalar_select %p517, %s27, 1
      %p519 = scmp.lt.s32.totalorder %s516, 15
      %s520 = scalar_select %p519, %s516, 15
      %s521 = smul.addr %s520, 2
      %s522 = smul.addr %s518, 32
      %s523 = sadd.s32 %s521, %s522
      %s524 = smul.addr %s523, 4
      %s525 = scalar_lea.vmem %s9, %s524
      %p526 = pneg %p322
      %p527 = pneg %p319
      %p528 = scmp.lt.s32.totalorder %s27, 1
      %s529 = scalar_select %p528, %s27, 1
      %p530 = scmp.lt.s32.totalorder %s28, 3
      %s531 = scalar_select %p530, %s28, 3
      %s532 = smul.addr %s529, 4
      %s533 = sadd.s32 %s531, %s532
      %s534 = scalar_lea.vmem %s10, %s533
      %p535 = pneg %p350
      %p536 = pneg %p347
      %p537 = scmp.lt.s32.totalorder %s27, 1
      %s538 = scalar_select %p537, %s27, 1
      %p539 = scmp.lt.s32.totalorder %s28, 3
      %s540 = scalar_select %p539, %s28, 3
      %s541 = smul.addr %s538, 4
      %s542 = sadd.s32 %s540, %s541
      %s543 = scalar_lea.vmem %s11, %s542
      %s544 = smul.u32 4, %s28
      %p545 = scmp.lt.s32.totalorder %s27, 1
      %s546 = scalar_select %p545, %s27, 1
      %p547 = scmp.lt.s32.totalorder %s544, 15
      %s548 = scalar_select %p547, %s544, 15
      %s549 = smul.addr %s548, 2
      %s550 = smul.addr %s546, 32
      %s551 = sadd.s32 %s549, %s550
      %s552 = smul.addr %s551, 4
      %s553 = scalar_lea.vmem %s0, %s552
      %s554 = smul.u32 4, %s28
      %s555 = smul.u32 %s28, 4
      %s556 = ssub.s32 %s555, 1
      %p557 = scmp.gt.s32.totalorder %s556, 0
      %s558 = scalar_select %p557, %s556, 0
      %p559 = scmp.lt.s32.totalorder %s27, 1
      %s560 = scalar_select %p559, %s27, 1
      %p561 = scmp.lt.s32.totalorder %s558, 15
      %s562 = scalar_select %p561, %s558, 15
      %s563 = smul.addr %s562, 2
      %s564 = smul.addr %s560, 32
      %s565 = sadd.s32 %s563, %s564
      %s566 = smul.addr %s565, 4
      %s567 = scalar_lea.vmem %s1, %s566
      %s568 = smul.u32 %s28, 4
      %s569 = ssub.s32 %s568, 1
      %p570 = scmp.gt.s32.totalorder %s569, 0
      %s571 = scalar_select %p570, %s569, 0
      %s572 = smul.u32 %s28, 4
      %s573 = sadd.s32 %s572, 4
      %p574 = scmp.lt.s32.totalorder %s573, 15
      %s575 = scalar_select %p574, %s573, 15
      %p576 = scmp.lt.s32.totalorder %s27, 1
      %s577 = scalar_select %p576, %s27, 1
      %p578 = scmp.lt.s32.totalorder %s575, 15
      %s579 = scalar_select %p578, %s575, 15
      %s580 = smul.addr %s579, 2
      %s581 = smul.addr %s577, 32
      %s582 = sadd.s32 %s580, %s581
      %s583 = smul.addr %s582, 4
      %s584 = scalar_lea.vmem %s2, %s583
      %s585 = smul.u32 %s28, 4
      %s586 = sadd.s32 %s585, 4
      %p587 = scmp.lt.s32.totalorder %s586, 15
      %s588 = scalar_select %p587, %s586, 15
      %p589 = scmp.lt.s32.totalorder %s27, 1
      %s590 = scalar_select %p589, %s27, 1
      %s591 = scalar_lea.vmem %s3, %s590
      %p592 = scmp.lt.s32.totalorder %s27, 1
      %s593 = scalar_select %p592, %s27, 1
      %s594 = scalar_lea.vmem %s4, %s593
      %s595 = smul.u32 4, %s28
      %p596 = scmp.lt.s32.totalorder %s27, 1
      %s597 = scalar_select %p596, %s27, 1
      %p598 = scmp.lt.s32.totalorder %s595, 15
      %s599 = scalar_select %p598, %s595, 15
      %s600 = smul.addr %s599, 2
      %s601 = smul.addr %s597, 32
      %s602 = sadd.s32 %s600, %s601
      %s603 = smul.addr %s602, 4
      %s604 = scalar_lea.vmem %s9, %s603
      %s605 = smul.u32 4, %s28
      %p606 = scmp.lt.s32.totalorder %s27, 1
      %s607 = scalar_select %p606, %s27, 1
      %p608 = scmp.lt.s32.totalorder %s28, 3
      %s609 = scalar_select %p608, %s28, 3
      %s610 = smul.addr %s607, 4
      %s611 = sadd.s32 %s609, %s610
      %s612 = scalar_lea.vmem %s10, %s611
      %p613 = scmp.lt.s32.totalorder %s27, 1
      %s614 = scalar_select %p613, %s27, 1
      %p615 = scmp.lt.s32.totalorder %s28, 3
      %s616 = scalar_select %p615, %s28, 3
      %s617 = smul.addr %s614, 4
      %s618 = sadd.s32 %s616, %s617
      %s619 = scalar_lea.vmem %s11, %s618
      %v621 = vld [vmem:[%s594] sm:$0x1]
      %v622 = vld [vmem:[%s5] sm:$0x1]
      %v623 = vmul.f32 %v621, %v622
      %v624 = vld [vmem:[%s6] sm:$0x1]
      %v625 = vld [vmem:[%s591] sm:$0x1]
      %v626 = vmul.f32 %v625, %v623
      %v627 = vsub.f32 %v624, %v626
      %v628 = vld [vmem:[%s553] sm:$0xf]
      %v629 = vld [vmem:[%s553 + $0x4] sm:$0xf]
      %v630 = vld [vmem:[%s553 + $0x8] sm:$0xf]
      %v631 = vld [vmem:[%s553 + $0xc] sm:$0xf]
      %v632 = vld [vmem:[%s553 + $0x10] sm:$0xf]
      %v633 = vld [vmem:[%s553 + $0x14] sm:$0xf]
      %v634 = vld [vmem:[%s553 + $0x18] sm:$0xf]
      %v635 = vld [vmem:[%s553 + $0x1c] sm:$0xf]
      %v636 = vld [vmem:[%s567] sm:$0xf]
      %v637 = vld [vmem:[%s567 + $0x4] sm:$0xf]
      %v638 = vld [vmem:[%s584] sm:$0xf]
      %v639 = vld [vmem:[%s584 + $0x4] sm:$0xf]
      %v640 = vunpack.c.l.bf16 %v636
      %v641 = vunpack.c.l.bf16 %v637
      %v642 = vunpack.c.l.bf16 %v628
      %v643 = vunpack.c.l.bf16 %v629
      %v644 = vunpack.c.l.bf16 %v630
      %v645 = vunpack.c.l.bf16 %v631
      %v646 = vunpack.c.l.bf16 %v632
      %v647 = vunpack.c.l.bf16 %v633
      %v648 = vunpack.c.l.bf16 %v634
      %v649 = vunpack.c.l.bf16 %v635
      %v650 = vunpack.c.l.bf16 %v638
      %v651 = vunpack.c.l.bf16 %v639
      %v653 = vlaneseq
      %v654 = vshrl.u32 %v653, 7
      %v655 = vsub.s32 0, %v654
      %v656 = vrot.slane %v623, %v655
      %v658 = vmul.f32 %v640, %v656
      %v659 = vmul.f32 %v641, %v656
      %v660 = vmul.f32 %v642, %v656
      %v661 = vmul.f32 %v643, %v656
      %v662 = vmul.f32 %v644, %v656
      %v663 = vmul.f32 %v645, %v656
      %v664 = vmul.f32 %v646, %v656
      %v665 = vmul.f32 %v647, %v656
      %v666 = vmul.f32 %v648, %v656
      %v667 = vmul.f32 %v649, %v656
      %v668 = vmul.f32 %v650, %v656
      %v669 = vmul.f32 %v651, %v656
      %v671 = vlaneseq
      %v672 = vshrl.u32 %v671, 7
      %v673 = vsub.s32 0, %v672
      %v674 = vrot.slane %v627, %v673
      %v676 = vadd.f32 %v658, %v674
      %v677 = vadd.f32 %v659, %v674
      %v678 = vadd.f32 %v660, %v674
      %v679 = vadd.f32 %v661, %v674
      %v680 = vadd.f32 %v662, %v674
      %v681 = vadd.f32 %v663, %v674
      %v682 = vadd.f32 %v664, %v674
      %v683 = vadd.f32 %v665, %v674
      %v684 = vadd.f32 %v666, %v674
      %v685 = vadd.f32 %v667, %v674
      %v686 = vadd.f32 %v668, %v674
      %v687 = vadd.f32 %v669, %v674
      %v688 = vxor.u32 %v676, 2147483648
      %v689 = vxor.u32 %v677, 2147483648
      %v690 = vxor.u32 %v678, 2147483648
      %v691 = vxor.u32 %v679, 2147483648
      %v692 = vxor.u32 %v680, 2147483648
      %v693 = vxor.u32 %v681, 2147483648
      %v694 = vxor.u32 %v682, 2147483648
      %v695 = vxor.u32 %v683, 2147483648
      %v696 = vxor.u32 %v684, 2147483648
      %v697 = vxor.u32 %v685, 2147483648
      %v698 = vxor.u32 %v686, 2147483648
      %v699 = vxor.u32 %v687, 2147483648
      %v700 = vmul.f32 %v688, 1.442695
      %v701 = vpow.pop %v700
      %v702 = vmul.f32 %v689, 1.442695
      %v703 = vpow.pop %v702
      %v704 = vmul.f32 %v690, 1.442695
      %v705 = vpow.pop %v704
      %v706 = vmul.f32 %v691, 1.442695
      %v707 = vpow.pop %v706
      %v708 = vmul.f32 %v692, 1.442695
      %v709 = vpow.pop %v708
      %v710 = vmul.f32 %v693, 1.442695
      %v711 = vpow.pop %v710
      %v712 = vmul.f32 %v694, 1.442695
      %v713 = vpow.pop %v712
      %v714 = vmul.f32 %v695, 1.442695
      %v715 = vpow.pop %v714
      %v716 = vmul.f32 %v696, 1.442695
      %v717 = vpow.pop %v716
      %v718 = vmul.f32 %v697, 1.442695
      %v719 = vpow.pop %v718
      %v720 = vmul.f32 %v698, 1.442695
      %v721 = vpow.pop %v720
      %v722 = vmul.f32 %v699, 1.442695
      %v723 = vpow.pop %v722
      %v724 = vadd.f32 %v701, 1.0
      %v725 = vadd.f32 %v703, 1.0
      %v726 = vadd.f32 %v705, 1.0
      %v727 = vadd.f32 %v707, 1.0
      %v728 = vadd.f32 %v709, 1.0
      %v729 = vadd.f32 %v711, 1.0
      %v730 = vadd.f32 %v713, 1.0
      %v731 = vadd.f32 %v715, 1.0
      %v732 = vadd.f32 %v717, 1.0
      %v733 = vadd.f32 %v719, 1.0
      %v734 = vadd.f32 %v721, 1.0
      %v735 = vadd.f32 %v723, 1.0
      %v736 = vrcp.pop %v724
      %v737 = vmul.f32 1.0, %v736
      %v738 = vrcp.pop %v725
      %v739 = vmul.f32 1.0, %v738
      %v740 = vrcp.pop %v726
      %v741 = vmul.f32 1.0, %v740
      %v742 = vrcp.pop %v727
      %v743 = vmul.f32 1.0, %v742
      %v744 = vrcp.pop %v728
      %v745 = vmul.f32 1.0, %v744
      %v746 = vrcp.pop %v729
      %v747 = vmul.f32 1.0, %v746
      %v748 = vrcp.pop %v730
      %v749 = vmul.f32 1.0, %v748
      %v750 = vrcp.pop %v731
      %v751 = vmul.f32 1.0, %v750
      %v752 = vrcp.pop %v732
      %v753 = vmul.f32 1.0, %v752
      %v754 = vrcp.pop %v733
      %v755 = vmul.f32 1.0, %v754
      %v756 = vrcp.pop %v734
      %v757 = vmul.f32 1.0, %v756
      %v758 = vrcp.pop %v735
      %v759 = vmul.f32 1.0, %v758
      %v760 = vmul.f32 %v676, %v737
      %v761 = vmul.f32 %v677, %v739
      %v762 = vmul.f32 %v678, %v741
      %v763 = vmul.f32 %v679, %v743
      %v764 = vmul.f32 %v680, %v745
      %v765 = vmul.f32 %v681, %v747
      %v766 = vmul.f32 %v682, %v749
      %v767 = vmul.f32 %v683, %v751
      %v768 = vmul.f32 %v684, %v753
      %v769 = vmul.f32 %v685, %v755
      %v770 = vmul.f32 %v686, %v757
      %v771 = vmul.f32 %v687, %v759
      %p772 = scmp.eq.s32.totalorder %s28, 0
      %s773 = scalar_select %p772, 1, 0
      %v774 = vstv %s773
      %vm775 = vcmp.eq.s32.totalorder %v774, 1
      %p776 = scmp.eq.s32.totalorder %s28, 3
      %s777 = scalar_select %p776, 1, 0
      %v778 = vstv %s777
      %vm779 = vcmp.eq.s32.totalorder %v778, 1
      %v780 = vsel %vm775, 1, 0
      %v781 = vsel %vm779, 1, 0
      %vm782 = vcmp.eq.s32.totalorder %v780, 1
      %vm783 = vcmp.eq.s32.totalorder %v781, 1
      %v784 = vsel %vm782, 0.0, %v760
      %v785 = vsel %vm782, 0.0, %v761
      %v786 = vsel 0, 0.0, %v762
      %v787 = vsel 0, 0.0, %v763
      %v788 = vsel 0, 0.0, %v764
      %v789 = vsel 0, 0.0, %v765
      %v790 = vsel 0, 0.0, %v766
      %v791 = vsel 0, 0.0, %v767
      %v792 = vsel 0, 0.0, %v768
      %v793 = vsel 0, 0.0, %v769
      %v794 = vsel %vm783, 0.0, %v770
      %v795 = vsel %vm783, 0.0, %v771
      %v796 = vpack.c.bf16 %v785, %v784
      %v797 = vpack.c.bf16 %v787, %v786
      %v798 = vpack.c.bf16 %v789, %v788
      %v799 = vpack.c.bf16 %v791, %v790
      %v800 = vpack.c.bf16 %v793, %v792
      %v801 = vpack.c.bf16 %v795, %v794
      %v802 = vld [vmem:[%s7] sm:$0xf]
      %v803 = vld [vmem:[%s7 + $0x4] sm:$0xf]
      %v804 = vld [vmem:[%s7 + $0x8] sm:$0xf]
      %v805 = vld [vmem:[%s7 + $0xc] sm:$0xf]
      %v806 = vld [vmem:[%s7 + $0x10] sm:$0xf]
      %v807 = vld [vmem:[%s7 + $0x14] sm:$0xf]
      %v808 = vld [vmem:[%s7 + $0x18] sm:$0xf]
      %v809 = vld [vmem:[%s7 + $0x1c] sm:$0xf]
      %v810 = vld [vmem:[%s7 + $0x20] sm:$0xf]
      %v811 = vld [vmem:[%s7 + $0x24] sm:$0xf]
      %v812 = vld [vmem:[%s7 + $0x28] sm:$0xf]
      %v813 = vld [vmem:[%s7 + $0x2c] sm:$0xf]
      %v814 = vld [vmem:[%s7 + $0x30] sm:$0xf]
      %v815 = vld [vmem:[%s7 + $0x34] sm:$0xf]
      %v816 = vld [vmem:[%s7 + $0x38] sm:$0xf]
      %v817 = vld [vmem:[%s7 + $0x3c] sm:$0xf]
      %v818 = vld [vmem:[%s7 + $0x40] sm:$0xf]
      %v819 = vld [vmem:[%s7 + $0x44] sm:$0xf]
      %v820 = vld [vmem:[%s7 + $0x48] sm:$0xf]
      %v821 = vld [vmem:[%s7 + $0x4c] sm:$0xf]
      %v822 = vld [vmem:[%s7 + $0x50] sm:$0xf]
      %v823 = vld [vmem:[%s7 + $0x54] sm:$0xf]
      %v824 = vld [vmem:[%s7 + $0x58] sm:$0xf]
      %v825 = vld [vmem:[%s7 + $0x5c] sm:$0xf]
      %v826 = vld [vmem:[%s7 + $0x60] sm:$0xf]
      %v827 = vld [vmem:[%s7 + $0x64] sm:$0xf]
      %v828 = vld [vmem:[%s7 + $0x68] sm:$0xf]
      %v829 = vld [vmem:[%s7 + $0x6c] sm:$0xf]
      %v830 = vld [vmem:[%s7 + $0x70] sm:$0xf]
      %v831 = vld [vmem:[%s7 + $0x74] sm:$0xf]
      %v832 = vld [vmem:[%s7 + $0x78] sm:$0xf]
      %v833 = vld [vmem:[%s7 + $0x7c] sm:$0xf]
      %v834 = vld [vmem:[%s7 + $0x80] sm:$0xf]
      %v835 = vld [vmem:[%s7 + $0x84] sm:$0xf]
      %v836 = vld [vmem:[%s7 + $0x88] sm:$0xf]
      %v837 = vld [vmem:[%s7 + $0x8c] sm:$0xf]
      %v838 = vld [vmem:[%s8] sm:$0x1]
      %v840 = vlaneseq
      %v841 = vshrl.u32 %v840, 7
      %v842 = vsub.s32 0, %v841
      %v843 = vrot.slane %v838, %v842
      %v846 = vshrl.u32 %v796, 16
      %v848 = vrot.slane %v846, 7
      %v849 = vshll.u32 %v796, 16
      %v851 = vor.u32 %v848, %v849
      %v853 = vshrl.u32 %v797, 16
      %v855 = vrot.slane %v853, 7
      %v856 = vshll.u32 %v797, 16
      %v858 = vor.u32 %v855, %v856
      %v860 = vshrl.u32 %v798, 16
      %v862 = vrot.slane %v860, 7
      %v863 = vshll.u32 %v798, 16
      %v865 = vor.u32 %v862, %v863
      %v867 = vshrl.u32 %v799, 16
      %v869 = vrot.slane %v867, 7
      %v870 = vshll.u32 %v799, 16
      %v872 = vor.u32 %v869, %v870
      %v874 = vshrl.u32 %v800, 16
      %v876 = vrot.slane %v874, 7
      %v877 = vshll.u32 %v800, 16
      %v879 = vor.u32 %v876, %v877
      %v881 = vshrl.u32 %v801, 16
      %v883 = vrot.slane %v881, 7
      %v884 = vshll.u32 %v801, 16
      %v886 = vor.u32 %v883, %v884
      %vm893 = vcmask 1040384
      %vm894 = vsmask.f32 256
      %vm895 = vmand %vm893, %vm894
      %v896 = vsel %vm895, 0, %v851
      %v897 = vsel %vm895, 0, %v858
      %v898 = vsel %vm895, 0, %v865
      %v899 = vsel %vm895, 0, %v872
      %v900 = vsel %vm895, 0, %v879
      %v901 = vsel %vm895, 0, %v886
      %v906 = vunpack.c.l.b16 %v802
      %v907 = vunpack.c.l.b16 %v803
      %v908 = vunpack.c.l.b16 %v804
      %v909 = vunpack.c.l.b16 %v805
      %v910 = vpack.c.b16 %v907, %v906
      %v911 = vpack.c.b16 %v909, %v908
      %vm914 = vcmask 261120
      %v916 = vsel %vm914, %v896, 0
      %v919 = vsel %vm914, %v897, 0
      %v922 = vsel %vm914, %v898, 0
      %v925 = vsel %vm914, %v899, 0
      %927 = vmatprep.subr.bf16.mxu0 0
      %928 = vmatpush1.bf16.msra.mxu0 %v910
      %929 = vmatprep.subr.bf16.mxu0 0
      %930 = vmatpush1.bf16.msra.mxu0 %v911
      %931 = vmatprep.subr.bf16.mxu0 0
      %932 = vmatpush1.bf16.msra.mxu0 0
      %933 = vmatprep.subr.bf16.mxu0 0
      %934 = vmatpush1.bf16.msra.mxu0 0
      %935 = vmatprep.subr.bf16.mxu0 0
      %936 = vmatpush1.bf16.msra.mxu0 0
      %937 = vmatprep.subr.bf16.mxu0 0
      %938 = vmatpush1.bf16.msra.mxu0 0
      %939 = vmatprep.subr.bf16.mxu0 0
      %940 = vmatpush1.bf16.msra.mxu0 0
      %941 = vmatprep.subr.bf16.mxu0 0
      %942 = vmatpush1.bf16.msra.mxu0 0
      %943 = vmatprep.subr.bf16.mxu0 0
      %944 = vmatpush1.bf16.msra.mxu0 0
      %945 = vmatprep.subr.bf16.mxu0 0
      %946 = vmatpush1.bf16.msra.mxu0 0
      %947 = vmatprep.subr.bf16.mxu0 0
      %948 = vmatpush1.bf16.msra.mxu0 0
      %949 = vmatprep.subr.bf16.mxu0 0
      %950 = vmatpush1.bf16.msra.mxu0 0
      %951 = vmatprep.subr.bf16.mxu0 0
      %952 = vmatpush1.bf16.msra.mxu0 0
      %953 = vmatprep.subr.bf16.mxu0 0
      %954 = vmatpush1.bf16.msra.mxu0 0
      %955 = vmatprep.subr.bf16.mxu0 0
      %956 = vmatpush1.bf16.msra.mxu0 0
      %957 = vmatprep.subr.bf16.mxu0 0
      %958 = vmatpush1.bf16.msra.mxu0 0
      %959 = vmatprep.mubr.bf16.mxu0 0
      %960 = vmatmul.mubr.bf16.gmra.mrb[0].mxu0 %v916
      %v961 = vpop.f32.mrb[0].mxu0
      %v962 = vadd.f32 0.0, %v961
      %v963 = vpop.f32.mrb[0].mxu0
      %v964 = vpop.f32.mrb[0].mxu0
      %v965 = vadd.f32 0.0, %v964
      %v966 = vpop.f32.mrb[0].mxu0
      %967 = vmatprep.mubr.bf16.mxu0 0
      %968 = vmatmul.mubr.bf16.gmra.mrb[0].mxu0 %v919
      %v969 = vpop.f32.mrb[0].mxu0
      %v970 = vadd.f32 0.0, %v969
      %v971 = vpop.f32.mrb[0].mxu0
      %v972 = vpop.f32.mrb[0].mxu0
      %v973 = vadd.f32 0.0, %v972
      %v974 = vpop.f32.mrb[0].mxu0
      %975 = vmatprep.mubr.bf16.mxu0 0
      %976 = vmatmul.mubr.bf16.gmra.mrb[0].mxu0 %v922
      %v977 = vpop.f32.mrb[0].mxu0
      %v978 = vadd.f32 0.0, %v977
      %v979 = vpop.f32.mrb[0].mxu0
      %v980 = vpop.f32.mrb[0].mxu0
      %v981 = vadd.f32 0.0, %v980
      %v982 = vpop.f32.mrb[0].mxu0
      %983 = vmatprep.mubr.bf16.mxu0 0
      %984 = vmatmul.mubr.bf16.gmra.mrb[0].mxu0 %v925
      %v985 = vpop.f32.mrb[0].mxu0
      %v986 = vadd.f32 0.0, %v985
      %v987 = vpop.f32.mrb[0].mxu0
      %v988 = vpop.f32.mrb[0].mxu0
      %v989 = vadd.f32 0.0, %v988
      %v990 = vpop.f32.mrb[0].mxu0
      %991 = vdwg.mxu0
      %v992 = vadd.f32 %v843, %v962
      %v993 = vadd.f32 %v843, %v965
      %v994 = vadd.f32 %v843, %v970
      %v995 = vadd.f32 %v843, %v973
      %v996 = vadd.f32 %v843, %v978
      %v997 = vadd.f32 %v843, %v981
      %v998 = vadd.f32 %v843, %v986
      %v999 = vadd.f32 %v843, %v989
      %v1004 = vunpack.c.l.b16 %v814
      %v1005 = vunpack.c.l.b16 %v815
      %v1006 = vunpack.c.l.b16 %v816
      %v1007 = vunpack.c.l.b16 %v817
      %v1008 = vpack.c.b16 %v1005, %v1004
      %v1009 = vpack.c.b16 %v1007, %v1006
      %v1013 = vsel %vm914, %v900, 0
      %1015 = vmatprep.subr.bf16.mxu0 0
      %1016 = vmatpush1.bf16.msra.mxu0 %v1008
      %1017 = vmatprep.subr.bf16.mxu0 0
      %1018 = vmatpush1.bf16.msra.mxu0 %v1009
      %1019 = vmatprep.subr.bf16.mxu0 0
      %1020 = vmatpush1.bf16.msra.mxu0 0
      %1021 = vmatprep.subr.bf16.mxu0 0
      %1022 = vmatpush1.bf16.msra.mxu0 0
      %1023 = vmatprep.subr.bf16.mxu0 0
      %1024 = vmatpush1.bf16.msra.mxu0 0
      %1025 = vmatprep.subr.bf16.mxu0 0
      %1026 = vmatpush1.bf16.msra.mxu0 0
      %1027 = vmatprep.subr.bf16.mxu0 0
      %1028 = vmatpush1.bf16.msra.mxu0 0
      %1029 = vmatprep.subr.bf16.mxu0 0
      %1030 = vmatpush1.bf16.msra.mxu0 0
      %1031 = vmatprep.subr.bf16.mxu0 0
      %1032 = vmatpush1.bf16.msra.mxu0 0
      %1033 = vmatprep.subr.bf16.mxu0 0
      %1034 = vmatpush1.bf16.msra.mxu0 0
      %1035 = vmatprep.subr.bf16.mxu0 0
      %1036 = vmatpush1.bf16.msra.mxu0 0
      %1037 = vmatprep.subr.bf16.mxu0 0
      %1038 = vmatpush1.bf16.msra.mxu0 0
      %1039 = vmatprep.subr.bf16.mxu0 0
      %1040 = vmatpush1.bf16.msra.mxu0 0
      %1041 = vmatprep.subr.bf16.mxu0 0
      %1042 = vmatpush1.bf16.msra.mxu0 0
      %1043 = vmatprep.subr.bf16.mxu0 0
      %1044 = vmatpush1.bf16.msra.mxu0 0
      %1045 = vmatprep.subr.bf16.mxu0 0
      %1046 = vmatpush1.bf16.msra.mxu0 0
      %1047 = vmatprep.mubr.bf16.mxu0 0
      %1048 = vmatmul.mubr.bf16.gmra.mrb[0].mxu0 %v919
      %v1049 = vpop.f32.mrb[0].mxu0
      %v1050 = vadd.f32 0.0, %v1049
      %v1051 = vpop.f32.mrb[0].mxu0
      %v1052 = vpop.f32.mrb[0].mxu0
      %v1053 = vadd.f32 0.0, %v1052
      %v1054 = vpop.f32.mrb[0].mxu0
      %1055 = vmatprep.mubr.bf16.mxu0 0
      %1056 = vmatmul.mubr.bf16.gmra.mrb[0].mxu0 %v922
      %v1057 = vpop.f32.mrb[0].mxu0
      %v1058 = vadd.f32 0.0, %v1057
      %v1059 = vpop.f32.mrb[0].mxu0
      %v1060 = vpop.f32.mrb[0].mxu0
      %v1061 = vadd.f32 0.0, %v1060
      %v1062 = vpop.f32.mrb[0].mxu0
      %1063 = vmatprep.mubr.bf16.mxu0 0
      %1064 = vmatmul.mubr.bf16.gmra.mrb[0].mxu0 %v925
      %v1065 = vpop.f32.mrb[0].mxu0
      %v1066 = vadd.f32 0.0, %v1065
      %v1067 = vpop.f32.mrb[0].mxu0
      %v1068 = vpop.f32.mrb[0].mxu0
      %v1069 = vadd.f32 0.0, %v1068
      %v1070 = vpop.f32.mrb[0].mxu0
      %1071 = vmatprep.mubr.bf16.mxu0 0
      %1072 = vmatmul.mubr.bf16.gmra.mrb[0].mxu0 %v1013
      %v1073 = vpop.f32.mrb[0].mxu0
      %v1074 = vadd.f32 0.0, %v1073
      %v1075 = vpop.f32.mrb[0].mxu0
      %v1076 = vpop.f32.mrb[0].mxu0
      %v1077 = vadd.f32 0.0, %v1076
      %v1078 = vpop.f32.mrb[0].mxu0
      %1079 = vdwg.mxu0
      %v1080 = vadd.f32 %v992, %v1050
      %v1081 = vadd.f32 %v993, %v1053
      %v1082 = vadd.f32 %v994, %v1058
      %v1083 = vadd.f32 %v995, %v1061
      %v1084 = vadd.f32 %v996, %v1066
      %v1085 = vadd.f32 %v997, %v1069
      %v1086 = vadd.f32 %v998, %v1074
      %v1087 = vadd.f32 %v999, %v1077
      %v1092 = vunpack.c.l.b16 %v826
      %v1093 = vunpack.c.l.b16 %v827
      %v1094 = vunpack.c.l.b16 %v828
      %v1095 = vunpack.c.l.b16 %v829
      %v1096 = vpack.c.b16 %v1093, %v1092
      %v1097 = vpack.c.b16 %v1095, %v1094
      %v1101 = vsel %vm914, %v901, 0
      %1103 = vmatprep.subr.bf16.mxu0 0
      %1104 = vmatpush1.bf16.msra.mxu0 %v1096
      %1105 = vmatprep.subr.bf16.mxu0 0
      %1106 = vmatpush1.bf16.msra.mxu0 %v1097
      %1107 = vmatprep.subr.bf16.mxu0 0
      %1108 = vmatpush1.bf16.msra.mxu0 0
      %1109 = vmatprep.subr.bf16.mxu0 0
      %1110 = vmatpush1.bf16.msra.mxu0 0
      %1111 = vmatprep.subr.bf16.mxu0 0
      %1112 = vmatpush1.bf16.msra.mxu0 0
      %1113 = vmatprep.subr.bf16.mxu0 0
      %1114 = vmatpush1.bf16.msra.mxu0 0
      %1115 = vmatprep.subr.bf16.mxu0 0
      %1116 = vmatpush1.bf16.msra.mxu0 0
      %1117 = vmatprep.subr.bf16.mxu0 0
      %1118 = vmatpush1.bf16.msra.mxu0 0
      %1119 = vmatprep.subr.bf16.mxu0 0
      %1120 = vmatpush1.bf16.msra.mxu0 0
      %1121 = vmatprep.subr.bf16.mxu0 0
      %1122 = vmatpush1.bf16.msra.mxu0 0
      %1123 = vmatprep.subr.bf16.mxu0 0
      %1124 = vmatpush1.bf16.msra.mxu0 0
      %1125 = vmatprep.subr.bf16.mxu0 0
      %1126 = vmatpush1.bf16.msra.mxu0 0
      %1127 = vmatprep.subr.bf16.mxu0 0
      %1128 = vmatpush1.bf16.msra.mxu0 0
      %1129 = vmatprep.subr.bf16.mxu0 0
      %1130 = vmatpush1.bf16.msra.mxu0 0
      %1131 = vmatprep.subr.bf16.mxu0 0
      %1132 = vmatpush1.bf16.msra.mxu0 0
      %1133 = vmatprep.subr.bf16.mxu0 0
      %1134 = vmatpush1.bf16.msra.mxu0 0
      %1135 = vmatprep.mubr.bf16.mxu0 0
      %1136 = vmatmul.mubr.bf16.gmra.mrb[0].mxu0 %v922
      %v1137 = vpop.f32.mrb[0].mxu0
      %v1138 = vadd.f32 0.0, %v1137
      %v1139 = vpop.f32.mrb[0].mxu0
      %v1140 = vpop.f32.mrb[0].mxu0
      %v1141 = vadd.f32 0.0, %v1140
      %v1142 = vpop.f32.mrb[0].mxu0
      %1143 = vmatprep.mubr.bf16.mxu0 0
      %1144 = vmatmul.mubr.bf16.gmra.mrb[0].mxu0 %v925
      %v1145 = vpop.f32.mrb[0].mxu0
      %v1146 = vadd.f32 0.0, %v1145
      %v1147 = vpop.f32.mrb[0].mxu0
      %v1148 = vpop.f32.mrb[0].mxu0
      %v1149 = vadd.f32 0.0, %v1148
      %v1150 = vpop.f32.mrb[0].mxu0
      %1151 = vmatprep.mubr.bf16.mxu0 0
      %1152 = vmatmul.mubr.bf16.gmra.mrb[0].mxu0 %v1013
      %v1153 = vpop.f32.mrb[0].mxu0
      %v1154 = vadd.f32 0.0, %v1153
      %v1155 = vpop.f32.mrb[0].mxu0
      %v1156 = vpop.f32.mrb[0].mxu0
      %v1157 = vadd.f32 0.0, %v1156
      %v1158 = vpop.f32.mrb[0].mxu0
      %1159 = vmatprep.mubr.bf16.mxu0 0
      %1160 = vmatmul.mubr.bf16.gmra.mrb[0].mxu0 %v1101
      %v1161 = vpop.f32.mrb[0].mxu0
      %v1162 = vadd.f32 0.0, %v1161
      %v1163 = vpop.f32.mrb[0].mxu0
      %v1164 = vpop.f32.mrb[0].mxu0
      %v1165 = vadd.f32 0.0, %v1164
      %v1166 = vpop.f32.mrb[0].mxu0
      %1167 = vdwg.mxu0
      %v1168 = vadd.f32 %v1080, %v1138
      %v1169 = vadd.f32 %v1081, %v1141
      %v1170 = vadd.f32 %v1082, %v1146
      %v1171 = vadd.f32 %v1083, %v1149
      %v1172 = vadd.f32 %v1084, %v1154
      %v1173 = vadd.f32 %v1085, %v1157
      %v1174 = vadd.f32 %v1086, %v1162
      %v1175 = vadd.f32 %v1087, %v1165
      %v1180 = vunpack.c.l.b16 %v806
      %v1181 = vunpack.c.l.b16 %v807
      %v1182 = vunpack.c.l.b16 %v808
      %v1183 = vunpack.c.l.b16 %v809
      %v1184 = vpack.c.b16 %v1181, %v1180
      %v1185 = vpack.c.b16 %v1183, %v1182
      %v1188 = vsel %vm914, %v796, 0
      %v1190 = vsel %vm914, %v797, 0
      %v1192 = vsel %vm914, %v798, 0
      %v1194 = vsel %vm914, %v799, 0
      %1196 = vmatprep.subr.bf16.mxu0 0
      %1197 = vmatpush1.bf16.msra.mxu0 %v1184
      %1198 = vmatprep.subr.bf16.mxu0 0
      %1199 = vmatpush1.bf16.msra.mxu0 %v1185
      %1200 = vmatprep.subr.bf16.mxu0 0
      %1201 = vmatpush1.bf16.msra.mxu0 0
      %1202 = vmatprep.subr.bf16.mxu0 0
      %1203 = vmatpush1.bf16.msra.mxu0 0
      %1204 = vmatprep.subr.bf16.mxu0 0
      %1205 = vmatpush1.bf16.msra.mxu0 0
      %1206 = vmatprep.subr.bf16.mxu0 0
      %1207 = vmatpush1.bf16.msra.mxu0 0
      %1208 = vmatprep.subr.bf16.mxu0 0
      %1209 = vmatpush1.bf16.msra.mxu0 0
      %1210 = vmatprep.subr.bf16.mxu0 0
      %1211 = vmatpush1.bf16.msra.mxu0 0
      %1212 = vmatprep.subr.bf16.mxu0 0
      %1213 = vmatpush1.bf16.msra.mxu0 0
      %1214 = vmatprep.subr.bf16.mxu0 0
      %1215 = vmatpush1.bf16.msra.mxu0 0
      %1216 = vmatprep.subr.bf16.mxu0 0
      %1217 = vmatpush1.bf16.msra.mxu0 0
      %1218 = vmatprep.subr.bf16.mxu0 0
      %1219 = vmatpush1.bf16.msra.mxu0 0
      %1220 = vmatprep.subr.bf16.mxu0 0
      %1221 = vmatpush1.bf16.msra.mxu0 0
      %1222 = vmatprep.subr.bf16.mxu0 0
      %1223 = vmatpush1.bf16.msra.mxu0 0
      %1224 = vmatprep.subr.bf16.mxu0 0
      %1225 = vmatpush1.bf16.msra.mxu0 0
      %1226 = vmatprep.subr.bf16.mxu0 0
      %1227 = vmatpush1.bf16.msra.mxu0 0
      %1228 = vmatprep.mubr.bf16.mxu0 0
      %1229 = vmatmul.mubr.bf16.gmra.mrb[0].mxu0 %v1188
      %v1230 = vpop.f32.mrb[0].mxu0
      %v1231 = vadd.f32 0.0, %v1230
      %v1232 = vpop.f32.mrb[0].mxu0
      %v1233 = vpop.f32.mrb[0].mxu0
      %v1234 = vadd.f32 0.0, %v1233
      %v1235 = vpop.f32.mrb[0].mxu0
      %1236 = vmatprep.mubr.bf16.mxu0 0
      %1237 = vmatmul.mubr.bf16.gmra.mrb[0].mxu0 %v1190
      %v1238 = vpop.f32.mrb[0].mxu0
      %v1239 = vadd.f32 0.0, %v1238
      %v1240 = vpop.f32.mrb[0].mxu0
      %v1241 = vpop.f32.mrb[0].mxu0
      %v1242 = vadd.f32 0.0, %v1241
      %v1243 = vpop.f32.mrb[0].mxu0
      %1244 = vmatprep.mubr.bf16.mxu0 0
      %1245 = vmatmul.mubr.bf16.gmra.mrb[0].mxu0 %v1192
      %v1246 = vpop.f32.mrb[0].mxu0
      %v1247 = vadd.f32 0.0, %v1246
      %v1248 = vpop.f32.mrb[0].mxu0
      %v1249 = vpop.f32.mrb[0].mxu0
      %v1250 = vadd.f32 0.0, %v1249
      %v1251 = vpop.f32.mrb[0].mxu0
      %1252 = vmatprep.mubr.bf16.mxu0 0
      %1253 = vmatmul.mubr.bf16.gmra.mrb[0].mxu0 %v1194
      %v1254 = vpop.f32.mrb[0].mxu0
      %v1255 = vadd.f32 0.0, %v1254
      %v1256 = vpop.f32.mrb[0].mxu0
      %v1257 = vpop.f32.mrb[0].mxu0
      %v1258 = vadd.f32 0.0, %v1257
      %v1259 = vpop.f32.mrb[0].mxu0
      %1260 = vdwg.mxu0
      %v1261 = vadd.f32 %v1168, %v1231
      %v1262 = vadd.f32 %v1169, %v1234
      %v1263 = vadd.f32 %v1170, %v1239
      %v1264 = vadd.f32 %v1171, %v1242
      %v1265 = vadd.f32 %v1172, %v1247
      %v1266 = vadd.f32 %v1173, %v1250
      %v1267 = vadd.f32 %v1174, %v1255
      %v1268 = vadd.f32 %v1175, %v1258
      %v1273 = vunpack.c.l.b16 %v818
      %v1274 = vunpack.c.l.b16 %v819
      %v1275 = vunpack.c.l.b16 %v820
      %v1276 = vunpack.c.l.b16 %v821
      %v1277 = vpack.c.b16 %v1274, %v1273
      %v1278 = vpack.c.b16 %v1276, %v1275
      %v1281 = vsel %vm914, %v800, 0
      %1283 = vmatprep.subr.bf16.mxu0 0
      %1284 = vmatpush1.bf16.msra.mxu0 %v1277
      %1285 = vmatprep.subr.bf16.mxu0 0
      %1286 = vmatpush1.bf16.msra.mxu0 %v1278
      %1287 = vmatprep.subr.bf16.mxu0 0
      %1288 = vmatpush1.bf16.msra.mxu0 0
      %1289 = vmatprep.subr.bf16.mxu0 0
      %1290 = vmatpush1.bf16.msra.mxu0 0
      %1291 = vmatprep.subr.bf16.mxu0 0
      %1292 = vmatpush1.bf16.msra.mxu0 0
      %1293 = vmatprep.subr.bf16.mxu0 0
      %1294 = vmatpush1.bf16.msra.mxu0 0
      %1295 = vmatprep.subr.bf16.mxu0 0
      %1296 = vmatpush1.bf16.msra.mxu0 0
      %1297 = vmatprep.subr.bf16.mxu0 0
      %1298 = vmatpush1.bf16.msra.mxu0 0
      %1299 = vmatprep.subr.bf16.mxu0 0
      %1300 = vmatpush1.bf16.msra.mxu0 0
      %1301 = vmatprep.subr.bf16.mxu0 0
      %1302 = vmatpush1.bf16.msra.mxu0 0
      %1303 = vmatprep.subr.bf16.mxu0 0
      %1304 = vmatpush1.bf16.msra.mxu0 0
      %1305 = vmatprep.subr.bf16.mxu0 0
      %1306 = vmatpush1.bf16.msra.mxu0 0
      %1307 = vmatprep.subr.bf16.mxu0 0
      %1308 = vmatpush1.bf16.msra.mxu0 0
      %1309 = vmatprep.subr.bf16.mxu0 0
      %1310 = vmatpush1.bf16.msra.mxu0 0
      %1311 = vmatprep.subr.bf16.mxu0 0
      %1312 = vmatpush1.bf16.msra.mxu0 0
      %1313 = vmatprep.subr.bf16.mxu0 0
      %1314 = vmatpush1.bf16.msra.mxu0 0
      %1315 = vmatprep.mubr.bf16.mxu0 0
      %1316 = vmatmul.mubr.bf16.gmra.mrb[0].mxu0 %v1190
      %v1317 = vpop.f32.mrb[0].mxu0
      %v1318 = vadd.f32 0.0, %v1317
      %v1319 = vpop.f32.mrb[0].mxu0
      %v1320 = vpop.f32.mrb[0].mxu0
      %v1321 = vadd.f32 0.0, %v1320
      %v1322 = vpop.f32.mrb[0].mxu0
      %1323 = vmatprep.mubr.bf16.mxu0 0
      %1324 = vmatmul.mubr.bf16.gmra.mrb[0].mxu0 %v1192
      %v1325 = vpop.f32.mrb[0].mxu0
      %v1326 = vadd.f32 0.0, %v1325
      %v1327 = vpop.f32.mrb[0].mxu0
      %v1328 = vpop.f32.mrb[0].mxu0
      %v1329 = vadd.f32 0.0, %v1328
      %v1330 = vpop.f32.mrb[0].mxu0
      %1331 = vmatprep.mubr.bf16.mxu0 0
      %1332 = vmatmul.mubr.bf16.gmra.mrb[0].mxu0 %v1194
      %v1333 = vpop.f32.mrb[0].mxu0
      %v1334 = vadd.f32 0.0, %v1333
      %v1335 = vpop.f32.mrb[0].mxu0
      %v1336 = vpop.f32.mrb[0].mxu0
      %v1337 = vadd.f32 0.0, %v1336
      %v1338 = vpop.f32.mrb[0].mxu0
      %1339 = vmatprep.mubr.bf16.mxu0 0
      %1340 = vmatmul.mubr.bf16.gmra.mrb[0].mxu0 %v1281
      %v1341 = vpop.f32.mrb[0].mxu0
      %v1342 = vadd.f32 0.0, %v1341
      %v1343 = vpop.f32.mrb[0].mxu0
      %v1344 = vpop.f32.mrb[0].mxu0
      %v1345 = vadd.f32 0.0, %v1344
      %v1346 = vpop.f32.mrb[0].mxu0
      %1347 = vdwg.mxu0
      %v1348 = vadd.f32 %v1261, %v1318
      %v1349 = vadd.f32 %v1262, %v1321
      %v1350 = vadd.f32 %v1263, %v1326
      %v1351 = vadd.f32 %v1264, %v1329
      %v1352 = vadd.f32 %v1265, %v1334
      %v1353 = vadd.f32 %v1266, %v1337
      %v1354 = vadd.f32 %v1267, %v1342
      %v1355 = vadd.f32 %v1268, %v1345
      %v1360 = vunpack.c.l.b16 %v830
      %v1361 = vunpack.c.l.b16 %v831
      %v1362 = vunpack.c.l.b16 %v832
      %v1363 = vunpack.c.l.b16 %v833
      %v1364 = vpack.c.b16 %v1361, %v1360
      %v1365 = vpack.c.b16 %v1363, %v1362
      %v1368 = vsel %vm914, %v801, 0
      %1370 = vmatprep.subr.bf16.mxu0 0
      %1371 = vmatpush1.bf16.msra.mxu0 %v1364
      %1372 = vmatprep.subr.bf16.mxu0 0
      %1373 = vmatpush1.bf16.msra.mxu0 %v1365
      %1374 = vmatprep.subr.bf16.mxu0 0
      %1375 = vmatpush1.bf16.msra.mxu0 0
      %1376 = vmatprep.subr.bf16.mxu0 0
      %1377 = vmatpush1.bf16.msra.mxu0 0
      %1378 = vmatprep.subr.bf16.mxu0 0
      %1379 = vmatpush1.bf16.msra.mxu0 0
      %1380 = vmatprep.subr.bf16.mxu0 0
      %1381 = vmatpush1.bf16.msra.mxu0 0
      %1382 = vmatprep.subr.bf16.mxu0 0
      %1383 = vmatpush1.bf16.msra.mxu0 0
      %1384 = vmatprep.subr.bf16.mxu0 0
      %1385 = vmatpush1.bf16.msra.mxu0 0
      %1386 = vmatprep.subr.bf16.mxu0 0
      %1387 = vmatpush1.bf16.msra.mxu0 0
      %1388 = vmatprep.subr.bf16.mxu0 0
      %1389 = vmatpush1.bf16.msra.mxu0 0
      %1390 = vmatprep.subr.bf16.mxu0 0
      %1391 = vmatpush1.bf16.msra.mxu0 0
      %1392 = vmatprep.subr.bf16.mxu0 0
      %1393 = vmatpush1.bf16.msra.mxu0 0
      %1394 = vmatprep.subr.bf16.mxu0 0
      %1395 = vmatpush1.bf16.msra.mxu0 0
      %1396 = vmatprep.subr.bf16.mxu0 0
      %1397 = vmatpush1.bf16.msra.mxu0 0
      %1398 = vmatprep.subr.bf16.mxu0 0
      %1399 = vmatpush1.bf16.msra.mxu0 0
      %1400 = vmatprep.subr.bf16.mxu0 0
      %1401 = vmatpush1.bf16.msra.mxu0 0
      %1402 = vmatprep.mubr.bf16.mxu0 0
      %1403 = vmatmul.mubr.bf16.gmra.mrb[0].mxu0 %v1192
      %v1404 = vpop.f32.mrb[0].mxu0
      %v1405 = vadd.f32 0.0, %v1404
      %v1406 = vpop.f32.mrb[0].mxu0
      %v1407 = vpop.f32.mrb[0].mxu0
      %v1408 = vadd.f32 0.0, %v1407
      %v1409 = vpop.f32.mrb[0].mxu0
      %1410 = vmatprep.mubr.bf16.mxu0 0
      %1411 = vmatmul.mubr.bf16.gmra.mrb[0].mxu0 %v1194
      %v1412 = vpop.f32.mrb[0].mxu0
      %v1413 = vadd.f32 0.0, %v1412
      %v1414 = vpop.f32.mrb[0].mxu0
      %v1415 = vpop.f32.mrb[0].mxu0
      %v1416 = vadd.f32 0.0, %v1415
      %v1417 = vpop.f32.mrb[0].mxu0
      %1418 = vmatprep.mubr.bf16.mxu0 0
      %1419 = vmatmul.mubr.bf16.gmra.mrb[0].mxu0 %v1281
      %v1420 = vpop.f32.mrb[0].mxu0
      %v1421 = vadd.f32 0.0, %v1420
      %v1422 = vpop.f32.mrb[0].mxu0
      %v1423 = vpop.f32.mrb[0].mxu0
      %v1424 = vadd.f32 0.0, %v1423
      %v1425 = vpop.f32.mrb[0].mxu0
      %1426 = vmatprep.mubr.bf16.mxu0 0
      %1427 = vmatmul.mubr.bf16.gmra.mrb[0].mxu0 %v1368
      %v1428 = vpop.f32.mrb[0].mxu0
      %v1429 = vadd.f32 0.0, %v1428
      %v1430 = vpop.f32.mrb[0].mxu0
      %v1431 = vpop.f32.mrb[0].mxu0
      %v1432 = vadd.f32 0.0, %v1431
      %v1433 = vpop.f32.mrb[0].mxu0
      %1434 = vdwg.mxu0
      %v1435 = vadd.f32 %v1348, %v1405
      %v1436 = vadd.f32 %v1349, %v1408
      %v1437 = vadd.f32 %v1350, %v1413
      %v1438 = vadd.f32 %v1351, %v1416
      %v1439 = vadd.f32 %v1352, %v1421
      %v1440 = vadd.f32 %v1353, %v1424
      %v1441 = vadd.f32 %v1354, %v1429
      %v1442 = vadd.f32 %v1355, %v1432
      %v1443 = vrot.slane %v849, 1
      %v1444 = vor.u32 %v846, %v1443
      %v1445 = vrot.slane %v856, 1
      %v1446 = vor.u32 %v853, %v1445
      %v1447 = vrot.slane %v863, 1
      %v1448 = vor.u32 %v860, %v1447
      %v1449 = vrot.slane %v870, 1
      %v1450 = vor.u32 %v867, %v1449
      %v1451 = vrot.slane %v877, 1
      %v1452 = vor.u32 %v874, %v1451
      %v1453 = vrot.slane %v884, 1
      %v1454 = vor.u32 %v881, %v1453
      %vm1461 = vcmask 1047552
      %vm1462 = vsmask.f32 7424
      %vm1463 = vmand %vm1461, %vm1462
      %v1464 = vsel %vm1463, %v1444, 0
      %v1465 = vsel %vm1463, %v1446, 0
      %v1466 = vsel %vm1463, %v1448, 0
      %v1467 = vsel %vm1463, %v1450, 0
      %v1468 = vsel %vm1463, %v1452, 0
      %v1469 = vsel %vm1463, %v1454, 0
      %v1474 = vunpack.c.l.b16 %v810
      %v1475 = vunpack.c.l.b16 %v811
      %v1476 = vunpack.c.l.b16 %v812
      %v1477 = vunpack.c.l.b16 %v813
      %v1478 = vpack.c.b16 %v1475, %v1474
      %v1479 = vpack.c.b16 %v1477, %v1476
      %v1483 = vsel %vm914, %v1464, 0
      %v1486 = vsel %vm914, %v1465, 0
      %v1489 = vsel %vm914, %v1466, 0
      %v1492 = vsel %vm914, %v1467, 0
      %1494 = vmatprep.subr.bf16.mxu0 0
      %1495 = vmatpush1.bf16.msra.mxu0 %v1478
      %1496 = vmatprep.subr.bf16.mxu0 0
      %1497 = vmatpush1.bf16.msra.mxu0 %v1479
      %1498 = vmatprep.subr.bf16.mxu0 0
      %1499 = vmatpush1.bf16.msra.mxu0 0
      %1500 = vmatprep.subr.bf16.mxu0 0
      %1501 = vmatpush1.bf16.msra.mxu0 0
      %1502 = vmatprep.subr.bf16.mxu0 0
      %1503 = vmatpush1.bf16.msra.mxu0 0
      %1504 = vmatprep.subr.bf16.mxu0 0
      %1505 = vmatpush1.bf16.msra.mxu0 0
      %1506 = vmatprep.subr.bf16.mxu0 0
      %1507 = vmatpush1.bf16.msra.mxu0 0
      %1508 = vmatprep.subr.bf16.mxu0 0
      %1509 = vmatpush1.bf16.msra.mxu0 0
      %1510 = vmatprep.subr.bf16.mxu0 0
      %1511 = vmatpush1.bf16.msra.mxu0 0
      %1512 = vmatprep.subr.bf16.mxu0 0
      %1513 = vmatpush1.bf16.msra.mxu0 0
      %1514 = vmatprep.subr.bf16.mxu0 0
      %1515 = vmatpush1.bf16.msra.mxu0 0
      %1516 = vmatprep.subr.bf16.mxu0 0
      %1517 = vmatpush1.bf16.msra.mxu0 0
      %1518 = vmatprep.subr.bf16.mxu0 0
      %1519 = vmatpush1.bf16.msra.mxu0 0
      %1520 = vmatprep.subr.bf16.mxu0 0
      %1521 = vmatpush1.bf16.msra.mxu0 0
      %1522 = vmatprep.subr.bf16.mxu0 0
      %1523 = vmatpush1.bf16.msra.mxu0 0
      %1524 = vmatprep.subr.bf16.mxu0 0
      %1525 = vmatpush1.bf16.msra.mxu0 0
      %1526 = vmatprep.mubr.bf16.mxu0 0
      %1527 = vmatmul.mubr.bf16.gmra.mrb[0].mxu0 %v1483
      %v1528 = vpop.f32.mrb[0].mxu0
      %v1529 = vadd.f32 0.0, %v1528
      %v1530 = vpop.f32.mrb[0].mxu0
      %v1531 = vpop.f32.mrb[0].mxu0
      %v1532 = vadd.f32 0.0, %v1531
      %v1533 = vpop.f32.mrb[0].mxu0
      %1534 = vmatprep.mubr.bf16.mxu0 0
      %1535 = vmatmul.mubr.bf16.gmra.mrb[0].mxu0 %v1486
      %v1536 = vpop.f32.mrb[0].mxu0
      %v1537 = vadd.f32 0.0, %v1536
      %v1538 = vpop.f32.mrb[0].mxu0
      %v1539 = vpop.f32.mrb[0].mxu0
      %v1540 = vadd.f32 0.0, %v1539
      %v1541 = vpop.f32.mrb[0].mxu0
      %1542 = vmatprep.mubr.bf16.mxu0 0
      %1543 = vmatmul.mubr.bf16.gmra.mrb[0].mxu0 %v1489
      %v1544 = vpop.f32.mrb[0].mxu0
      %v1545 = vadd.f32 0.0, %v1544
      %v1546 = vpop.f32.mrb[0].mxu0
      %v1547 = vpop.f32.mrb[0].mxu0
      %v1548 = vadd.f32 0.0, %v1547
      %v1549 = vpop.f32.mrb[0].mxu0
      %1550 = vmatprep.mubr.bf16.mxu0 0
      %1551 = vmatmul.mubr.bf16.gmra.mrb[0].mxu0 %v1492
      %v1552 = vpop.f32.mrb[0].mxu0
      %v1553 = vadd.f32 0.0, %v1552
      %v1554 = vpop.f32.mrb[0].mxu0
      %v1555 = vpop.f32.mrb[0].mxu0
      %v1556 = vadd.f32 0.0, %v1555
      %v1557 = vpop.f32.mrb[0].mxu0
      %1558 = vdwg.mxu0
      %v1559 = vadd.f32 %v1435, %v1529
      %v1560 = vadd.f32 %v1436, %v1532
      %v1561 = vadd.f32 %v1437, %v1537
      %v1562 = vadd.f32 %v1438, %v1540
      %v1563 = vadd.f32 %v1439, %v1545
      %v1564 = vadd.f32 %v1440, %v1548
      %v1565 = vadd.f32 %v1441, %v1553
      %v1566 = vadd.f32 %v1442, %v1556
      %v1571 = vunpack.c.l.b16 %v822
      %v1572 = vunpack.c.l.b16 %v823
      %v1573 = vunpack.c.l.b16 %v824
      %v1574 = vunpack.c.l.b16 %v825
      %v1575 = vpack.c.b16 %v1572, %v1571
      %v1576 = vpack.c.b16 %v1574, %v1573
      %v1580 = vsel %vm914, %v1468, 0
      %1582 = vmatprep.subr.bf16.mxu0 0
      %1583 = vmatpush1.bf16.msra.mxu0 %v1575
      %1584 = vmatprep.subr.bf16.mxu0 0
      %1585 = vmatpush1.bf16.msra.mxu0 %v1576
      %1586 = vmatprep.subr.bf16.mxu0 0
      %1587 = vmatpush1.bf16.msra.mxu0 0
      %1588 = vmatprep.subr.bf16.mxu0 0
      %1589 = vmatpush1.bf16.msra.mxu0 0
      %1590 = vmatprep.subr.bf16.mxu0 0
      %1591 = vmatpush1.bf16.msra.mxu0 0
      %1592 = vmatprep.subr.bf16.mxu0 0
      %1593 = vmatpush1.bf16.msra.mxu0 0
      %1594 = vmatprep.subr.bf16.mxu0 0
      %1595 = vmatpush1.bf16.msra.mxu0 0
      %1596 = vmatprep.subr.bf16.mxu0 0
      %1597 = vmatpush1.bf16.msra.mxu0 0
      %1598 = vmatprep.subr.bf16.mxu0 0
      %1599 = vmatpush1.bf16.msra.mxu0 0
      %1600 = vmatprep.subr.bf16.mxu0 0
      %1601 = vmatpush1.bf16.msra.mxu0 0
      %1602 = vmatprep.subr.bf16.mxu0 0
      %1603 = vmatpush1.bf16.msra.mxu0 0
      %1604 = vmatprep.subr.bf16.mxu0 0
      %1605 = vmatpush1.bf16.msra.mxu0 0
      %1606 = vmatprep.subr.bf16.mxu0 0
      %1607 = vmatpush1.bf16.msra.mxu0 0
      %1608 = vmatprep.subr.bf16.mxu0 0
      %1609 = vmatpush1.bf16.msra.mxu0 0
      %1610 = vmatprep.subr.bf16.mxu0 0
      %1611 = vmatpush1.bf16.msra.mxu0 0
      %1612 = vmatprep.subr.bf16.mxu0 0
      %1613 = vmatpush1.bf16.msra.mxu0 0
      %1614 = vmatprep.mubr.bf16.mxu0 0
      %1615 = vmatmul.mubr.bf16.gmra.mrb[0].mxu0 %v1486
      %v1616 = vpop.f32.mrb[0].mxu0
      %v1617 = vadd.f32 0.0, %v1616
      %v1618 = vpop.f32.mrb[0].mxu0
      %v1619 = vpop.f32.mrb[0].mxu0
      %v1620 = vadd.f32 0.0, %v1619
      %v1621 = vpop.f32.mrb[0].mxu0
      %1622 = vmatprep.mubr.bf16.mxu0 0
      %1623 = vmatmul.mubr.bf16.gmra.mrb[0].mxu0 %v1489
      %v1624 = vpop.f32.mrb[0].mxu0
      %v1625 = vadd.f32 0.0, %v1624
      %v1626 = vpop.f32.mrb[0].mxu0
      %v1627 = vpop.f32.mrb[0].mxu0
      %v1628 = vadd.f32 0.0, %v1627
      %v1629 = vpop.f32.mrb[0].mxu0
      %1630 = vmatprep.mubr.bf16.mxu0 0
      %1631 = vmatmul.mubr.bf16.gmra.mrb[0].mxu0 %v1492
      %v1632 = vpop.f32.mrb[0].mxu0
      %v1633 = vadd.f32 0.0, %v1632
      %v1634 = vpop.f32.mrb[0].mxu0
      %v1635 = vpop.f32.mrb[0].mxu0
      %v1636 = vadd.f32 0.0, %v1635
      %v1637 = vpop.f32.mrb[0].mxu0
      %1638 = vmatprep.mubr.bf16.mxu0 0
      %1639 = vmatmul.mubr.bf16.gmra.mrb[0].mxu0 %v1580
      %v1640 = vpop.f32.mrb[0].mxu0
      %v1641 = vadd.f32 0.0, %v1640
      %v1642 = vpop.f32.mrb[0].mxu0
      %v1643 = vpop.f32.mrb[0].mxu0
      %v1644 = vadd.f32 0.0, %v1643
      %v1645 = vpop.f32.mrb[0].mxu0
      %1646 = vdwg.mxu0
      %v1647 = vadd.f32 %v1559, %v1617
      %v1648 = vadd.f32 %v1560, %v1620
      %v1649 = vadd.f32 %v1561, %v1625
      %v1650 = vadd.f32 %v1562, %v1628
      %v1651 = vadd.f32 %v1563, %v1633
      %v1652 = vadd.f32 %v1564, %v1636
      %v1653 = vadd.f32 %v1565, %v1641
      %v1654 = vadd.f32 %v1566, %v1644
      %v1659 = vunpack.c.l.b16 %v834
      %v1660 = vunpack.c.l.b16 %v835
      %v1661 = vunpack.c.l.b16 %v836
      %v1662 = vunpack.c.l.b16 %v837
      %v1663 = vpack.c.b16 %v1660, %v1659
      %v1664 = vpack.c.b16 %v1662, %v1661
      %v1668 = vsel %vm914, %v1469, 0
      %1670 = vmatprep.subr.bf16.mxu0 0
      %1671 = vmatpush1.bf16.msra.mxu0 %v1663
      %1672 = vmatprep.subr.bf16.mxu0 0
      %1673 = vmatpush1.bf16.msra.mxu0 %v1664
      %1674 = vmatprep.subr.bf16.mxu0 0
      %1675 = vmatpush1.bf16.msra.mxu0 0
      %1676 = vmatprep.subr.bf16.mxu0 0
      %1677 = vmatpush1.bf16.msra.mxu0 0
      %1678 = vmatprep.subr.bf16.mxu0 0
      %1679 = vmatpush1.bf16.msra.mxu0 0
      %1680 = vmatprep.subr.bf16.mxu0 0
      %1681 = vmatpush1.bf16.msra.mxu0 0
      %1682 = vmatprep.subr.bf16.mxu0 0
      %1683 = vmatpush1.bf16.msra.mxu0 0
      %1684 = vmatprep.subr.bf16.mxu0 0
      %1685 = vmatpush1.bf16.msra.mxu0 0
      %1686 = vmatprep.subr.bf16.mxu0 0
      %1687 = vmatpush1.bf16.msra.mxu0 0
      %1688 = vmatprep.subr.bf16.mxu0 0
      %1689 = vmatpush1.bf16.msra.mxu0 0
      %1690 = vmatprep.subr.bf16.mxu0 0
      %1691 = vmatpush1.bf16.msra.mxu0 0
      %1692 = vmatprep.subr.bf16.mxu0 0
      %1693 = vmatpush1.bf16.msra.mxu0 0
      %1694 = vmatprep.subr.bf16.mxu0 0
      %1695 = vmatpush1.bf16.msra.mxu0 0
      %1696 = vmatprep.subr.bf16.mxu0 0
      %1697 = vmatpush1.bf16.msra.mxu0 0
      %1698 = vmatprep.subr.bf16.mxu0 0
      %1699 = vmatpush1.bf16.msra.mxu0 0
      %1700 = vmatprep.subr.bf16.mxu0 0
      %1701 = vmatpush1.bf16.msra.mxu0 0
      %1702 = vmatprep.mubr.bf16.mxu0 0
      %1703 = vmatmul.mubr.bf16.gmra.mrb[0].mxu0 %v1489
      %v1704 = vpop.f32.mrb[0].mxu0
      %v1705 = vadd.f32 0.0, %v1704
      %v1706 = vpop.f32.mrb[0].mxu0
      %v1707 = vpop.f32.mrb[0].mxu0
      %v1708 = vadd.f32 0.0, %v1707
      %v1709 = vpop.f32.mrb[0].mxu0
      %1710 = vmatprep.mubr.bf16.mxu0 0
      %1711 = vmatmul.mubr.bf16.gmra.mrb[0].mxu0 %v1492
      %v1712 = vpop.f32.mrb[0].mxu0
      %v1713 = vadd.f32 0.0, %v1712
      %v1714 = vpop.f32.mrb[0].mxu0
      %v1715 = vpop.f32.mrb[0].mxu0
      %v1716 = vadd.f32 0.0, %v1715
      %v1717 = vpop.f32.mrb[0].mxu0
      %1718 = vmatprep.mubr.bf16.mxu0 0
      %1719 = vmatmul.mubr.bf16.gmra.mrb[0].mxu0 %v1580
      %v1720 = vpop.f32.mrb[0].mxu0
      %v1721 = vadd.f32 0.0, %v1720
      %v1722 = vpop.f32.mrb[0].mxu0
      %v1723 = vpop.f32.mrb[0].mxu0
      %v1724 = vadd.f32 0.0, %v1723
      %v1725 = vpop.f32.mrb[0].mxu0
      %1726 = vmatprep.mubr.bf16.mxu0 0
      %1727 = vmatmul.mubr.bf16.gmra.mrb[0].mxu0 %v1668
      %v1728 = vpop.f32.mrb[0].mxu0
      %v1729 = vadd.f32 0.0, %v1728
      %v1730 = vpop.f32.mrb[0].mxu0
      %v1731 = vpop.f32.mrb[0].mxu0
      %v1732 = vadd.f32 0.0, %v1731
      %v1733 = vpop.f32.mrb[0].mxu0
      %1734 = vdwg.mxu0
      %v1735 = vadd.f32 %v1647, %v1705
      %v1736 = vadd.f32 %v1648, %v1708
      %v1737 = vadd.f32 %v1649, %v1713
      %v1738 = vadd.f32 %v1650, %v1716
      %v1739 = vadd.f32 %v1651, %v1721
      %v1740 = vadd.f32 %v1652, %v1724
      %v1741 = vadd.f32 %v1653, %v1729
      %v1742 = vadd.f32 %v1654, %v1732
      %vm1743 = vcmask 523264
      %v1744 = vsel %vm1743, %v1735, 0.0
      %v1745 = vsel %vm1743, %v1736, 0.0
      %v1746 = vadd.f32 %v1744, %v1745
      %v1747 = vsel %vm1743, %v1737, 0.0
      %v1748 = vadd.f32 %v1746, %v1747
      %v1749 = vsel %vm1743, %v1738, 0.0
      %v1750 = vadd.f32 %v1748, %v1749
      %v1751 = vsel %vm1743, %v1739, 0.0
      %v1752 = vadd.f32 %v1750, %v1751
      %v1753 = vsel %vm1743, %v1740, 0.0
      %v1754 = vadd.f32 %v1752, %v1753
      %v1755 = vsel %vm1743, %v1741, 0.0
      %v1756 = vadd.f32 %v1754, %v1755
      %v1757 = vsel %vm1743, %v1742, 0.0
      %v1758 = vadd.f32 %v1756, %v1757
      %v1759 = vrot.slane %v1758, 4
      %v1760 = vadd.f32 %v1758, %v1759
      %v1761 = vrot.slane %v1760, 2
      %v1762 = vadd.f32 %v1760, %v1761
      %v1763 = vrot.slane %v1762, 1
      %v1764 = vadd.f32 %v1762, %v1763
      %vm1765 = vcmask 516096
      %1766 = vst.msk [vmem:[%s612] sm:$0x1] %vm1765, %v1764
      %v1767 = vmul.f32 %v1735, %v1735
      %v1768 = vmul.f32 %v1736, %v1736
      %v1769 = vmul.f32 %v1737, %v1737
      %v1770 = vmul.f32 %v1738, %v1738
      %v1771 = vmul.f32 %v1739, %v1739
      %v1772 = vmul.f32 %v1740, %v1740
      %v1773 = vmul.f32 %v1741, %v1741
      %v1774 = vmul.f32 %v1742, %v1742
      %v1775 = vsel %vm1743, %v1767, 0.0
      %v1776 = vsel %vm1743, %v1768, 0.0
      %v1777 = vadd.f32 %v1775, %v1776
      %v1778 = vsel %vm1743, %v1769, 0.0
      %v1779 = vadd.f32 %v1777, %v1778
      %v1780 = vsel %vm1743, %v1770, 0.0
      %v1781 = vadd.f32 %v1779, %v1780
      %v1782 = vsel %vm1743, %v1771, 0.0
      %v1783 = vadd.f32 %v1781, %v1782
      %v1784 = vsel %vm1743, %v1772, 0.0
      %v1785 = vadd.f32 %v1783, %v1784
      %v1786 = vsel %vm1743, %v1773, 0.0
      %v1787 = vadd.f32 %v1785, %v1786
      %v1788 = vsel %vm1743, %v1774, 0.0
      %v1789 = vadd.f32 %v1787, %v1788
      %v1790 = vrot.slane %v1789, 4
      %v1791 = vadd.f32 %v1789, %v1790
      %v1792 = vrot.slane %v1791, 2
      %v1793 = vadd.f32 %v1791, %v1792
      %v1794 = vrot.slane %v1793, 1
      %v1795 = vadd.f32 %v1793, %v1794
      %1796 = vst.msk [vmem:[%s619] sm:$0x1] %vm1765, %v1795
      %v1797 = vpack.c.bf16 %v1736, %v1735
      %v1798 = vpack.c.bf16 %v1738, %v1737
      %v1799 = vpack.c.bf16 %v1740, %v1739
      %v1800 = vpack.c.bf16 %v1742, %v1741
      %v1805 = vunpack.c.l.b16 %v1797
      %v1806 = vunpack.c.h.b16 %v1797
      %v1807 = vunpack.c.l.b16 %v1798
      %v1808 = vunpack.c.h.b16 %v1798
      %v1809 = vunpack.c.l.b16 %v1799
      %v1810 = vunpack.c.h.b16 %v1799
      %v1811 = vunpack.c.l.b16 %v1800
      %v1812 = vunpack.c.h.b16 %v1800
      %v1813 = vpack.c.b16 %v1805, %v1805
      %v1814 = vpack.c.b16 %v1806, %v1806
      %v1815 = vpack.c.b16 %v1807, %v1807
      %v1816 = vpack.c.b16 %v1808, %v1808
      %v1817 = vpack.c.b16 %v1809, %v1809
      %v1818 = vpack.c.b16 %v1810, %v1810
      %v1819 = vpack.c.b16 %v1811, %v1811
      %v1820 = vpack.c.b16 %v1812, %v1812
      %vm1829 = vcmask 519168
      %1830 = vst.msk [vmem:[%s604] sm:$0xf] %vm1829, %v1813
      %1831 = vst.msk [vmem:[%s604 + $0x4] sm:$0xf] %vm1829, %v1814
      %1832 = vst.msk [vmem:[%s604 + $0x8] sm:$0xf] %vm1829, %v1815
      %1833 = vst.msk [vmem:[%s604 + $0xc] sm:$0xf] %vm1829, %v1816
      %1834 = vst.msk [vmem:[%s604 + $0x10] sm:$0xf] %vm1829, %v1817
      %1835 = vst.msk [vmem:[%s604 + $0x14] sm:$0xf] %vm1829, %v1818
      %1836 = vst.msk [vmem:[%s604 + $0x18] sm:$0xf] %vm1829, %v1819
      %1837 = vst.msk [vmem:[%s604 + $0x1c] sm:$0xf] %vm1829, %v1820
      %s1838 = smul.u32 4, %s28
      %p1839 = scmp.lt.s32.totalorder %s27, 1
      %s1840 = scalar_select %p1839, %s27, 1
      %p1841 = scmp.lt.s32.totalorder %s1838, 15
      %s1842 = scalar_select %p1841, %s1838, 15
      %s1843 = smul.addr %s1842, 2
      %s1844 = smul.addr %s1840, 32
      %s1845 = sadd.s32 %s1843, %s1844
      %s1846 = smul.addr %s1845, 4
      %s1847 = scalar_lea.vmem %s9, %s1846
      %p1848 = scmp.lt.s32.totalorder %s27, 1
      %s1849 = scalar_select %p1848, %s27, 1
      %p1850 = scmp.lt.s32.totalorder %s28, 3
      %s1851 = scalar_select %p1850, %s28, 3
      %s1852 = smul.addr %s1849, 4
      %s1853 = sadd.s32 %s1851, %s1852
      %s1854 = scalar_lea.vmem %s10, %s1853
      %p1855 = scmp.lt.s32.totalorder %s27, 1
      %s1856 = scalar_select %p1855, %s27, 1
      %p1857 = scmp.lt.s32.totalorder %s28, 3
      %s1858 = scalar_select %p1857, %s28, 3
      %s1859 = smul.addr %s1856, 4
      %s1860 = sadd.s32 %s1858, %s1859
      %s1861 = scalar_lea.vmem %s11, %s1860
      // Predicated region
      $region57: #{resnet_block_forward.4} parent=55 // pred_check
        %p1862 = pneg %p291
      $region58: #{resnet_block_forward.4} parent=55 // pred_check_branch
        %1864 = sbr.rel (%p1862) target = $region60
      $region59: #{resnet_block_forward.4} parent=55 // pred_region
        %s1865 = smul.u32 4, %s28
      $region60: #{resnet_block_forward.4} parent=55 // pred_fallthru
        _
      // Predicated region
      $region61: #{resnet_block_forward.4} parent=55 // pred_check
        %p1866 = pneg %p319
      $region62: #{resnet_block_forward.4} parent=55 // pred_check_branch
        %1868 = sbr.rel (%p1866) target = $region64
      $region63: #{resnet_block_forward.4} parent=55 // pred_region
        _
      $region64: #{resnet_block_forward.4} parent=55 // pred_fallthru
        _
      // Predicated region
      $region65: #{resnet_block_forward.4} parent=55 // pred_check
        %p1869 = pneg %p347
      $region66: #{resnet_block_forward.4} parent=55 // pred_check_branch
        %1871 = sbr.rel (%p1869) target = $region68
      $region67: #{resnet_block_forward.4} parent=55 // pred_region
        _
      $region68: #{resnet_block_forward.4} parent=55 // pred_fallthru
        _
    $region56: #{resnet_block_forward.4} parent=5 // pred_fallthru
      _
    %p1872 = scmp.le.s32.totalorder 2, %s18
    // Predicated region
    $region69: #{resnet_block_forward.4} parent=5 // pred_check
      %p1873 = pneg %p1872
    $region70: #{resnet_block_forward.4} parent=5 // pred_check_branch
      %1875 = sbr.rel (%p1873) target = $region72
    $region71: #{resnet_block_forward.4} parent=5 // pred_region
      %s1876 = ssub.s32 %s18, 2
      // Predicated region
      $region73: #{resnet_block_forward.4} parent=71 // pred_check
        %p1877 = pneg %p297
      $region74: #{resnet_block_forward.4} parent=71 // pred_check_branch
        %1879 = sbr.rel (%p1877) target = $region76
      $region75: #{resnet_block_forward.4} parent=71 // pred_region
        %s1880 = smul.u32 4, %s30
        %p1881 = scmp.lt.s32.totalorder %s29, 1
        %s1882 = scalar_select %p1881, %s29, 1
        %p1883 = scmp.lt.s32.totalorder %s1880, 15
        %s1884 = scalar_select %p1883, %s1880, 15
        %s1885 = smul.addr %s1884, 2
        %s1886 = smul.addr %s1882, 32
        %s1887 = sadd.s32 %s1885, %s1886
        %s1888 = smul.addr %s1887, 4
        %s1889 = scalar_lea.vmem %s9, %s1888
      $region76: #{resnet_block_forward.4} parent=71 // pred_fallthru
        _
      // Predicated region
      $region77: #{resnet_block_forward.4} parent=71 // pred_check
        %p1890 = pneg %p325
      $region78: #{resnet_block_forward.4} parent=71 // pred_check_branch
        %1892 = sbr.rel (%p1890) target = $region80
      $region79: #{resnet_block_forward.4} parent=71 // pred_region
        %p1893 = scmp.lt.s32.totalorder %s29, 1
        %s1894 = scalar_select %p1893, %s29, 1
        %p1895 = scmp.lt.s32.totalorder %s30, 3
        %s1896 = scalar_select %p1895, %s30, 3
        %s1897 = smul.addr %s1894, 4
        %s1898 = sadd.s32 %s1896, %s1897
        %s1899 = scalar_lea.vmem %s10, %s1898
      $region80: #{resnet_block_forward.4} parent=71 // pred_fallthru
        _
      // Predicated region
      $region81: #{resnet_block_forward.4} parent=71 // pred_check
        %p1900 = pneg %p353
      $region82: #{resnet_block_forward.4} parent=71 // pred_check_branch
        %1902 = sbr.rel (%p1900) target = $region84
      $region83: #{resnet_block_forward.4} parent=71 // pred_region
        %p1903 = scmp.lt.s32.totalorder %s29, 1
        %s1904 = scalar_select %p1903, %s29, 1
        %p1905 = scmp.lt.s32.totalorder %s30, 3
        %s1906 = scalar_select %p1905, %s30, 3
        %s1907 = smul.addr %s1904, 4
        %s1908 = sadd.s32 %s1906, %s1907
        %s1909 = scalar_lea.vmem %s11, %s1908
      $region84: #{resnet_block_forward.4} parent=71 // pred_fallthru
        _
    $region72: #{resnet_block_forward.4} parent=5 // pred_fallthru
      _
  $region6: #{resnet_block_forward.4} parent=0 // loop_footer
    %s22 = sadd.s32 1, %s18
  $region7: #{resnet_block_forward.4} parent=0 // loop_footer_branch
    %17 = sbr.rel target = $region3
  $region8: #{resnet_block_forward.4} parent=0 // loop_exit
    _

// kernel: resnet_block_forward.5
$region0: #{resnet_block_forward.5}
  #allocation0 [shape = 'u32[]', space=smem, size = 0x4, offset = 0x4, fixed_abs, tag = 'smem constant byte address 0x4 - core index']
  #allocation1 [shape = 'u32[144,128]{1,0:T(1,128)}', space=vmem, size = 0x12000, scoped, tag = 'internal scratch']
  %s0 = inlined_call_operand.vmem [shape: bf16[2,16,16,64], index: 0, kind: input, shape index: {}, may-alias: {0,1,2}]
  %s1 = inlined_call_operand.vmem [shape: bf16[2,16,16,64], index: 1, kind: input, shape index: {}, may-alias: {0,1,2}]
  %s2 = inlined_call_operand.vmem [shape: bf16[2,16,16,64], index: 2, kind: input, shape index: {}, may-alias: {0,1,2}]
  %s3 = inlined_call_operand.vmem [shape: f32[2,1,64], index: 3, kind: input, shape index: {}]
  %s4 = inlined_call_operand.vmem [shape: f32[2,1,64], index: 4, kind: input, shape index: {}]
  %s5 = inlined_call_operand.vmem [shape: f32[1,1,64], index: 5, kind: input, shape index: {}]
  %s6 = inlined_call_operand.vmem [shape: f32[1,1,64], index: 6, kind: input, shape index: {}]
  %s7 = inlined_call_operand.vmem [shape: bf16[3,3,64,64], index: 7, kind: input, shape index: {}]
  %s8 = inlined_call_operand.vmem [shape: f32[1,1,64], index: 8, kind: input, shape index: {}]
  %s9 = inlined_call_operand.vmem [shape: bf16[2,16,16,32], index: 9, kind: input, shape index: {}]
  %s10 = inlined_call_operand.vmem [shape: bf16[32,64], index: 10, kind: input, shape index: {}]
  %s11 = inlined_call_operand.vmem [shape: f32[1,1,64], index: 11, kind: input, shape index: {}]
  %s12 = inlined_call_operand.hbm [shape: f32[2,16,16,64], index: 12, kind: output, shape index: {}]
  %s13 = sld [smem:[#allocation0]]
  $region81: #{resnet_block_forward.5} parent=0
    _
  %s15 = ssub.s32 1, %s13
  %s16 = scalar_select 0, %s15, %s13
  $region1: #{resnet_block_forward.5} parent=0
    #allocation2 [shape = 'u8[65536]{0}', space=vmem, size = 0x10000, scoped, tag = 'output window, operand 0']
    #allocation3 [shape = 's32[2]{0}', space=sflag, size = 0x8, scoped, tag = 'scoped memory for resnet_block_forward.5']
    %17 = vsyncpa [#allocation3], 0
    %s18 = scalar_lea.sflag [#allocation3], 1
    %19 = vsyncpa %s18, 0
    loop: start=0, step=1, limit=10
    $region2: #{resnet_block_forward.5} parent=1 // loop_pre_header
      _
    $region3: #{resnet_block_forward.5} parent=1 // loop_header
      %s21 = sphi 0, %s25
      %p22 = scmp.ge.s32.totalorder %s21, 10
      %s28 = sphi 0, %s40
      %s29 = sphi 0, %s36
      %s30 = sphi 0, %s28
      %s31 = sphi 0, %s29
      %s32 = sphi 0, %s30
      %s33 = sphi 0, %s31
      %s45 = sphi 0, %s47
      %s48 = sphi 0, %s45
      %s49 = sphi 0, %s48
      %s65 = sphi 0, %s49
      %s81 = sphi 0, %s83
      %s84 = sphi 0, %s81
      %s85 = sphi 0, %s84
      %s101 = sphi 0, %s85
      %s117 = sphi 0, %s119
      %s120 = sphi 0, %s117
      %s121 = sphi 0, %s120
      %s137 = sphi 0, %s121
      %s143 = sphi 0, %s145
      %s146 = sphi 0, %s143
      %s147 = sphi 0, %s146
      %s163 = sphi 0, %s147
      %s169 = sphi 0, %s171
      %s172 = sphi 0, %s169
      %s173 = sphi 0, %s172
      %s189 = sphi 0, %s173
      %s193 = sphi 0, %s193
      %s195 = sphi 0, %s193
      %s196 = sphi 0, %s195
      %s210 = sphi 0, %s196
      %s214 = sphi 0, %s214
      %s216 = sphi 0, %s214
      %s217 = sphi 0, %s216
      %s231 = sphi 0, %s217
      %s235 = sphi 0, %s235
      %s237 = sphi 0, %s235
      %s238 = sphi 0, %s237
      %s252 = sphi 0, %s238
      %s256 = sphi 0, %s256
      %s258 = sphi 0, %s256
      %s259 = sphi 0, %s258
      %s273 = sphi 0, %s259
      %s281 = sphi 0, %s283
      %s284 = sphi 0, %s281
      %s285 = sphi 0, %s284
      %s301 = sphi 0, %s285
      %s305 = sphi 0, %s305
      %s307 = sphi 0, %s305
      %s308 = sphi 0, %s307
      %s322 = sphi 0, %s308
      %s326 = sphi 0, %s326
      %s328 = sphi 0, %s326
      %s329 = sphi 0, %s328
      %s343 = sphi 0, %s329
      %s351 = sphi 0, %s353
      %s354 = sphi 0, %s351
      %s355 = sphi 0, %s354
      %s371 = sphi 0, %s355
    $region4: #{resnet_block_forward.5} parent=1 // loop_header_branch
      %24 = sbr.rel (%p22) target = $region8
    $region5: #{resnet_block_forward.5} parent=1 // loop_body
      %s26 = ssub.s32 %s21, 1
      %s27 = ssub.s32 %s21, 2
      %s34 = sadd.s32 1, %s29
      %p35 = scmp.ge.s32.totalorder %s34, 4
      %s36 = scalar_select %p35, 0, %s34
      %s37 = sadd.s32 1, %s28
      %s38 = scalar_select %p35, %s37, %s28
      %p39 = scmp.ge.s32.totalorder %s38, 2
      %s40 = scalar_select %p39, 0, %s38
      %s41 = ssub.s32 %s28, %s40
      %s42 = ssub.s32 %s29, %s36
      %s43 = sor.u32 %s41, %s42
      %p44 = scmp.eq.s32.totalorder %s43, 0
      %s46 = sadd.s32 %s45, 1
      %s47 = scalar_select %p44, %s45, %s46
      %p50 = pneg %p44
      %p51 = scmp.eq.s32.totalorder %s21, 7
      %p52 = por %p50, %p51
      %p53 = scmp.ne.s32.totalorder %s45, %s48
      %p54 = scmp.eq.s32.totalorder %s21, 0
      %p55 = por %p53, %p54
      %p56 = scmp.ne.s32.totalorder %s45, %s48
      %p57 = scmp.eq.s32.totalorder %s26, 7
      %p58 = por %p56, %p57
      %p59 = scmp.ne.s32.totalorder %s48, %s49
      %p60 = scmp.eq.s32.totalorder %s26, 0
      %p61 = por %p59, %p60
      %p62 = scmp.ne.s32.totalorder %s48, %s49
      %p63 = scmp.eq.s32.totalorder %s27, 7
      %p64 = por %p62, %p63
      %p66 = scmp.ne.s32.totalorder %s49, %s65
      %p67 = scmp.eq.s32.totalorder %s27, 0
      %p68 = por %p66, %p67
      %s69 = smul.u32 %s29, 4
      %s70 = ssub.s32 %s69, 1
      %p71 = scmp.gt.s32.totalorder %s70, 0
      %s72 = scalar_select %p71, %s70, 0
      %s73 = smul.u32 %s36, 4
      %s74 = ssub.s32 %s73, 1
      %p75 = scmp.gt.s32.totalorder %s74, 0
      %s76 = scalar_select %p75, %s74, 0
      %s77 = ssub.s32 %s28, %s40
      %s78 = ssub.s32 %s72, %s76
      %s79 = sor.u32 %s77, %s78
      %p80 = scmp.eq.s32.totalorder %s79, 0
      %s82 = sadd.s32 %s81, 1
      %s83 = scalar_select %p80, %s81, %s82
      %p86 = pneg %p80
      %p87 = scmp.eq.s32.totalorder %s21, 7
      %p88 = por %p86, %p87
      %p89 = scmp.ne.s32.totalorder %s81, %s84
      %p90 = scmp.eq.s32.totalorder %s21, 0
      %p91 = por %p89, %p90
      %p92 = scmp.ne.s32.totalorder %s81, %s84
      %p93 = scmp.eq.s32.totalorder %s26, 7
      %p94 = por %p92, %p93
      %p95 = scmp.ne.s32.totalorder %s84, %s85
      %p96 = scmp.eq.s32.totalorder %s26, 0
      %p97 = por %p95, %p96
      %p98 = scmp.ne.s32.totalorder %s84, %s85
      %p99 = scmp.eq.s32.totalorder %s27, 7
      %p100 = por %p98, %p99
      %p102 = scmp.ne.s32.totalorder %s85, %s101
      %p103 = scmp.eq.s32.totalorder %s27, 0
      %p104 = por %p102, %p103
      %s105 = smul.u32 %s29, 4
      %s106 = sadd.s32 %s105, 4
      %p107 = scmp.lt.s32.totalorder %s106, 15
      %s108 = scalar_select %p107, %s106, 15
      %s109 = smul.u32 %s36, 4
      %s110 = sadd.s32 %s109, 4
      %p111 = scmp.lt.s32.totalorder %s110, 15
      %s112 = scalar_select %p111, %s110, 15
      %s113 = ssub.s32 %s28, %s40
      %s114 = ssub.s32 %s108, %s112
      %s115 = sor.u32 %s113, %s114
      %p116 = scmp.eq.s32.totalorder %s115, 0
      %s118 = sadd.s32 %s117, 1
      %s119 = scalar_select %p116, %s117, %s118
      %p122 = pneg %p116
      %p123 = scmp.eq.s32.totalorder %s21, 7
      %p124 = por %p122, %p123
      %p125 = scmp.ne.s32.totalorder %s117, %s120
      %p126 = scmp.eq.s32.totalorder %s21, 0
      %p127 = por %p125, %p126
      %p128 = scmp.ne.s32.totalorder %s117, %s120
      %p129 = scmp.eq.s32.totalorder %s26, 7
      %p130 = por %p128, %p129
      %p131 = scmp.ne.s32.totalorder %s120, %s121
      %p132 = scmp.eq.s32.totalorder %s26, 0
      %p133 = por %p131, %p132
      %p134 = scmp.ne.s32.totalorder %s120, %s121
      %p135 = scmp.eq.s32.totalorder %s27, 7
      %p136 = por %p134, %p135
      %p138 = scmp.ne.s32.totalorder %s121, %s137
      %p139 = scmp.eq.s32.totalorder %s27, 0
      %p140 = por %p138, %p139
      %s141 = ssub.s32 %s28, %s40
      %p142 = scmp.eq.s32.totalorder %s141, 0
      %s144 = sadd.s32 %s143, 1
      %s145 = scalar_select %p142, %s143, %s144
      %p148 = pneg %p142
      %p149 = scmp.eq.s32.totalorder %s21, 7
      %p150 = por %p148, %p149
      %p151 = scmp.ne.s32.totalorder %s143, %s146
      %p152 = scmp.eq.s32.totalorder %s21, 0
      %p153 = por %p151, %p152
      %p154 = scmp.ne.s32.totalorder %s143, %s146
      %p155 = scmp.eq.s32.totalorder %s26, 7
      %p156 = por %p154, %p155
      %p157 = scmp.ne.s32.totalorder %s146, %s147
      %p158 = scmp.eq.s32.totalorder %s26, 0
      %p159 = por %p157, %p158
      %p160 = scmp.ne.s32.totalorder %s146, %s147
      %p161 = scmp.eq.s32.totalorder %s27, 7
      %p162 = por %p160, %p161
      %p164 = scmp.ne.s32.totalorder %s147, %s163
      %p165 = scmp.eq.s32.totalorder %s27, 0
      %p166 = por %p164, %p165
      %s167 = ssub.s32 %s28, %s40
      %p168 = scmp.eq.s32.totalorder %s167, 0
      %s170 = sadd.s32 %s169, 1
      %s171 = scalar_select %p168, %s169, %s170
      %p174 = pneg %p168
      %p175 = scmp.eq.s32.totalorder %s21, 7
      %p176 = por %p174, %p175
      %p177 = scmp.ne.s32.totalorder %s169, %s172
      %p178 = scmp.eq.s32.totalorder %s21, 0
      %p179 = por %p177, %p178
      %p180 = scmp.ne.s32.totalorder %s169, %s172
      %p181 = scmp.eq.s32.totalorder %s26, 7
      %p182 = por %p180, %p181
      %p183 = scmp.ne.s32.totalorder %s172, %s173
      %p184 = scmp.eq.s32.totalorder %s26, 0
      %p185 = por %p183, %p184
      %p186 = scmp.ne.s32.totalorder %s172, %s173
      %p187 = scmp.eq.s32.totalorder %s27, 7
      %p188 = por %p186, %p187
      %p190 = scmp.ne.s32.totalorder %s173, %s189
      %p191 = scmp.eq.s32.totalorder %s27, 0
      %p192 = por %p190, %p191
      %s194 = sadd.s32 %s193, 1
      %p197 = scmp.eq.s32.totalorder %s21, 7
      %p198 = scmp.ne.s32.totalorder %s193, %s195
      %p199 = scmp.eq.s32.totalorder %s21, 0
      %p200 = por %p198, %p199
      %p201 = scmp.ne.s32.totalorder %s193, %s195
      %p202 = scmp.eq.s32.totalorder %s26, 7
      %p203 = por %p201, %p202
      %p204 = scmp.ne.s32.totalorder %s195, %s196
      %p205 = scmp.eq.s32.totalorder %s26, 0
      %p206 = por %p204, %p205
      %p207 = scmp.ne.s32.totalorder %s195, %s196
      %p208 = scmp.eq.s32.totalorder %s27, 7
      %p209 = por %p207, %p208
      %p211 = scmp.ne.s32.totalorder %s196, %s210
      %p212 = scmp.eq.s32.totalorder %s27, 0
      %p213 = por %p211, %p212
      %s215 = sadd.s32 %s214, 1
      %p218 = scmp.eq.s32.totalorder %s21, 7
      %p219 = scmp.ne.s32.totalorder %s214, %s216
      %p220 = scmp.eq.s32.totalorder %s21, 0
      %p221 = por %p219, %p220
      %p222 = scmp.ne.s32.totalorder %s214, %s216
      %p223 = scmp.eq.s32.totalorder %s26, 7
      %p224 = por %p222, %p223
      %p225 = scmp.ne.s32.totalorder %s216, %s217
      %p226 = scmp.eq.s32.totalorder %s26, 0
      %p227 = por %p225, %p226
      %p228 = scmp.ne.s32.totalorder %s216, %s217
      %p229 = scmp.eq.s32.totalorder %s27, 7
      %p230 = por %p228, %p229
      %p232 = scmp.ne.s32.totalorder %s217, %s231
      %p233 = scmp.eq.s32.totalorder %s27, 0
      %p234 = por %p232, %p233
      %s236 = sadd.s32 %s235, 1
      %p239 = scmp.eq.s32.totalorder %s21, 7
      %p240 = scmp.ne.s32.totalorder %s235, %s237
      %p241 = scmp.eq.s32.totalorder %s21, 0
      %p242 = por %p240, %p241
      %p243 = scmp.ne.s32.totalorder %s235, %s237
      %p244 = scmp.eq.s32.totalorder %s26, 7
      %p245 = por %p243, %p244
      %p246 = scmp.ne.s32.totalorder %s237, %s238
      %p247 = scmp.eq.s32.totalorder %s26, 0
      %p248 = por %p246, %p247
      %p249 = scmp.ne.s32.totalorder %s237, %s238
      %p250 = scmp.eq.s32.totalorder %s27, 7
      %p251 = por %p249, %p250
      %p253 = scmp.ne.s32.totalorder %s238, %s252
      %p254 = scmp.eq.s32.totalorder %s27, 0
      %p255 = por %p253, %p254
      %s257 = sadd.s32 %s256, 1
      %p260 = scmp.eq.s32.totalorder %s21, 7
      %p261 = scmp.ne.s32.totalorder %s256, %s258
      %p262 = scmp.eq.s32.totalorder %s21, 0
      %p263 = por %p261, %p262
      %p264 = scmp.ne.s32.totalorder %s256, %s258
      %p265 = scmp.eq.s32.totalorder %s26, 7
      %p266 = por %p264, %p265
      %p267 = scmp.ne.s32.totalorder %s258, %s259
      %p268 = scmp.eq.s32.totalorder %s26, 0
      %p269 = por %p267, %p268
      %p270 = scmp.ne.s32.totalorder %s258, %s259
      %p271 = scmp.eq.s32.totalorder %s27, 7
      %p272 = por %p270, %p271
      %p274 = scmp.ne.s32.totalorder %s259, %s273
      %p275 = scmp.eq.s32.totalorder %s27, 0
      %p276 = por %p274, %p275
      %s277 = ssub.s32 %s28, %s40
      %s278 = ssub.s32 %s29, %s36
      %s279 = sor.u32 %s277, %s278
      %p280 = scmp.eq.s32.totalorder %s279, 0
      %s282 = sadd.s32 %s281, 1
      %s283 = scalar_select %p280, %s281, %s282
      %p286 = pneg %p280
      %p287 = scmp.eq.s32.totalorder %s21, 7
      %p288 = por %p286, %p287
      %p289 = scmp.ne.s32.totalorder %s281, %s284
      %p290 = scmp.eq.s32.totalorder %s21, 0
      %p291 = por %p289, %p290
      %p292 = scmp.ne.s32.totalorder %s281, %s284
      %p293 = scmp.eq.s32.totalorder %s26, 7
      %p294 = por %p292, %p293
      %p295 = scmp.ne.s32.totalorder %s284, %s285
      %p296 = scmp.eq.s32.totalorder %s26, 0
      %p297 = por %p295, %p296
      %p298 = scmp.ne.s32.totalorder %s284, %s285
      %p299 = scmp.eq.s32.totalorder %s27, 7
      %p300 = por %p298, %p299
      %p302 = scmp.ne.s32.totalorder %s285, %s301
      %p303 = scmp.eq.s32.totalorder %s27, 0
      %p304 = por %p302, %p303
      %s306 = sadd.s32 %s305, 1
      %p309 = scmp.eq.s32.totalorder %s21, 7
      %p310 = scmp.ne.s32.totalorder %s305, %s307
      %p311 = scmp.eq.s32.totalorder %s21, 0
      %p312 = por %p310, %p311
      %p313 = scmp.ne.s32.totalorder %s305, %s307
      %p314 = scmp.eq.s32.totalorder %s26, 7
      %p315 = por %p313, %p314
      %p316 = scmp.ne.s32.totalorder %s307, %s308
      %p317 = scmp.eq.s32.totalorder %s26, 0
      %p318 = por %p316, %p317
      %p319 = scmp.ne.s32.totalorder %s307, %s308
      %p320 = scmp.eq.s32.totalorder %s27, 7
      %p321 = por %p319, %p320
      %p323 = scmp.ne.s32.totalorder %s308, %s322
      %p324 = scmp.eq.s32.totalorder %s27, 0
      %p325 = por %p323, %p324
      %s327 = sadd.s32 %s326, 1
      %p330 = scmp.eq.s32.totalorder %s21, 7
      %p331 = scmp.ne.s32.totalorder %s326, %s328
      %p332 = scmp.eq.s32.totalorder %s21, 0
      %p333 = por %p331, %p332
      %p334 = scmp.ne.s32.totalorder %s326, %s328
      %p335 = scmp.eq.s32.totalorder %s26, 7
      %p336 = por %p334, %p335
      %p337 = scmp.ne.s32.totalorder %s328, %s329
      %p338 = scmp.eq.s32.totalorder %s26, 0
      %p339 = por %p337, %p338
      %p340 = scmp.ne.s32.totalorder %s328, %s329
      %p341 = scmp.eq.s32.totalorder %s27, 7
      %p342 = por %p340, %p341
      %p344 = scmp.ne.s32.totalorder %s329, %s343
      %p345 = scmp.eq.s32.totalorder %s27, 0
      %p346 = por %p344, %p345
      %s347 = ssub.s32 %s28, %s40
      %s348 = ssub.s32 %s29, %s36
      %s349 = sor.u32 %s347, %s348
      %p350 = scmp.eq.s32.totalorder %s349, 0
      %s352 = sadd.s32 %s351, 1
      %s353 = scalar_select %p350, %s351, %s352
      %p356 = pneg %p350
      %p357 = scmp.eq.s32.totalorder %s21, 7
      %p358 = por %p356, %p357
      %p359 = scmp.ne.s32.totalorder %s351, %s354
      %p360 = scmp.eq.s32.totalorder %s21, 0
      %p361 = por %p359, %p360
      %p362 = scmp.ne.s32.totalorder %s351, %s354
      %p363 = scmp.eq.s32.totalorder %s26, 7
      %p364 = por %p362, %p363
      %p365 = scmp.ne.s32.totalorder %s354, %s355
      %p366 = scmp.eq.s32.totalorder %s26, 0
      %p367 = por %p365, %p366
      %p368 = scmp.ne.s32.totalorder %s354, %s355
      %p369 = scmp.eq.s32.totalorder %s27, 7
      %p370 = por %p368, %p369
      %p372 = scmp.ne.s32.totalorder %s355, %s371
      %p373 = scmp.eq.s32.totalorder %s27, 0
      %p374 = por %p372, %p373
      %p375 = scmp.le.s32.totalorder 1, %s21
      %p376 = scmp.lt.s32.totalorder %s21, 9
      %p377 = pnand %p375, %p376
      %p378 = pneg %p377
      // Predicated region
      $region9: #{resnet_block_forward.5} parent=5 // pred_check
        _
      $region10: #{resnet_block_forward.5} parent=5 // pred_check_branch
        %380 = sbr.rel (%p377) target = $region12
      $region11: #{resnet_block_forward.5} parent=5 // pred_region
        %s381 = ssub.s32 %s21, 1
        // Predicated region
        $region13: #{resnet_block_forward.5} parent=11 // pred_check
          %p382 = pneg %p206
        $region14: #{resnet_block_forward.5} parent=11 // pred_check_branch
          %384 = sbr.rel (%p382) target = $region16
        $region15: #{resnet_block_forward.5} parent=11 // pred_region
          _
        $region16: #{resnet_block_forward.5} parent=11 // pred_fallthru
          _
        // Predicated region
        $region17: #{resnet_block_forward.5} parent=11 // pred_check
          %p385 = pneg %p227
        $region18: #{resnet_block_forward.5} parent=11 // pred_check_branch
          %387 = sbr.rel (%p385) target = $region20
        $region19: #{resnet_block_forward.5} parent=11 // pred_region
          _
        $region20: #{resnet_block_forward.5} parent=11 // pred_fallthru
          _
        // Predicated region
        $region21: #{resnet_block_forward.5} parent=11 // pred_check
          %p388 = pneg %p248
        $region22: #{resnet_block_forward.5} parent=11 // pred_check_branch
          %390 = sbr.rel (%p388) target = $region24
        $region23: #{resnet_block_forward.5} parent=11 // pred_region
          _
        $region24: #{resnet_block_forward.5} parent=11 // pred_fallthru
          _
        // Predicated region
        $region25: #{resnet_block_forward.5} parent=11 // pred_check
          %p391 = pneg %p269
        $region26: #{resnet_block_forward.5} parent=11 // pred_check_branch
          %393 = sbr.rel (%p391) target = $region28
        $region27: #{resnet_block_forward.5} parent=11 // pred_region
          _
        $region28: #{resnet_block_forward.5} parent=11 // pred_fallthru
          _
        // Predicated region
        $region29: #{resnet_block_forward.5} parent=11 // pred_check
          %p394 = pneg %p318
        $region30: #{resnet_block_forward.5} parent=11 // pred_check_branch
          %396 = sbr.rel (%p394) target = $region32
        $region31: #{resnet_block_forward.5} parent=11 // pred_region
          _
        $region32: #{resnet_block_forward.5} parent=11 // pred_fallthru
          _
        // Predicated region
        $region33: #{resnet_block_forward.5} parent=11 // pred_check
          %p397 = pneg %p339
        $region34: #{resnet_block_forward.5} parent=11 // pred_check_branch
          %399 = sbr.rel (%p397) target = $region36
        $region35: #{resnet_block_forward.5} parent=11 // pred_region
          _
        $region36: #{resnet_block_forward.5} parent=11 // pred_fallthru
          _
      $region12: #{resnet_block_forward.5} parent=5 // pred_fallthru
        _
      %p400 = scmp.lt.s32.totalorder %s21, 8
      // Predicated region
      $region37: #{resnet_block_forward.5} parent=5 // pred_check
        %p401 = pneg %p400
      $region38: #{resnet_block_forward.5} parent=5 // pred_check_branch
        %403 = sbr.rel (%p401) target = $region40
      $region39: #{resnet_block_forward.5} parent=5 // pred_region
        // Predicated region
        $region41: #{resnet_block_forward.5} parent=39 // pred_check
          %p404 = pneg %p55
        $region42: #{resnet_block_forward.5} parent=39 // pred_check_branch
          %406 = sbr.rel (%p404) target = $region44
        $region43: #{resnet_block_forward.5} parent=39 // pred_region
          %s407 = smul.u32 4, %s29
          %p408 = scmp.lt.s32.totalorder %s28, 1
          %s409 = scalar_select %p408, %s28, 1
          %p410 = scmp.lt.s32.totalorder %s407, 15
          %s411 = scalar_select %p410, %s407, 15
          %s412 = smul.addr %s411, 2
          %s413 = smul.addr %s409, 32
          %s414 = sadd.s32 %s412, %s413
          %s415 = smul.addr %s414, 4
          %s416 = scalar_lea.vmem %s0, %s415
          %s417 = smul.u32 4, %s29
        $region44: #{resnet_block_forward.5} parent=39 // pred_fallthru
          _
        // Predicated region
        $region45: #{resnet_block_forward.5} parent=39 // pred_check
          %p418 = pneg %p91
        $region46: #{resnet_block_forward.5} parent=39 // pred_check_branch
          %420 = sbr.rel (%p418) target = $region48
        $region47: #{resnet_block_forward.5} parent=39 // pred_region
          %s421 = smul.u32 %s29, 4
          %s422 = ssub.s32 %s421, 1
          %p423 = scmp.gt.s32.totalorder %s422, 0
          %s424 = scalar_select %p423, %s422, 0
          %p425 = scmp.lt.s32.totalorder %s28, 1
          %s426 = scalar_select %p425, %s28, 1
          %p427 = scmp.lt.s32.totalorder %s424, 15
          %s428 = scalar_select %p427, %s424, 15
          %s429 = smul.addr %s428, 2
          %s430 = smul.addr %s426, 32
          %s431 = sadd.s32 %s429, %s430
          %s432 = smul.addr %s431, 4
          %s433 = scalar_lea.vmem %s1, %s432
          %s434 = smul.u32 %s29, 4
          %s435 = ssub.s32 %s434, 1
          %p436 = scmp.gt.s32.totalorder %s435, 0
          %s437 = scalar_select %p436, %s435, 0
        $region48: #{resnet_block_forward.5} parent=39 // pred_fallthru
          _
        // Predicated region
        $region49: #{resnet_block_forward.5} parent=39 // pred_check
          %p438 = pneg %p127
        $region50: #{resnet_block_forward.5} parent=39 // pred_check_branch
          %440 = sbr.rel (%p438) target = $region52
        $region51: #{resnet_block_forward.5} parent=39 // pred_region
          %s441 = smul.u32 %s29, 4
          %s442 = sadd.s32 %s441, 4
          %p443 = scmp.lt.s32.totalorder %s442, 15
          %s444 = scalar_select %p443, %s442, 15
          %p445 = scmp.lt.s32.totalorder %s28, 1
          %s446 = scalar_select %p445, %s28, 1
          %p447 = scmp.lt.s32.totalorder %s444, 15
          %s448 = scalar_select %p447, %s444, 15
          %s449 = smul.addr %s448, 2
          %s450 = smul.addr %s446, 32
          %s451 = sadd.s32 %s449, %s450
          %s452 = smul.addr %s451, 4
          %s453 = scalar_lea.vmem %s2, %s452
          %s454 = smul.u32 %s29, 4
          %s455 = sadd.s32 %s454, 4
          %p456 = scmp.lt.s32.totalorder %s455, 15
          %s457 = scalar_select %p456, %s455, 15
        $region52: #{resnet_block_forward.5} parent=39 // pred_fallthru
          _
        // Predicated region
        $region53: #{resnet_block_forward.5} parent=39 // pred_check
          %p458 = pneg %p153
        $region54: #{resnet_block_forward.5} parent=39 // pred_check_branch
          %460 = sbr.rel (%p458) target = $region56
        $region55: #{resnet_block_forward.5} parent=39 // pred_region
          %p461 = scmp.lt.s32.totalorder %s28, 1
          %s462 = scalar_select %p461, %s28, 1
          %s463 = scalar_lea.vmem %s3, %s462
        $region56: #{resnet_block_forward.5} parent=39 // pred_fallthru
          _
        // Predicated region
        $region57: #{resnet_block_forward.5} parent=39 // pred_check
          %p464 = pneg %p179
        $region58: #{resnet_block_forward.5} parent=39 // pred_check_branch
          %466 = sbr.rel (%p464) target = $region60
        $region59: #{resnet_block_forward.5} parent=39 // pred_region
          %p467 = scmp.lt.s32.totalorder %s28, 1
          %s468 = scalar_select %p467, %s28, 1
          %s469 = scalar_lea.vmem %s4, %s468
        $region60: #{resnet_block_forward.5} parent=39 // pred_fallthru
          _
        // Predicated region
        $region61: #{resnet_block_forward.5} parent=39 // pred_check
          %p470 = pneg %p291
        $region62: #{resnet_block_forward.5} parent=39 // pred_check_branch
          %472 = sbr.rel (%p470) target = $region64
        $region63: #{resnet_block_forward.5} parent=39 // pred_region
          %s473 = smul.u32 4, %s29
          %p474 = scmp.lt.s32.totalorder %s28, 1
          %s475 = scalar_select %p474, %s28, 1
          %p476 = scmp.lt.s32.totalorder %s473, 15
          %s477 = scalar_select %p476, %s473, 15
          %s478 = smul.addr %s477, 2
          %s479 = smul.addr %s475, 32
          %s480 = sadd.s32 %s478, %s479
          %s481 = smul.addr %s480, 4
          %s482 = scalar_lea.vmem %s9, %s481
          %s483 = smul.u32 4, %s29
        $region64: #{resnet_block_forward.5} parent=39 // pred_fallthru
          _
      $region40: #{resnet_block_forward.5} parent=5 // pred_fallthru
        _
      %p484 = scmp.le.s32.totalorder 1, %s21
      %p485 = scmp.lt.s32.totalorder %s21, 9
      %p486 = pnand %p484, %p485
      %p487 = pneg %p486
      // Predicated region
      $region65: #{resnet_block_forward.5} parent=5 // pred_check
        _
      $region66: #{resnet_block_forward.5} parent=5 // pred_check_branch
        %489 = sbr.rel (%p486) target = $region68
      $region67: #{resnet_block_forward.5} parent=5 // pred_region
        %s490 = ssub.s32 %s21, 1
        %s491 = smul.u32 4, %s31
        %p492 = scmp.lt.s32.totalorder %s30, 1
        %s493 = scalar_select %p492, %s30, 1
        %p494 = scmp.lt.s32.totalorder %s491, 15
        %s495 = scalar_select %p494, %s491, 15
        %s496 = smul.addr %s495, 2
        %s497 = smul.addr %s493, 32
        %s498 = sadd.s32 %s496, %s497
        %s499 = smul.addr %s498, 4
        %s500 = scalar_lea.vmem %s0, %s499
        %p501 = pneg %p61
        %p502 = pneg %p58
        %s503 = smul.u32 %s31, 4
        %s504 = ssub.s32 %s503, 1
        %p505 = scmp.gt.s32.totalorder %s504, 0
        %s506 = scalar_select %p505, %s504, 0
        %p507 = scmp.lt.s32.totalorder %s30, 1
        %s508 = scalar_select %p507, %s30, 1
        %p509 = scmp.lt.s32.totalorder %s506, 15
        %s510 = scalar_select %p509, %s506, 15
        %s511 = smul.addr %s510, 2
        %s512 = smul.addr %s508, 32
        %s513 = sadd.s32 %s511, %s512
        %s514 = smul.addr %s513, 4
        %s515 = scalar_lea.vmem %s1, %s514
        %p516 = pneg %p97
        %p517 = pneg %p94
        %s518 = smul.u32 %s31, 4
        %s519 = sadd.s32 %s518, 4
        %p520 = scmp.lt.s32.totalorder %s519, 15
        %s521 = scalar_select %p520, %s519, 15
        %p522 = scmp.lt.s32.totalorder %s30, 1
        %s523 = scalar_select %p522, %s30, 1
        %p524 = scmp.lt.s32.totalorder %s521, 15
        %s525 = scalar_select %p524, %s521, 15
        %s526 = smul.addr %s525, 2
        %s527 = smul.addr %s523, 32
        %s528 = sadd.s32 %s526, %s527
        %s529 = smul.addr %s528, 4
        %s530 = scalar_lea.vmem %s2, %s529
        %p531 = pneg %p133
        %p532 = pneg %p130
        %p533 = scmp.lt.s32.totalorder %s30, 1
        %s534 = scalar_select %p533, %s30, 1
        %s535 = scalar_lea.vmem %s3, %s534
        %p536 = pneg %p159
        %p537 = pneg %p156
        %p538 = scmp.lt.s32.totalorder %s30, 1
        %s539 = scalar_select %p538, %s30, 1
        %s540 = scalar_lea.vmem %s4, %s539
        %p541 = pneg %p185
        %p542 = pneg %p182
        %p543 = pneg %p206
        %p544 = pneg %p203
        %p545 = pneg %p227
        %p546 = pneg %p224
        %p547 = pneg %p248
        %p548 = pneg %p245
        %p549 = pneg %p269
        %p550 = pneg %p266
        %s551 = smul.u32 4, %s31
        %p552 = scmp.lt.s32.totalorder %s30, 1
        %s553 = scalar_select %p552, %s30, 1
        %p554 = scmp.lt.s32.totalorder %s551, 15
        %s555 = scalar_select %p554, %s551, 15
        %s556 = smul.addr %s555, 2
        %s557 = smul.addr %s553, 32
        %s558 = sadd.s32 %s556, %s557
        %s559 = smul.addr %s558, 4
        %s560 = scalar_lea.vmem %s9, %s559
        %p561 = pneg %p297
        %p562 = pneg %p294
        %p563 = pneg %p318
        %p564 = pneg %p315
        %p565 = pneg %p339
        %p566 = pneg %p336
        %p567 = pneg %p367
        %p568 = pneg %p364
        %s569 = sand.u32 %s354, 1
        %s570 = scalar_lea.sflag [#allocation3], %s569
        %s571 = sand.u32 %s354, 1
        %s572 = smul.addr %s571, 64
        %s573 = scalar_lea.vmem [#allocation2], %s572
        %s574 = smul.u32 4, %s31
        %p575 = scmp.lt.s32.totalorder %s30, 1
        %s576 = scalar_select %p575, %s30, 1
        %p577 = scmp.lt.s32.totalorder %s574, 15
        %s578 = scalar_select %p577, %s574, 15
        %s579 = smul.addr %s578, 2
        %s580 = smul.addr %s576, 32
        %s581 = sadd.s32 %s579, %s580
        %s582 = smul.addr %s581, 4
        %s583 = scalar_lea.vmem %s0, %s582
        %s584 = smul.u32 4, %s31
        %s585 = smul.u32 %s31, 4
        %s586 = ssub.s32 %s585, 1
        %p587 = scmp.gt.s32.totalorder %s586, 0
        %s588 = scalar_select %p587, %s586, 0
        %p589 = scmp.lt.s32.totalorder %s30, 1
        %s590 = scalar_select %p589, %s30, 1
        %p591 = scmp.lt.s32.totalorder %s588, 15
        %s592 = scalar_select %p591, %s588, 15
        %s593 = smul.addr %s592, 2
        %s594 = smul.addr %s590, 32
        %s595 = sadd.s32 %s593, %s594
        %s596 = smul.addr %s595, 4
        %s597 = scalar_lea.vmem %s1, %s596
        %s598 = smul.u32 %s31, 4
        %s599 = ssub.s32 %s598, 1
        %p600 = scmp.gt.s32.totalorder %s599, 0
        %s601 = scalar_select %p600, %s599, 0
        %s602 = smul.u32 %s31, 4
        %s603 = sadd.s32 %s602, 4
        %p604 = scmp.lt.s32.totalorder %s603, 15
        %s605 = scalar_select %p604, %s603, 15
        %p606 = scmp.lt.s32.totalorder %s30, 1
        %s607 = scalar_select %p606, %s30, 1
        %p608 = scmp.lt.s32.totalorder %s605, 15
        %s609 = scalar_select %p608, %s605, 15
        %s610 = smul.addr %s609, 2
        %s611 = smul.addr %s607, 32
        %s612 = sadd.s32 %s610, %s611
        %s613 = smul.addr %s612, 4
        %s614 = scalar_lea.vmem %s2, %s613
        %s615 = smul.u32 %s31, 4
        %s616 = sadd.s32 %s615, 4
        %p617 = scmp.lt.s32.totalorder %s616, 15
        %s618 = scalar_select %p617, %s616, 15
        %p619 = scmp.lt.s32.totalorder %s30, 1
        %s620 = scalar_select %p619, %s30, 1
        %s621 = scalar_lea.vmem %s3, %s620
        %p622 = scmp.lt.s32.totalorder %s30, 1
        %s623 = scalar_select %p622, %s30, 1
        %s624 = scalar_lea.vmem %s4, %s623
        %s625 = smul.u32 4, %s31
        %p626 = scmp.lt.s32.totalorder %s30, 1
        %s627 = scalar_select %p626, %s30, 1
        %p628 = scmp.lt.s32.totalorder %s625, 15
        %s629 = scalar_select %p628, %s625, 15
        %s630 = smul.addr %s629, 2
        %s631 = smul.addr %s627, 32
        %s632 = sadd.s32 %s630, %s631
        %s633 = smul.addr %s632, 4
        %s634 = scalar_lea.vmem %s9, %s633
        %s635 = smul.u32 4, %s31
        %s636 = smul.u32 4, %s31
        %v638 = vld [vmem:[%s624] sm:$0x1]
        %v639 = vld [vmem:[%s5] sm:$0x1]
        %v640 = vmul.f32 %v638, %v639
        %v641 = vld [vmem:[%s6] sm:$0x1]
        %v642 = vld [vmem:[%s621] sm:$0x1]
        %v643 = vmul.f32 %v642, %v640
        %v644 = vsub.f32 %v641, %v643
        %v645 = vld [vmem:[%s583] sm:$0xf]
        %v646 = vld [vmem:[%s583 + $0x4] sm:$0xf]
        %v647 = vld [vmem:[%s583 + $0x8] sm:$0xf]
        %v648 = vld [vmem:[%s583 + $0xc] sm:$0xf]
        %v649 = vld [vmem:[%s583 + $0x10] sm:$0xf]
        %v650 = vld [vmem:[%s583 + $0x14] sm:$0xf]
        %v651 = vld [vmem:[%s583 + $0x18] sm:$0xf]
        %v652 = vld [vmem:[%s583 + $0x1c] sm:$0xf]
        %v653 = vld [vmem:[%s597] sm:$0xf]
        %v654 = vld [vmem:[%s597 + $0x4] sm:$0xf]
        %v655 = vld [vmem:[%s614] sm:$0xf]
        %v656 = vld [vmem:[%s614 + $0x4] sm:$0xf]
        %v657 = vunpack.c.l.bf16 %v653
        %v658 = vunpack.c.l.bf16 %v654
        %v659 = vunpack.c.l.bf16 %v645
        %v660 = vunpack.c.l.bf16 %v646
        %v661 = vunpack.c.l.bf16 %v647
        %v662 = vunpack.c.l.bf16 %v648
        %v663 = vunpack.c.l.bf16 %v649
        %v664 = vunpack.c.l.bf16 %v650
        %v665 = vunpack.c.l.bf16 %v651
        %v666 = vunpack.c.l.bf16 %v652
        %v667 = vunpack.c.l.bf16 %v655
        %v668 = vunpack.c.l.bf16 %v656
        %v670 = vlaneseq
        %v671 = vshrl.u32 %v670, 7
        %v672 = vsub.s32 0, %v671
        %v673 = vrot.slane %v640, %v672
        %v675 = vmul.f32 %v657, %v673
        %v676 = vmul.f32 %v658, %v673
        %v677 = vmul.f32 %v659, %v673
        %v678 = vmul.f32 %v660, %v673
        %v679 = vmul.f32 %v661, %v673
        %v680 = vmul.f32 %v662, %v673
        %v681 = vmul.f32 %v663, %v673
        %v682 = vmul.f32 %v664, %v673
        %v683 = vmul.f32 %v665, %v673
        %v684 = vmul.f32 %v666, %v673
        %v685 = vmul.f32 %v667, %v673
        %v686 = vmul.f32 %v668, %v673
        %v688 = vlaneseq
        %v689 = vshrl.u32 %v688, 7
        %v690 = vsub.s32 0, %v689
        %v691 = vrot.slane %v644, %v690
        %v693 = vadd.f32 %v675, %v691
        %v694 = vadd.f32 %v676, %v691
        %v695 = vadd.f32 %v677, %v691
        %v696 = vadd.f32 %v678, %v691
        %v697 = vadd.f32 %v679, %v691
        %v698 = vadd.f32 %v680, %v691
        %v699 = vadd.f32 %v681, %v691
        %v700 = vadd.f32 %v682, %v691
        %v701 = vadd.f32 %v683, %v691
        %v702 = vadd.f32 %v684, %v691
        %v703 = vadd.f32 %v685, %v691
        %v704 = vadd.f32 %v686, %v691
        %v705 = vxor.u32 %v693, 2147483648
        %v706 = vxor.u32 %v694, 2147483648
        %v707 = vxor.u32 %v695, 2147483648
        %v708 = vxor.u32 %v696, 2147483648
        %v709 = vxor.u32 %v697, 2147483648
        %v710 = vxor.u32 %v698, 2147483648
        %v711 = vxor.u32 %v699, 2147483648
        %v712 = vxor.u32 %v700, 2147483648
        %v713 = vxor.u32 %v701, 2147483648
        %v714 = vxor.u32 %v702, 2147483648
        %v715 = vxor.u32 %v703, 2147483648
        %v716 = vxor.u32 %v704, 2147483648
        %v717 = vmul.f32 %v705, 1.442695
        %v718 = vpow.pop %v717
        %v719 = vmul.f32 %v706, 1.442695
        %v720 = vpow.pop %v719
        %v721 = vmul.f32 %v707, 1.442695
        %v722 = vpow.pop %v721
        %v723 = vmul.f32 %v708, 1.442695
        %v724 = vpow.pop %v723
        %v725 = vmul.f32 %v709, 1.442695
        %v726 = vpow.pop %v725
        %v727 = vmul.f32 %v710, 1.442695
        %v728 = vpow.pop %v727
        %v729 = vmul.f32 %v711, 1.442695
        %v730 = vpow.pop %v729
        %v731 = vmul.f32 %v712, 1.442695
        %v732 = vpow.pop %v731
        %v733 = vmul.f32 %v713, 1.442695
        %v734 = vpow.pop %v733
        %v735 = vmul.f32 %v714, 1.442695
        %v736 = vpow.pop %v735
        %v737 = vmul.f32 %v715, 1.442695
        %v738 = vpow.pop %v737
        %v739 = vmul.f32 %v716, 1.442695
        %v740 = vpow.pop %v739
        %v741 = vadd.f32 %v718, 1.0
        %v742 = vadd.f32 %v720, 1.0
        %v743 = vadd.f32 %v722, 1.0
        %v744 = vadd.f32 %v724, 1.0
        %v745 = vadd.f32 %v726, 1.0
        %v746 = vadd.f32 %v728, 1.0
        %v747 = vadd.f32 %v730, 1.0
        %v748 = vadd.f32 %v732, 1.0
        %v749 = vadd.f32 %v734, 1.0
        %v750 = vadd.f32 %v736, 1.0
        %v751 = vadd.f32 %v738, 1.0
        %v752 = vadd.f32 %v740, 1.0
        %v753 = vrcp.pop %v741
        %v754 = vmul.f32 1.0, %v753
        %v755 = vrcp.pop %v742
        %v756 = vmul.f32 1.0, %v755
        %v757 = vrcp.pop %v743
        %v758 = vmul.f32 1.0, %v757
        %v759 = vrcp.pop %v744
        %v760 = vmul.f32 1.0, %v759
        %v761 = vrcp.pop %v745
        %v762 = vmul.f32 1.0, %v761
        %v763 = vrcp.pop %v746
        %v764 = vmul.f32 1.0, %v763
        %v765 = vrcp.pop %v747
        %v766 = vmul.f32 1.0, %v765
        %v767 = vrcp.pop %v748
        %v768 = vmul.f32 1.0, %v767
        %v769 = vrcp.pop %v749
        %v770 = vmul.f32 1.0, %v769
        %v771 = vrcp.pop %v750
        %v772 = vmul.f32 1.0, %v771
        %v773 = vrcp.pop %v751
        %v774 = vmul.f32 1.0, %v773
        %v775 = vrcp.pop %v752
        %v776 = vmul.f32 1.0, %v775
        %v777 = vmul.f32 %v693, %v754
        %v778 = vmul.f32 %v694, %v756
        %v779 = vmul.f32 %v695, %v758
        %v780 = vmul.f32 %v696, %v760
        %v781 = vmul.f32 %v697, %v762
        %v782 = vmul.f32 %v698, %v764
        %v783 = vmul.f32 %v699, %v766
        %v784 = vmul.f32 %v700, %v768
        %v785 = vmul.f32 %v701, %v770
        %v786 = vmul.f32 %v702, %v772
        %v787 = vmul.f32 %v703, %v774
        %v788 = vmul.f32 %v704, %v776
        %p789 = scmp.eq.s32.totalorder %s31, 0
        %s790 = scalar_select %p789, 1, 0
        %v791 = vstv %s790
        %vm792 = vcmp.eq.s32.totalorder %v791, 1
        %p793 = scmp.eq.s32.totalorder %s31, 3
        %s794 = scalar_select %p793, 1, 0
        %v795 = vstv %s794
        %vm796 = vcmp.eq.s32.totalorder %v795, 1
        %v797 = vsel %vm792, 1, 0
        %v798 = vsel %vm796, 1, 0
        %vm799 = vcmp.eq.s32.totalorder %v797, 1
        %vm800 = vcmp.eq.s32.totalorder %v798, 1
        %v801 = vsel %vm799, 0.0, %v777
        %v802 = vsel %vm799, 0.0, %v778
        %v803 = vsel 0, 0.0, %v779
        %v804 = vsel 0, 0.0, %v780
        %v805 = vsel 0, 0.0, %v781
        %v806 = vsel 0, 0.0, %v782
        %v807 = vsel 0, 0.0, %v783
        %v808 = vsel 0, 0.0, %v784
        %v809 = vsel 0, 0.0, %v785
        %v810 = vsel 0, 0.0, %v786
        %v811 = vsel %vm800, 0.0, %v787
        %v812 = vsel %vm800, 0.0, %v788
        %v813 = vpack.c.bf16 %v802, %v801
        %v814 = vpack.c.bf16 %v804, %v803
        %v815 = vpack.c.bf16 %v806, %v805
        %v816 = vpack.c.bf16 %v808, %v807
        %v817 = vpack.c.bf16 %v810, %v809
        %v818 = vpack.c.bf16 %v812, %v811
        %v819 = vld [vmem:[%s7] sm:$0xf]
        %v820 = vld [vmem:[%s7 + $0x4] sm:$0xf]
        %v821 = vld [vmem:[%s7 + $0x8] sm:$0xf]
        %v822 = vld [vmem:[%s7 + $0xc] sm:$0xf]
        %v823 = vld [vmem:[%s7 + $0x10] sm:$0xf]
        %v824 = vld [vmem:[%s7 + $0x14] sm:$0xf]
        %v825 = vld [vmem:[%s7 + $0x18] sm:$0xf]
        %v826 = vld [vmem:[%s7 + $0x1c] sm:$0xf]
        %v827 = vld [vmem:[%s7 + $0x20] sm:$0xf]
        %v828 = vld [vmem:[%s7 + $0x24] sm:$0xf]
        %v829 = vld [vmem:[%s7 + $0x28] sm:$0xf]
        %v830 = vld [vmem:[%s7 + $0x2c] sm:$0xf]
        %v831 = vld [vmem:[%s7 + $0x30] sm:$0xf]
        %v832 = vld [vmem:[%s7 + $0x34] sm:$0xf]
        %v833 = vld [vmem:[%s7 + $0x38] sm:$0xf]
        %v834 = vld [vmem:[%s7 + $0x3c] sm:$0xf]
        %v835 = vld [vmem:[%s7 + $0x40] sm:$0xf]
        %v836 = vld [vmem:[%s7 + $0x44] sm:$0xf]
        %v837 = vld [vmem:[%s7 + $0x48] sm:$0xf]
        %v838 = vld [vmem:[%s7 + $0x4c] sm:$0xf]
        %v839 = vld [vmem:[%s7 + $0x50] sm:$0xf]
        %v840 = vld [vmem:[%s7 + $0x54] sm:$0xf]
        %v841 = vld [vmem:[%s7 + $0x58] sm:$0xf]
        %v842 = vld [vmem:[%s7 + $0x5c] sm:$0xf]
        %v843 = vld [vmem:[%s7 + $0x60] sm:$0xf]
        %v844 = vld [vmem:[%s7 + $0x64] sm:$0xf]
        %v845 = vld [vmem:[%s7 + $0x68] sm:$0xf]
        %v846 = vld [vmem:[%s7 + $0x6c] sm:$0xf]
        %v847 = vld [vmem:[%s7 + $0x70] sm:$0xf]
        %v848 = vld [vmem:[%s7 + $0x74] sm:$0xf]
        %v849 = vld [vmem:[%s7 + $0x78] sm:$0xf]
        %v850 = vld [vmem:[%s7 + $0x7c] sm:$0xf]
        %v851 = vld [vmem:[%s7 + $0x80] sm:$0xf]
        %v852 = vld [vmem:[%s7 + $0x84] sm:$0xf]
        %v853 = vld [vmem:[%s7 + $0x88] sm:$0xf]
        %v854 = vld [vmem:[%s7 + $0x8c] sm:$0xf]
        %v855 = vld [vmem:[%s7 + $0x90] sm:$0xf]
        %v856 = vld [vmem:[%s7 + $0x94] sm:$0xf]
        %v857 = vld [vmem:[%s7 + $0x98] sm:$0xf]
        %v858 = vld [vmem:[%s7 + $0x9c] sm:$0xf]
        %v859 = vld [vmem:[%s7 + $0xa0] sm:$0xf]
        %v860 = vld [vmem:[%s7 + $0xa4] sm:$0xf]
        %v861 = vld [vmem:[%s7 + $0xa8] sm:$0xf]
        %v862 = vld [vmem:[%s7 + $0xac] sm:$0xf]
        %v863 = vld [vmem:[%s7 + $0xb0] sm:$0xf]
        %v864 = vld [vmem:[%s7 + $0xb4] sm:$0xf]
        %v865 = vld [vmem:[%s7 + $0xb8] sm:$0xf]
        %v866 = vld [vmem:[%s7 + $0xbc] sm:$0xf]
        %v867 = vld [vmem:[%s7 + $0xc0] sm:$0xf]
        %v868 = vld [vmem:[%s7 + $0xc4] sm:$0xf]
        %v869 = vld [vmem:[%s7 + $0xc8] sm:$0xf]
        %v870 = vld [vmem:[%s7 + $0xcc] sm:$0xf]
        %v871 = vld [vmem:[%s7 + $0xd0] sm:$0xf]
        %v872 = vld [vmem:[%s7 + $0xd4] sm:$0xf]
        %v873 = vld [vmem:[%s7 + $0xd8] sm:$0xf]
        %v874 = vld [vmem:[%s7 + $0xdc] sm:$0xf]
        %v875 = vld [vmem:[%s7 + $0xe0] sm:$0xf]
        %v876 = vld [vmem:[%s7 + $0xe4] sm:$0xf]
        %v877 = vld [vmem:[%s7 + $0xe8] sm:$0xf]
        %v878 = vld [vmem:[%s7 + $0xec] sm:$0xf]
        %v879 = vld [vmem:[%s7 + $0xf0] sm:$0xf]
        %v880 = vld [vmem:[%s7 + $0xf4] sm:$0xf]
        %v881 = vld [vmem:[%s7 + $0xf8] sm:$0xf]
        %v882 = vld [vmem:[%s7 + $0xfc] sm:$0xf]
        %v883 = vld [vmem:[%s7 + $0x100] sm:$0xf]
        %v884 = vld [vmem:[%s7 + $0x104] sm:$0xf]
        %v885 = vld [vmem:[%s7 + $0x108] sm:$0xf]
        %v886 = vld [vmem:[%s7 + $0x10c] sm:$0xf]
        %v887 = vld [vmem:[%s7 + $0x110] sm:$0xf]
        %v888 = vld [vmem:[%s7 + $0x114] sm:$0xf]
        %v889 = vld [vmem:[%s7 + $0x118] sm:$0xf]
        %v890 = vld [vmem:[%s7 + $0x11c] sm:$0xf]
        %v891 = vld [vmem:[%s8] sm:$0x1]
        %v893 = vlaneseq
        %v894 = vshrl.u32 %v893, 7
        %v895 = vsub.s32 0, %v894
        %v896 = vrot.slane %v891, %v895
        %v899 = vshrl.u32 %v813, 16
        %v901 = vrot.slane %v899, 7
        %v902 = vshll.u32 %v813, 16
        %v904 = vor.u32 %v901, %v902
        %v906 = vshrl.u32 %v814, 16
        %v908 = vrot.slane %v906, 7
        %v909 = vshll.u32 %v814, 16
        %v911 = vor.u32 %v908, %v909
        %v913 = vshrl.u32 %v815, 16
        %v915 = vrot.slane %v913, 7
        %v916 = vshll.u32 %v815, 16
        %v918 = vor.u32 %v915, %v916
        %v920 = vshrl.u32 %v816, 16
        %v922 = vrot.slane %v920, 7
        %v923 = vshll.u32 %v816, 16
        %v925 = vor.u32 %v922, %v923
        %v927 = vshrl.u32 %v817, 16
        %v929 = vrot.slane %v927, 7
        %v930 = vshll.u32 %v817, 16
        %v932 = vor.u32 %v929, %v930
        %v934 = vshrl.u32 %v818, 16
        %v936 = vrot.slane %v934, 7
        %v937 = vshll.u32 %v818, 16
        %v939 = vor.u32 %v936, %v937
        %vm946 = vcmask 1040384
        %vm947 = vsmask.f32 256
        %vm948 = vmand %vm946, %vm947
        %v949 = vsel %vm948, 0, %v904
        %v950 = vsel %vm948, 0, %v911
        %v951 = vsel %vm948, 0, %v918
        %v952 = vsel %vm948, 0, %v925
        %v953 = vsel %vm948, 0, %v932
        %v954 = vsel %vm948, 0, %v939
        %v963 = vunpack.c.l.b16 %v819
        %v964 = vunpack.c.l.b16 %v820
        %v965 = vunpack.c.l.b16 %v821
        %v966 = vunpack.c.l.b16 %v822
        %v967 = vunpack.c.l.b16 %v823
        %v968 = vunpack.c.l.b16 %v824
        %v969 = vunpack.c.l.b16 %v825
        %v970 = vunpack.c.l.b16 %v826
        %v971 = vpack.c.b16 %v964, %v963
        %v972 = vpack.c.b16 %v966, %v965
        %v973 = vpack.c.b16 %v968, %v967
        %v974 = vpack.c.b16 %v970, %v969
        %vm979 = vcmask 523264
        %v981 = vsel %vm979, %v949, 0
        %v984 = vsel %vm979, %v950, 0
        %v987 = vsel %vm979, %v951, 0
        %v990 = vsel %vm979, %v952, 0
        %992 = vmatprep.subr.bf16.mxu0 0
        %993 = vmatpush1.bf16.msra.mxu0 %v971
        %994 = vmatprep.subr.bf16.mxu0 0
        %995 = vmatpush1.bf16.msra.mxu0 %v972
        %996 = vmatprep.subr.bf16.mxu0 0
        %997 = vmatpush1.bf16.msra.mxu0 %v973
        %998 = vmatprep.subr.bf16.mxu0 0
        %999 = vmatpush1.bf16.msra.mxu0 %v974
        %1000 = vmatprep.subr.bf16.mxu0 0
        %1001 = vmatpush1.bf16.msra.mxu0 0
        %1002 = vmatprep.subr.bf16.mxu0 0
        %1003 = vmatpush1.bf16.msra.mxu0 0
        %1004 = vmatprep.subr.bf16.mxu0 0
        %1005 = vmatpush1.bf16.msra.mxu0 0
        %1006 = vmatprep.subr.bf16.mxu0 0
        %1007 = vmatpush1.bf16.msra.mxu0 0
        %1008 = vmatprep.subr.bf16.mxu0 0
        %1009 = vmatpush1.bf16.msra.mxu0 0
        %1010 = vmatprep.subr.bf16.mxu0 0
        %1011 = vmatpush1.bf16.msra.mxu0 0
        %1012 = vmatprep.subr.bf16.mxu0 0
        %1013 = vmatpush1.bf16.msra.mxu0 0
        %1014 = vmatprep.subr.bf16.mxu0 0
        %1015 = vmatpush1.bf16.msra.mxu0 0
        %1016 = vmatprep.subr.bf16.mxu0 0
        %1017 = vmatpush1.bf16.msra.mxu0 0
        %1018 = vmatprep.subr.bf16.mxu0 0
        %1019 = vmatpush1.bf16.msra.mxu0 0
        %1020 = vmatprep.subr.bf16.mxu0 0
        %1021 = vmatpush1.bf16.msra.mxu0 0
        %1022 = vmatprep.subr.bf16.mxu0 0
        %1023 = vmatpush1.bf16.msra.mxu0 0
        %1024 = vmatprep.mubr.bf16.mxu0 0
        %1025 = vmatmul.mubr.bf16.gmra.mrb[0].mxu0 %v981
        %v1026 = vpop.f32.mrb[0].mxu0
        %v1027 = vadd.f32 0.0, %v1026
        %v1028 = vpop.f32.mrb[0].mxu0
        %v1029 = vpop.f32.mrb[0].mxu0
        %v1030 = vadd.f32 0.0, %v1029
        %v1031 = vpop.f32.mrb[0].mxu0
        %1032 = vmatprep.mubr.bf16.mxu0 0
        %1033 = vmatmul.mubr.bf16.gmra.mrb[0].mxu0 %v984
        %v1034 = vpop.f32.mrb[0].mxu0
        %v1035 = vadd.f32 0.0, %v1034
        %v1036 = vpop.f32.mrb[0].mxu0
        %v1037 = vpop.f32.mrb[0].mxu0
        %v1038 = vadd.f32 0.0, %v1037
        %v1039 = vpop.f32.mrb[0].mxu0
        %1040 = vmatprep.mubr.bf16.mxu0 0
        %1041 = vmatmul.mubr.bf16.gmra.mrb[0].mxu0 %v987
        %v1042 = vpop.f32.mrb[0].mxu0
        %v1043 = vadd.f32 0.0, %v1042
        %v1044 = vpop.f32.mrb[0].mxu0
        %v1045 = vpop.f32.mrb[0].mxu0
        %v1046 = vadd.f32 0.0, %v1045
        %v1047 = vpop.f32.mrb[0].mxu0
        %1048 = vmatprep.mubr.bf16.mxu0 0
        %1049 = vmatmul.mubr.bf16.gmra.mrb[0].mxu0 %v990
        %v1050 = vpop.f32.mrb[0].mxu0
        %v1051 = vadd.f32 0.0, %v1050
        %v1052 = vpop.f32.mrb[0].mxu0
        %v1053 = vpop.f32.mrb[0].mxu0
        %v1054 = vadd.f32 0.0, %v1053
        %v1055 = vpop.f32.mrb[0].mxu0
        %1056 = vdwg.mxu0
        %v1057 = vadd.f32 %v896, %v1027
        %v1058 = vadd.f32 %v896, %v1030
        %v1059 = vadd.f32 %v896, %v1035
        %v1060 = vadd.f32 %v896, %v1038
        %v1061 = vadd.f32 %v896, %v1043
        %v1062 = vadd.f32 %v896, %v1046
        %v1063 = vadd.f32 %v896, %v1051
        %v1064 = vadd.f32 %v896, %v1054
        %v1073 = vunpack.c.l.b16 %v843
        %v1074 = vunpack.c.l.b16 %v844
        %v1075 = vunpack.c.l.b16 %v845
        %v1076 = vunpack.c.l.b16 %v846
        %v1077 = vunpack.c.l.b16 %v847
        %v1078 = vunpack.c.l.b16 %v848
        %v1079 = vunpack.c.l.b16 %v849
        %v1080 = vunpack.c.l.b16 %v850
        %v1081 = vpack.c.b16 %v1074, %v1073
        %v1082 = vpack.c.b16 %v1076, %v1075
        %v1083 = vpack.c.b16 %v1078, %v1077
        %v1084 = vpack.c.b16 %v1080, %v1079
        %v1090 = vsel %vm979, %v953, 0
        %1092 = vmatprep.subr.bf16.mxu0 0
        %1093 = vmatpush1.bf16.msra.mxu0 %v1081
        %1094 = vmatprep.subr.bf16.mxu0 0
        %1095 = vmatpush1.bf16.msra.mxu0 %v1082
        %1096 = vmatprep.subr.bf16.mxu0 0
        %1097 = vmatpush1.bf16.msra.mxu0 %v1083
        %1098 = vmatprep.subr.bf16.mxu0 0
        %1099 = vmatpush1.bf16.msra.mxu0 %v1084
        %1100 = vmatprep.subr.bf16.mxu0 0
        %1101 = vmatpush1.bf16.msra.mxu0 0
        %1102 = vmatprep.subr.bf16.mxu0 0
        %1103 = vmatpush1.bf16.msra.mxu0 0
        %1104 = vmatprep.subr.bf16.mxu0 0
        %1105 = vmatpush1.bf16.msra.mxu0 0
        %1106 = vmatprep.subr.bf16.mxu0 0
        %1107 = vmatpush1.bf16.msra.mxu0 0
        %1108 = vmatprep.subr.bf16.mxu0 0
        %1109 = vmatpush1.bf16.msra.mxu0 0
        %1110 = vmatprep.subr.bf16.mxu0 0
        %1111 = vmatpush1.bf16.msra.mxu0 0
        %1112 = vmatprep.subr.bf16.mxu0 0
        %1113 = vmatpush1.bf16.msra.mxu0 0
        %1114 = vmatprep.subr.bf16.mxu0 0
        %1115 = vmatpush1.bf16.msra.mxu0 0
        %1116 = vmatprep.subr.bf16.mxu0 0
        %1117 = vmatpush1.bf16.msra.mxu0 0
        %1118 = vmatprep.subr.bf16.mxu0 0
        %1119 = vmatpush1.bf16.msra.mxu0 0
        %1120 = vmatprep.subr.bf16.mxu0 0
        %1121 = vmatpush1.bf16.msra.mxu0 0
        %1122 = vmatprep.subr.bf16.mxu0 0
        %1123 = vmatpush1.bf16.msra.mxu0 0
        %1124 = vmatprep.mubr.bf16.mxu0 0
        %1125 = vmatmul.mubr.bf16.gmra.mrb[0].mxu0 %v984
        %v1126 = vpop.f32.mrb[0].mxu0
        %v1127 = vadd.f32 0.0, %v1126
        %v1128 = vpop.f32.mrb[0].mxu0
        %v1129 = vpop.f32.mrb[0].mxu0
        %v1130 = vadd.f32 0.0, %v1129
        %v1131 = vpop.f32.mrb[0].mxu0
        %1132 = vmatprep.mubr.bf16.mxu0 0
        %1133 = vmatmul.mubr.bf16.gmra.mrb[0].mxu0 %v987
        %v1134 = vpop.f32.mrb[0].mxu0
        %v1135 = vadd.f32 0.0, %v1134
        %v1136 = vpop.f32.mrb[0].mxu0
        %v1137 = vpop.f32.mrb[0].mxu0
        %v1138 = vadd.f32 0.0, %v1137
        %v1139 = vpop.f32.mrb[0].mxu0
        %1140 = vmatprep.mubr.bf16.mxu0 0
        %1141 = vmatmul.mubr.bf16.gmra.mrb[0].mxu0 %v990
        %v1142 = vpop.f32.mrb[0].mxu0
        %v1143 = vadd.f32 0.0, %v1142
        %v1144 = vpop.f32.mrb[0].mxu0
        %v1145 = vpop.f32.mrb[0].mxu0
        %v1146 = vadd.f32 0.0, %v1145
        %v1147 = vpop.f32.mrb[0].mxu0
        %1148 = vmatprep.mubr.bf16.mxu0 0
        %1149 = vmatmul.mubr.bf16.gmra.mrb[0].mxu0 %v1090
        %v1150 = vpop.f32.mrb[0].mxu0
        %v1151 = vadd.f32 0.0, %v1150
        %v1152 = vpop.f32.mrb[0].mxu0
        %v1153 = vpop.f32.mrb[0].mxu0
        %v1154 = vadd.f32 0.0, %v1153
        %v1155 = vpop.f32.mrb[0].mxu0
        %1156 = vdwg.mxu0
        %v1157 = vadd.f32 %v1057, %v1127
        %v1158 = vadd.f32 %v1058, %v1130
        %v1159 = vadd.f32 %v1059, %v1135
        %v1160 = vadd.f32 %v1060, %v1138
        %v1161 = vadd.f32 %v1061, %v1143
        %v1162 = vadd.f32 %v1062, %v1146
        %v1163 = vadd.f32 %v1063, %v1151
        %v1164 = vadd.f32 %v1064, %v1154
        %v1173 = vunpack.c.l.b16 %v867
        %v1174 = vunpack.c.l.b16 %v868
        %v1175 = vunpack.c.l.b16 %v869
        %v1176 = vunpack.c.l.b16 %v870
        %v1177 = vunpack.c.l.b16 %v871
        %v1178 = vunpack.c.l.b16 %v872
        %v1179 = vunpack.c.l.b16 %v873
        %v1180 = vunpack.c.l.b16 %v874
        %v1181 = vpack.c.b16 %v1174, %v1173
        %v1182 = vpack.c.b16 %v1176, %v1175
        %v1183 = vpack.c.b16 %v1178, %v1177
        %v1184 = vpack.c.b16 %v1180, %v1179
        %v1190 = vsel %vm979, %v954, 0
        %1192 = vmatprep.subr.bf16.mxu0 0
        %1193 = vmatpush1.bf16.msra.mxu0 %v1181
        %1194 = vmatprep.subr.bf16.mxu0 0
        %1195 = vmatpush1.bf16.msra.mxu0 %v1182
        %1196 = vmatprep.subr.bf16.mxu0 0
        %1197 = vmatpush1.bf16.msra.mxu0 %v1183
        %1198 = vmatprep.subr.bf16.mxu0 0
        %1199 = vmatpush1.bf16.msra.mxu0 %v1184
        %1200 = vmatprep.subr.bf16.mxu0 0
        %1201 = vmatpush1.bf16.msra.mxu0 0
        %1202 = vmatprep.subr.bf16.mxu0 0
        %1203 = vmatpush1.bf16.msra.mxu0 0
        %1204 = vmatprep.subr.bf16.mxu0 0
        %1205 = vmatpush1.bf16.msra.mxu0 0
        %1206 = vmatprep.subr.bf16.mxu0 0
        %1207 = vmatpush1.bf16.msra.mxu0 0
        %1208 = vmatprep.subr.bf16.mxu0 0
        %1209 = vmatpush1.bf16.msra.mxu0 0
        %1210 = vmatprep.subr.bf16.mxu0 0
        %1211 = vmatpush1.bf16.msra.mxu0 0
        %1212 = vmatprep.subr.bf16.mxu0 0
        %1213 = vmatpush1.bf16.msra.mxu0 0
        %1214 = vmatprep.subr.bf16.mxu0 0
        %1215 = vmatpush1.bf16.msra.mxu0 0
        %1216 = vmatprep.subr.bf16.mxu0 0
        %1217 = vmatpush1.bf16.msra.mxu0 0
        %1218 = vmatprep.subr.bf16.mxu0 0
        %1219 = vmatpush1.bf16.msra.mxu0 0
        %1220 = vmatprep.subr.bf16.mxu0 0
        %1221 = vmatpush1.bf16.msra.mxu0 0
        %1222 = vmatprep.subr.bf16.mxu0 0
        %1223 = vmatpush1.bf16.msra.mxu0 0
        %1224 = vmatprep.mubr.bf16.mxu0 0
        %1225 = vmatmul.mubr.bf16.gmra.mrb[0].mxu0 %v987
        %v1226 = vpop.f32.mrb[0].mxu0
        %v1227 = vadd.f32 0.0, %v1226
        %v1228 = vpop.f32.mrb[0].mxu0
        %v1229 = vpop.f32.mrb[0].mxu0
        %v1230 = vadd.f32 0.0, %v1229
        %v1231 = vpop.f32.mrb[0].mxu0
        %1232 = vmatprep.mubr.bf16.mxu0 0
        %1233 = vmatmul.mubr.bf16.gmra.mrb[0].mxu0 %v990
        %v1234 = vpop.f32.mrb[0].mxu0
        %v1235 = vadd.f32 0.0, %v1234
        %v1236 = vpop.f32.mrb[0].mxu0
        %v1237 = vpop.f32.mrb[0].mxu0
        %v1238 = vadd.f32 0.0, %v1237
        %v1239 = vpop.f32.mrb[0].mxu0
        %1240 = vmatprep.mubr.bf16.mxu0 0
        %1241 = vmatmul.mubr.bf16.gmra.mrb[0].mxu0 %v1090
        %v1242 = vpop.f32.mrb[0].mxu0
        %v1243 = vadd.f32 0.0, %v1242
        %v1244 = vpop.f32.mrb[0].mxu0
        %v1245 = vpop.f32.mrb[0].mxu0
        %v1246 = vadd.f32 0.0, %v1245
        %v1247 = vpop.f32.mrb[0].mxu0
        %1248 = vmatprep.mubr.bf16.mxu0 0
        %1249 = vmatmul.mubr.bf16.gmra.mrb[0].mxu0 %v1190
        %v1250 = vpop.f32.mrb[0].mxu0
        %v1251 = vadd.f32 0.0, %v1250
        %v1252 = vpop.f32.mrb[0].mxu0
        %v1253 = vpop.f32.mrb[0].mxu0
        %v1254 = vadd.f32 0.0, %v1253
        %v1255 = vpop.f32.mrb[0].mxu0
        %1256 = vdwg.mxu0
        %v1257 = vadd.f32 %v1157, %v1227
        %v1258 = vadd.f32 %v1158, %v1230
        %v1259 = vadd.f32 %v1159, %v1235
        %v1260 = vadd.f32 %v1160, %v1238
        %v1261 = vadd.f32 %v1161, %v1243
        %v1262 = vadd.f32 %v1162, %v1246
        %v1263 = vadd.f32 %v1163, %v1251
        %v1264 = vadd.f32 %v1164, %v1254
        %v1273 = vunpack.c.l.b16 %v827
        %v1274 = vunpack.c.l.b16 %v828
        %v1275 = vunpack.c.l.b16 %v829
        %v1276 = vunpack.c.l.b16 %v830
        %v1277 = vunpack.c.l.b16 %v831
        %v1278 = vunpack.c.l.b16 %v832
        %v1279 = vunpack.c.l.b16 %v833
        %v1280 = vunpack.c.l.b16 %v834
        %v1281 = vpack.c.b16 %v1274, %v1273
        %v1282 = vpack.c.b16 %v1276, %v1275
        %v1283 = vpack.c.b16 %v1278, %v1277
        %v1284 = vpack.c.b16 %v1280, %v1279
        %v1289 = vsel %vm979, %v813, 0
        %v1291 = vsel %vm979, %v814, 0
        %v1293 = vsel %vm979, %v815, 0
        %v1295 = vsel %vm979, %v816, 0
        %1297 = vmatprep.subr.bf16.mxu0 0
        %1298 = vmatpush1.bf16.msra.mxu0 %v1281
        %1299 = vmatprep.subr.bf16.mxu0 0
        %1300 = vmatpush1.bf16.msra.mxu0 %v1282
        %1301 = vmatprep.subr.bf16.mxu0 0
        %1302 = vmatpush1.bf16.msra.mxu0 %v1283
        %1303 = vmatprep.subr.bf16.mxu0 0
        %1304 = vmatpush1.bf16.msra.mxu0 %v1284
        %1305 = vmatprep.subr.bf16.mxu0 0
        %1306 = vmatpush1.bf16.msra.mxu0 0
        %1307 = vmatprep.subr.bf16.mxu0 0
        %1308 = vmatpush1.bf16.msra.mxu0 0
        %1309 = vmatprep.subr.bf16.mxu0 0
        %1310 = vmatpush1.bf16.msra.mxu0 0
        %1311 = vmatprep.subr.bf16.mxu0 0
        %1312 = vmatpush1.bf16.msra.mxu0 0
        %1313 = vmatprep.subr.bf16.mxu0 0
        %1314 = vmatpush1.bf16.msra.mxu0 0
        %1315 = vmatprep.subr.bf16.mxu0 0
        %1316 = vmatpush1.bf16.msra.mxu0 0
        %1317 = vmatprep.subr.bf16.mxu0 0
        %1318 = vmatpush1.bf16.msra.mxu0 0
        %1319 = vmatprep.subr.bf16.mxu0 0
        %1320 = vmatpush1.bf16.msra.mxu0 0
        %1321 = vmatprep.subr.bf16.mxu0 0
        %1322 = vmatpush1.bf16.msra.mxu0 0
        %1323 = vmatprep.subr.bf16.mxu0 0
        %1324 = vmatpush1.bf16.msra.mxu0 0
        %1325 = vmatprep.subr.bf16.mxu0 0
        %1326 = vmatpush1.bf16.msra.mxu0 0
        %1327 = vmatprep.subr.bf16.mxu0 0
        %1328 = vmatpush1.bf16.msra.mxu0 0
        %1329 = vmatprep.mubr.bf16.mxu0 0
        %1330 = vmatmul.mubr.bf16.gmra.mrb[0].mxu0 %v1289
        %v1331 = vpop.f32.mrb[0].mxu0
        %v1332 = vadd.f32 0.0, %v1331
        %v1333 = vpop.f32.mrb[0].mxu0
        %v1334 = vpop.f32.mrb[0].mxu0
        %v1335 = vadd.f32 0.0, %v1334
        %v1336 = vpop.f32.mrb[0].mxu0
        %1337 = vmatprep.mubr.bf16.mxu0 0
        %1338 = vmatmul.mubr.bf16.gmra.mrb[0].mxu0 %v1291
        %v1339 = vpop.f32.mrb[0].mxu0
        %v1340 = vadd.f32 0.0, %v1339
        %v1341 = vpop.f32.mrb[0].mxu0
        %v1342 = vpop.f32.mrb[0].mxu0
        %v1343 = vadd.f32 0.0, %v1342
        %v1344 = vpop.f32.mrb[0].mxu0
        %1345 = vmatprep.mubr.bf16.mxu0 0
        %1346 = vmatmul.mubr.bf16.gmra.mrb[0].mxu0 %v1293
        %v1347 = vpop.f32.mrb[0].mxu0
        %v1348 = vadd.f32 0.0, %v1347
        %v1349 = vpop.f32.mrb[0].mxu0
        %v1350 = vpop.f32.mrb[0].mxu0
        %v1351 = vadd.f32 0.0, %v1350
        %v1352 = vpop.f32.mrb[0].mxu0
        %1353 = vmatprep.mubr.bf16.mxu0 0
        %1354 = vmatmul.mubr.bf16.gmra.mrb[0].mxu0 %v1295
        %v1355 = vpop.f32.mrb[0].mxu0
        %v1356 = vadd.f32 0.0, %v1355
        %v1357 = vpop.f32.mrb[0].mxu0
        %v1358 = vpop.f32.mrb[0].mxu0
        %v1359 = vadd.f32 0.0, %v1358
        %v1360 = vpop.f32.mrb[0].mxu0
        %1361 = vdwg.mxu0
        %v1362 = vadd.f32 %v1257, %v1332
        %v1363 = vadd.f32 %v1258, %v1335
        %v1364 = vadd.f32 %v1259, %v1340
        %v1365 = vadd.f32 %v1260, %v1343
        %v1366 = vadd.f32 %v1261, %v1348
        %v1367 = vadd.f32 %v1262, %v1351
        %v1368 = vadd.f32 %v1263, %v1356
        %v1369 = vadd.f32 %v1264, %v1359
        %v1378 = vunpack.c.l.b16 %v851
        %v1379 = vunpack.c.l.b16 %v852
        %v1380 = vunpack.c.l.b16 %v853
        %v1381 = vunpack.c.l.b16 %v854
        %v1382 = vunpack.c.l.b16 %v855
        %v1383 = vunpack.c.l.b16 %v856
        %v1384 = vunpack.c.l.b16 %v857
        %v1385 = vunpack.c.l.b16 %v858
        %v1386 = vpack.c.b16 %v1379, %v1378
        %v1387 = vpack.c.b16 %v1381, %v1380
        %v1388 = vpack.c.b16 %v1383, %v1382
        %v1389 = vpack.c.b16 %v1385, %v1384
        %v1394 = vsel %vm979, %v817, 0
        %1396 = vmatprep.subr.bf16.mxu0 0
        %1397 = vmatpush1.bf16.msra.mxu0 %v1386
        %1398 = vmatprep.subr.bf16.mxu0 0
        %1399 = vmatpush1.bf16.msra.mxu0 %v1387
        %1400 = vmatprep.subr.bf16.mxu0 0
        %1401 = vmatpush1.bf16.msra.mxu0 %v1388
        %1402 = vmatprep.subr.bf16.mxu0 0
        %1403 = vmatpush1.bf16.msra.mxu0 %v1389
        %1404 = vmatprep.subr.bf16.mxu0 0
        %1405 = vmatpush1.bf16.msra.mxu0 0
        %1406 = vmatprep.subr.bf16.mxu0 0
        %1407 = vmatpush1.bf16.msra.mxu0 0
        %1408 = vmatprep.subr.bf16.mxu0 0
        %1409 = vmatpush1.bf16.msra.mxu0 0
        %1410 = vmatprep.subr.bf16.mxu0 0
        %1411 = vmatpush1.bf16.msra.mxu0 0
        %1412 = vmatprep.subr.bf16.mxu0 0
        %1413 = vmatpush1.bf16.msra.mxu0 0
        %1414 = vmatprep.subr.bf16.mxu0 0
        %1415 = vmatpush1.bf16.msra.mxu0 0
        %1416 = vmatprep.subr.bf16.mxu0 0
        %1417 = vmatpush1.bf16.msra.mxu0 0
        %1418 = vmatprep.subr.bf16.mxu0 0
        %1419 = vmatpush1.bf16.msra.mxu0 0
        %1420 = vmatprep.subr.bf16.mxu0 0
        %1421 = vmatpush1.bf16.msra.mxu0 0
        %1422 = vmatprep.subr.bf16.mxu0 0
        %1423 = vmatpush1.bf16.msra.mxu0 0
        %1424 = vmatprep.subr.bf16.mxu0 0
        %1425 = vmatpush1.bf16.msra.mxu0 0
        %1426 = vmatprep.subr.bf16.mxu0 0
        %1427 = vmatpush1.bf16.msra.mxu0 0
        %1428 = vmatprep.mubr.bf16.mxu0 0
        %1429 = vmatmul.mubr.bf16.gmra.mrb[0].mxu0 %v1291
        %v1430 = vpop.f32.mrb[0].mxu0
        %v1431 = vadd.f32 0.0, %v1430
        %v1432 = vpop.f32.mrb[0].mxu0
        %v1433 = vpop.f32.mrb[0].mxu0
        %v1434 = vadd.f32 0.0, %v1433
        %v1435 = vpop.f32.mrb[0].mxu0
        %1436 = vmatprep.mubr.bf16.mxu0 0
        %1437 = vmatmul.mubr.bf16.gmra.mrb[0].mxu0 %v1293
        %v1438 = vpop.f32.mrb[0].mxu0
        %v1439 = vadd.f32 0.0, %v1438
        %v1440 = vpop.f32.mrb[0].mxu0
        %v1441 = vpop.f32.mrb[0].mxu0
        %v1442 = vadd.f32 0.0, %v1441
        %v1443 = vpop.f32.mrb[0].mxu0
        %1444 = vmatprep.mubr.bf16.mxu0 0
        %1445 = vmatmul.mubr.bf16.gmra.mrb[0].mxu0 %v1295
        %v1446 = vpop.f32.mrb[0].mxu0
        %v1447 = vadd.f32 0.0, %v1446
        %v1448 = vpop.f32.mrb[0].mxu0
        %v1449 = vpop.f32.mrb[0].mxu0
        %v1450 = vadd.f32 0.0, %v1449
        %v1451 = vpop.f32.mrb[0].mxu0
        %1452 = vmatprep.mubr.bf16.mxu0 0
        %1453 = vmatmul.mubr.bf16.gmra.mrb[0].mxu0 %v1394
        %v1454 = vpop.f32.mrb[0].mxu0
        %v1455 = vadd.f32 0.0, %v1454
        %v1456 = vpop.f32.mrb[0].mxu0
        %v1457 = vpop.f32.mrb[0].mxu0
        %v1458 = vadd.f32 0.0, %v1457
        %v1459 = vpop.f32.mrb[0].mxu0
        %1460 = vdwg.mxu0
        %v1461 = vadd.f32 %v1362, %v1431
        %v1462 = vadd.f32 %v1363, %v1434
        %v1463 = vadd.f32 %v1364, %v1439
        %v1464 = vadd.f32 %v1365, %v1442
        %v1465 = vadd.f32 %v1366, %v1447
        %v1466 = vadd.f32 %v1367, %v1450
        %v1467 = vadd.f32 %v1368, %v1455
        %v1468 = vadd.f32 %v1369, %v1458
        %v1477 = vunpack.c.l.b16 %v875
        %v1478 = vunpack.c.l.b16 %v876
        %v1479 = vunpack.c.l.b16 %v877
        %v1480 = vunpack.c.l.b16 %v878
        %v1481 = vunpack.c.l.b16 %v879
        %v1482 = vunpack.c.l.b16 %v880
        %v1483 = vunpack.c.l.b16 %v881
        %v1484 = vunpack.c.l.b16 %v882
        %v1485 = vpack.c.b16 %v1478, %v1477
        %v1486 = vpack.c.b16 %v1480, %v1479
        %v1487 = vpack.c.b16 %v1482, %v1481
        %v1488 = vpack.c.b16 %v1484, %v1483
        %v1493 = vsel %vm979, %v818, 0
        %1495 = vmatprep.subr.bf16.mxu0 0
        %1496 = vmatpush1.bf16.msra.mxu0 %v1485
        %1497 = vmatprep.subr.bf16.mxu0 0
        %1498 = vmatpush1.bf16.msra.mxu0 %v1486
        %1499 = vmatprep.subr.bf16.mxu0 0
        %1500 = vmatpush1.bf16.msra.mxu0 %v1487
        %1501 = vmatprep.subr.bf16.mxu0 0
        %1502 = vmatpush1.bf16.msra.mxu0 %v1488
        %1503 = vmatprep.subr.bf16.mxu0 0
        %1504 = vmatpush1.bf16.msra.mxu0 0
        %1505 = vmatprep.subr.bf16.mxu0 0
        %1506 = vmatpush1.bf16.msra.mxu0 0
        %1507 = vmatprep.subr.bf16.mxu0 0
        %1508 = vmatpush1.bf16.msra.mxu0 0
        %1509 = vmatprep.subr.bf16.mxu0 0
        %1510 = vmatpush1.bf16.msra.mxu0 0
        %1511 = vmatprep.subr.bf16.mxu0 0
        %1512 = vmatpush1.bf16.msra.mxu0 0
        %1513 = vmatprep.subr.bf16.mxu0 0
        %1514 = vmatpush1.bf16.msra.mxu0 0
        %1515 = vmatprep.subr.bf16.mxu0 0
        %1516 = vmatpush1.bf16.msra.mxu0 0
        %1517 = vmatprep.subr.bf16.mxu0 0
        %1518 = vmatpush1.bf16.msra.mxu0 0
        %1519 = vmatprep.subr.bf16.mxu0 0
        %1520 = vmatpush1.bf16.msra.mxu0 0
        %1521 = vmatprep.subr.bf16.mxu0 0
        %1522 = vmatpush1.bf16.msra.mxu0 0
        %1523 = vmatprep.subr.bf16.mxu0 0
        %1524 = vmatpush1.bf16.msra.mxu0 0
        %1525 = vmatprep.subr.bf16.mxu0 0
        %1526 = vmatpush1.bf16.msra.mxu0 0
        %1527 = vmatprep.mubr.bf16.mxu0 0
        %1528 = vmatmul.mubr.bf16.gmra.mrb[0].mxu0 %v1293
        %v1529 = vpop.f32.mrb[0].mxu0
        %v1530 = vadd.f32 0.0, %v1529
        %v1531 = vpop.f32.mrb[0].mxu0
        %v1532 = vpop.f32.mrb[0].mxu0
        %v1533 = vadd.f32 0.0, %v1532
        %v1534 = vpop.f32.mrb[0].mxu0
        %1535 = vmatprep.mubr.bf16.mxu0 0
        %1536 = vmatmul.mubr.bf16.gmra.mrb[0].mxu0 %v1295
        %v1537 = vpop.f32.mrb[0].mxu0
        %v1538 = vadd.f32 0.0, %v1537
        %v1539 = vpop.f32.mrb[0].mxu0
        %v1540 = vpop.f32.mrb[0].mxu0
        %v1541 = vadd.f32 0.0, %v1540
        %v1542 = vpop.f32.mrb[0].mxu0
        %1543 = vmatprep.mubr.bf16.mxu0 0
        %1544 = vmatmul.mubr.bf16.gmra.mrb[0].mxu0 %v1394
        %v1545 = vpop.f32.mrb[0].mxu0
        %v1546 = vadd.f32 0.0, %v1545
        %v1547 = vpop.f32.mrb[0].mxu0
        %v1548 = vpop.f32.mrb[0].mxu0
        %v1549 = vadd.f32 0.0, %v1548
        %v1550 = vpop.f32.mrb[0].mxu0
        %1551 = vmatprep.mubr.bf16.mxu0 0
        %1552 = vmatmul.mubr.bf16.gmra.mrb[0].mxu0 %v1493
        %v1553 = vpop.f32.mrb[0].mxu0
        %v1554 = vadd.f32 0.0, %v1553
        %v1555 = vpop.f32.mrb[0].mxu0
        %v1556 = vpop.f32.mrb[0].mxu0
        %v1557 = vadd.f32 0.0, %v1556
        %v1558 = vpop.f32.mrb[0].mxu0
        %1559 = vdwg.mxu0
        %v1560 = vadd.f32 %v1461, %v1530
        %v1561 = vadd.f32 %v1462, %v1533
        %v1562 = vadd.f32 %v1463, %v1538
        %v1563 = vadd.f32 %v1464, %v1541
        %v1564 = vadd.f32 %v1465, %v1546
        %v1565 = vadd.f32 %v1466, %v1549
        %v1566 = vadd.f32 %v1467, %v1554
        %v1567 = vadd.f32 %v1468, %v1557
        %v1568 = vrot.slane %v902, 1
        %v1569 = vor.u32 %v899, %v1568
        %v1570 = vrot.slane %v909, 1
        %v1571 = vor.u32 %v906, %v1570
        %v1572 = vrot.slane %v916, 1
        %v1573 = vor.u32 %v913, %v1572
        %v1574 = vrot.slane %v923, 1
        %v1575 = vor.u32 %v920, %v1574
        %v1576 = vrot.slane %v930, 1
        %v1577 = vor.u32 %v927, %v1576
        %v1578 = vrot.slane %v937, 1
        %v1579 = vor.u32 %v934, %v1578
        %vm1586 = vcmask 1047552
        %vm1587 = vsmask.f32 7424
        %vm1588 = vmand %vm1586, %vm1587
        %v1589 = vsel %vm1588, %v1569, 0
        %v1590 = vsel %vm1588, %v1571, 0
        %v1591 = vsel %vm1588, %v1573, 0
        %v1592 = vsel %vm1588, %v1575, 0
        %v1593 = vsel %vm1588, %v1577, 0
        %v1594 = vsel %vm1588, %v1579, 0
        %v1603 = vunpack.c.l.b16 %v835
        %v1604 = vunpack.c.l.b16 %v836
        %v1605 = vunpack.c.l.b16 %v837
        %v1606 = vunpack.c.l.b16 %v838
        %v1607 = vunpack.c.l.b16 %v839
        %v1608 = vunpack.c.l.b16 %v840
        %v1609 = vunpack.c.l.b16 %v841
        %v1610 = vunpack.c.l.b16 %v842
        %v1611 = vpack.c.b16 %v1604, %v1603
        %v1612 = vpack.c.b16 %v1606, %v1605
        %v1613 = vpack.c.b16 %v1608, %v1607
        %v1614 = vpack.c.b16 %v1610, %v1609
        %v1620 = vsel %vm979, %v1589, 0
        %v1623 = vsel %vm979, %v1590, 0
        %v1626 = vsel %vm979, %v1591, 0
        %v1629 = vsel %vm979, %v1592, 0
        %1631 = vmatprep.subr.bf16.mxu0 0
        %1632 = vmatpush1.bf16.msra.mxu0 %v1611
        %1633 = vmatprep.subr.bf16.mxu0 0
        %1634 = vmatpush1.bf16.msra.mxu0 %v1612
        %1635 = vmatprep.subr.bf16.mxu0 0
        %1636 = vmatpush1.bf16.msra.mxu0 %v1613
        %1637 = vmatprep.subr.bf16.mxu0 0
        %1638 = vmatpush1.bf16.msra.mxu0 %v1614
        %1639 = vmatprep.subr.bf16.mxu0 0
        %1640 = vmatpush1.bf16.msra.mxu0 0
        %1641 = vmatprep.subr.bf16.mxu0 0
        %1642 = vmatpush1.bf16.msra.mxu0 0
        %1643 = vmatprep.subr.bf16.mxu0 0
        %1644 = vmatpush1.bf16.msra.mxu0 0
        %1645 = vmatprep.subr.bf16.mxu0 0
        %1646 = vmatpush1.bf16.msra.mxu0 0
        %1647 = vmatprep.subr.bf16.mxu0 0
        %1648 = vmatpush1.bf16.msra.mxu0 0
        %1649 = vmatprep.subr.bf16.mxu0 0
        %1650 = vmatpush1.bf16.msra.mxu0 0
        %1651 = vmatprep.subr.bf16.mxu0 0
        %1652 = vmatpush1.bf16.msra.mxu0 0
        %1653 = vmatprep.subr.bf16.mxu0 0
        %1654 = vmatpush1.bf16.msra.mxu0 0
        %1655 = vmatprep.subr.bf16.mxu0 0
        %1656 = vmatpush1.bf16.msra.mxu0 0
        %1657 = vmatprep.subr.bf16.mxu0 0
        %1658 = vmatpush1.bf16.msra.mxu0 0
        %1659 = vmatprep.subr.bf16.mxu0 0
        %1660 = vmatpush1.bf16.msra.mxu0 0
        %1661 = vmatprep.subr.bf16.mxu0 0
        %1662 = vmatpush1.bf16.msra.mxu0 0
        %1663 = vmatprep.mubr.bf16.mxu0 0
        %1664 = vmatmul.mubr.bf16.gmra.mrb[0].mxu0 %v1620
        %v1665 = vpop.f32.mrb[0].mxu0
        %v1666 = vadd.f32 0.0, %v1665
        %v1667 = vpop.f32.mrb[0].mxu0
        %v1668 = vpop.f32.mrb[0].mxu0
        %v1669 = vadd.f32 0.0, %v1668
        %v1670 = vpop.f32.mrb[0].mxu0
        %1671 = vmatprep.mubr.bf16.mxu0 0
        %1672 = vmatmul.mubr.bf16.gmra.mrb[0].mxu0 %v1623
        %v1673 = vpop.f32.mrb[0].mxu0
        %v1674 = vadd.f32 0.0, %v1673
        %v1675 = vpop.f32.mrb[0].mxu0
        %v1676 = vpop.f32.mrb[0].mxu0
        %v1677 = vadd.f32 0.0, %v1676
        %v1678 = vpop.f32.mrb[0].mxu0
        %1679 = vmatprep.mubr.bf16.mxu0 0
        %1680 = vmatmul.mubr.bf16.gmra.mrb[0].mxu0 %v1626
        %v1681 = vpop.f32.mrb[0].mxu0
        %v1682 = vadd.f32 0.0, %v1681
        %v1683 = vpop.f32.mrb[0].mxu0
        %v1684 = vpop.f32.mrb[0].mxu0
        %v1685 = vadd.f32 0.0, %v1684
        %v1686 = vpop.f32.mrb[0].mxu0
        %1687 = vmatprep.mubr.bf16.mxu0 0
        %1688 = vmatmul.mubr.bf16.gmra.mrb[0].mxu0 %v1629
        %v1689 = vpop.f32.mrb[0].mxu0
        %v1690 = vadd.f32 0.0, %v1689
        %v1691 = vpop.f32.mrb[0].mxu0
        %v1692 = vpop.f32.mrb[0].mxu0
        %v1693 = vadd.f32 0.0, %v1692
        %v1694 = vpop.f32.mrb[0].mxu0
        %1695 = vdwg.mxu0
        %v1696 = vadd.f32 %v1560, %v1666
        %v1697 = vadd.f32 %v1561, %v1669
        %v1698 = vadd.f32 %v1562, %v1674
        %v1699 = vadd.f32 %v1563, %v1677
        %v1700 = vadd.f32 %v1564, %v1682
        %v1701 = vadd.f32 %v1565, %v1685
        %v1702 = vadd.f32 %v1566, %v1690
        %v1703 = vadd.f32 %v1567, %v1693
        %v1712 = vunpack.c.l.b16 %v859
        %v1713 = vunpack.c.l.b16 %v860
        %v1714 = vunpack.c.l.b16 %v861
        %v1715 = vunpack.c.l.b16 %v862
        %v1716 = vunpack.c.l.b16 %v863
        %v1717 = vunpack.c.l.b16 %v864
        %v1718 = vunpack.c.l.b16 %v865
        %v1719 = vunpack.c.l.b16 %v866
        %v1720 = vpack.c.b16 %v1713, %v1712
        %v1721 = vpack.c.b16 %v1715, %v1714
        %v1722 = vpack.c.b16 %v1717, %v1716
        %v1723 = vpack.c.b16 %v1719, %v1718
        %v1729 = vsel %vm979, %v1593, 0
        %1731 = vmatprep.subr.bf16.mxu0 0
        %1732 = vmatpush1.bf16.msra.mxu0 %v1720
        %1733 = vmatprep.subr.bf16.mxu0 0
        %1734 = vmatpush1.bf16.msra.mxu0 %v1721
        %1735 = vmatprep.subr.bf16.mxu0 0
        %1736 = vmatpush1.bf16.msra.mxu0 %v1722
        %1737 = vmatprep.subr.bf16.mxu0 0
        %1738 = vmatpush1.bf16.msra.mxu0 %v1723
        %1739 = vmatprep.subr.bf16.mxu0 0
        %1740 = vmatpush1.bf16.msra.mxu0 0
        %1741 = vmatprep.subr.bf16.mxu0 0
        %1742 = vmatpush1.bf16.msra.mxu0 0
        %1743 = vmatprep.subr.bf16.mxu0 0
        %1744 = vmatpush1.bf16.msra.mxu0 0
        %1745 = vmatprep.subr.bf16.mxu0 0
        %1746 = vmatpush1.bf16.msra.mxu0 0
        %1747 = vmatprep.subr.bf16.mxu0 0
        %1748 = vmatpush1.bf16.msra.mxu0 0
        %1749 = vmatprep.subr.bf16.mxu0 0
        %1750 = vmatpush1.bf16.msra.mxu0 0
        %1751 = vmatprep.subr.bf16.mxu0 0
        %1752 = vmatpush1.bf16.msra.mxu0 0
        %1753 = vmatprep.subr.bf16.mxu0 0
        %1754 = vmatpush1.bf16.msra.mxu0 0
        %1755 = vmatprep.subr.bf16.mxu0 0
        %1756 = vmatpush1.bf16.msra.mxu0 0
        %1757 = vmatprep.subr.bf16.mxu0 0
        %1758 = vmatpush1.bf16.msra.mxu0 0
        %1759 = vmatprep.subr.bf16.mxu0 0
        %1760 = vmatpush1.bf16.msra.mxu0 0
        %1761 = vmatprep.subr.bf16.mxu0 0
        %1762 = vmatpush1.bf16.msra.mxu0 0
        %1763 = vmatprep.mubr.bf16.mxu0 0
        %1764 = vmatmul.mubr.bf16.gmra.mrb[0].mxu0 %v1623
        %v1765 = vpop.f32.mrb[0].mxu0
        %v1766 = vadd.f32 0.0, %v1765
        %v1767 = vpop.f32.mrb[0].mxu0
        %v1768 = vpop.f32.mrb[0].mxu0
        %v1769 = vadd.f32 0.0, %v1768
        %v1770 = vpop.f32.mrb[0].mxu0
        %1771 = vmatprep.mubr.bf16.mxu0 0
        %1772 = vmatmul.mubr.bf16.gmra.mrb[0].mxu0 %v1626
        %v1773 = vpop.f32.mrb[0].mxu0
        %v1774 = vadd.f32 0.0, %v1773
        %v1775 = vpop.f32.mrb[0].mxu0
        %v1776 = vpop.f32.mrb[0].mxu0
        %v1777 = vadd.f32 0.0, %v1776
        %v1778 = vpop.f32.mrb[0].mxu0
        %1779 = vmatprep.mubr.bf16.mxu0 0
        %1780 = vmatmul.mubr.bf16.gmra.mrb[0].mxu0 %v1629
        %v1781 = vpop.f32.mrb[0].mxu0
        %v1782 = vadd.f32 0.0, %v1781
        %v1783 = vpop.f32.mrb[0].mxu0
        %v1784 = vpop.f32.mrb[0].mxu0
        %v1785 = vadd.f32 0.0, %v1784
        %v1786 = vpop.f32.mrb[0].mxu0
        %1787 = vmatprep.mubr.bf16.mxu0 0
        %1788 = vmatmul.mubr.bf16.gmra.mrb[0].mxu0 %v1729
        %v1789 = vpop.f32.mrb[0].mxu0
        %v1790 = vadd.f32 0.0, %v1789
        %v1791 = vpop.f32.mrb[0].mxu0
        %v1792 = vpop.f32.mrb[0].mxu0
        %v1793 = vadd.f32 0.0, %v1792
        %v1794 = vpop.f32.mrb[0].mxu0
        %1795 = vdwg.mxu0
        %v1796 = vadd.f32 %v1696, %v1766
        %v1797 = vadd.f32 %v1697, %v1769
        %v1798 = vadd.f32 %v1698, %v1774
        %v1799 = vadd.f32 %v1699, %v1777
        %v1800 = vadd.f32 %v1700, %v1782
        %v1801 = vadd.f32 %v1701, %v1785
        %v1802 = vadd.f32 %v1702, %v1790
        %v1803 = vadd.f32 %v1703, %v1793
        %v1812 = vunpack.c.l.b16 %v883
        %v1813 = vunpack.c.l.b16 %v884
        %v1814 = vunpack.c.l.b16 %v885
        %v1815 = vunpack.c.l.b16 %v886
        %v1816 = vunpack.c.l.b16 %v887
        %v1817 = vunpack.c.l.b16 %v888
        %v1818 = vunpack.c.l.b16 %v889
        %v1819 = vunpack.c.l.b16 %v890
        %v1820 = vpack.c.b16 %v1813, %v1812
        %v1821 = vpack.c.b16 %v1815, %v1814
        %v1822 = vpack.c.b16 %v1817, %v1816
        %v1823 = vpack.c.b16 %v1819, %v1818
        %v1829 = vsel %vm979, %v1594, 0
        %1831 = vmatprep.subr.bf16.mxu0 0
        %1832 = vmatpush1.bf16.msra.mxu0 %v1820
        %1833 = vmatprep.subr.bf16.mxu0 0
        %1834 = vmatpush1.bf16.msra.mxu0 %v1821
        %1835 = vmatprep.subr.bf16.mxu0 0
        %1836 = vmatpush1.bf16.msra.mxu0 %v1822
        %1837 = vmatprep.subr.bf16.mxu0 0
        %1838 = vmatpush1.bf16.msra.mxu0 %v1823
        %1839 = vmatprep.subr.bf16.mxu0 0
        %1840 = vmatpush1.bf16.msra.mxu0 0
        %1841 = vmatprep.subr.bf16.mxu0 0
        %1842 = vmatpush1.bf16.msra.mxu0 0
        %1843 = vmatprep.subr.bf16.mxu0 0
        %1844 = vmatpush1.bf16.msra.mxu0 0
        %1845 = vmatprep.subr.bf16.mxu0 0
        %1846 = vmatpush1.bf16.msra.mxu0 0
        %1847 = vmatprep.subr.bf16.mxu0 0
        %1848 = vmatpush1.bf16.msra.mxu0 0
        %1849 = vmatprep.subr.bf16.mxu0 0
        %1850 = vmatpush1.bf16.msra.mxu0 0
        %1851 = vmatprep.subr.bf16.mxu0 0
        %1852 = vmatpush1.bf16.msra.mxu0 0
        %1853 = vmatprep.subr.bf16.mxu0 0
        %1854 = vmatpush1.bf16.msra.mxu0 0
        %1855 = vmatprep.subr.bf16.mxu0 0
        %1856 = vmatpush1.bf16.msra.mxu0 0
        %1857 = vmatprep.subr.bf16.mxu0 0
        %1858 = vmatpush1.bf16.msra.mxu0 0
        %1859 = vmatprep.subr.bf16.mxu0 0
        %1860 = vmatpush1.bf16.msra.mxu0 0
        %1861 = vmatprep.subr.bf16.mxu0 0
        %1862 = vmatpush1.bf16.msra.mxu0 0
        %1863 = vmatprep.mubr.bf16.mxu0 0
        %1864 = vmatmul.mubr.bf16.gmra.mrb[0].mxu0 %v1626
        %v1865 = vpop.f32.mrb[0].mxu0
        %v1866 = vadd.f32 0.0, %v1865
        %v1867 = vpop.f32.mrb[0].mxu0
        %v1868 = vpop.f32.mrb[0].mxu0
        %v1869 = vadd.f32 0.0, %v1868
        %v1870 = vpop.f32.mrb[0].mxu0
        %1871 = vmatprep.mubr.bf16.mxu0 0
        %1872 = vmatmul.mubr.bf16.gmra.mrb[0].mxu0 %v1629
        %v1873 = vpop.f32.mrb[0].mxu0
        %v1874 = vadd.f32 0.0, %v1873
        %v1875 = vpop.f32.mrb[0].mxu0
        %v1876 = vpop.f32.mrb[0].mxu0
        %v1877 = vadd.f32 0.0, %v1876
        %v1878 = vpop.f32.mrb[0].mxu0
        %1879 = vmatprep.mubr.bf16.mxu0 0
        %1880 = vmatmul.mubr.bf16.gmra.mrb[0].mxu0 %v1729
        %v1881 = vpop.f32.mrb[0].mxu0
        %v1882 = vadd.f32 0.0, %v1881
        %v1883 = vpop.f32.mrb[0].mxu0
        %v1884 = vpop.f32.mrb[0].mxu0
        %v1885 = vadd.f32 0.0, %v1884
        %v1886 = vpop.f32.mrb[0].mxu0
        %1887 = vmatprep.mubr.bf16.mxu0 0
        %1888 = vmatmul.mubr.bf16.gmra.mrb[0].mxu0 %v1829
        %v1889 = vpop.f32.mrb[0].mxu0
        %v1890 = vadd.f32 0.0, %v1889
        %v1891 = vpop.f32.mrb[0].mxu0
        %v1892 = vpop.f32.mrb[0].mxu0
        %v1893 = vadd.f32 0.0, %v1892
        %v1894 = vpop.f32.mrb[0].mxu0
        %1895 = vdwg.mxu0
        %v1896 = vadd.f32 %v1796, %v1866
        %v1897 = vadd.f32 %v1797, %v1869
        %v1898 = vadd.f32 %v1798, %v1874
        %v1899 = vadd.f32 %v1799, %v1877
        %v1900 = vadd.f32 %v1800, %v1882
        %v1901 = vadd.f32 %v1801, %v1885
        %v1902 = vadd.f32 %v1802, %v1890
        %v1903 = vadd.f32 %v1803, %v1893
        %v1904 = vld [vmem:[%s634] sm:$0xf]
        %v1905 = vld [vmem:[%s634 + $0x4] sm:$0xf]
        %v1906 = vld [vmem:[%s634 + $0x8] sm:$0xf]
        %v1907 = vld [vmem:[%s634 + $0xc] sm:$0xf]
        %v1908 = vld [vmem:[%s634 + $0x10] sm:$0xf]
        %v1909 = vld [vmem:[%s634 + $0x14] sm:$0xf]
        %v1910 = vld [vmem:[%s634 + $0x18] sm:$0xf]
        %v1911 = vld [vmem:[%s634 + $0x1c] sm:$0xf]
        %v1912 = vld [vmem:[%s10] sm:$0xf]
        %v1913 = vld [vmem:[%s10 + $0x4] sm:$0xf]
        %v1914 = vld [vmem:[%s10 + $0x8] sm:$0xf]
        %v1915 = vld [vmem:[%s10 + $0xc] sm:$0xf]
        %v1924 = vunpack.c.l.b16 %v1904
        %v1925 = vunpack.c.l.b16 %v1905
        %v1926 = vunpack.c.l.b16 %v1906
        %v1927 = vunpack.c.l.b16 %v1907
        %v1928 = vunpack.c.l.b16 %v1908
        %v1929 = vunpack.c.l.b16 %v1909
        %v1930 = vunpack.c.l.b16 %v1910
        %v1931 = vunpack.c.l.b16 %v1911
        %v1932 = vpack.c.b16 %v1925, %v1924
        %v1933 = vpack.c.b16 %v1927, %v1926
        %v1934 = vpack.c.b16 %v1929, %v1928
        %v1935 = vpack.c.b16 %v1931, %v1930
        %v1940 = vunpack.c.l.b16 %v1912
        %v1941 = vunpack.c.l.b16 %v1913
        %v1942 = vunpack.c.l.b16 %v1914
        %v1943 = vunpack.c.l.b16 %v1915
        %v1944 = vpack.c.b16 %v1941, %v1940
        %v1945 = vpack.c.b16 %v1943, %v1942
        %vm1948 = vcmask 261120
        %v1950 = vsel %vm1948, %v1932, 0
        %v1953 = vsel %vm1948, %v1933, 0
        %v1956 = vsel %vm1948, %v1934, 0
        %v1959 = vsel %vm1948, %v1935, 0
        %1961 = vmatprep.subr.bf16.mxu0 0
        %1962 = vmatpush1.bf16.msra.mxu0 %v1944
        %1963 = vmatprep.subr.bf16.mxu0 0
        %1964 = vmatpush1.bf16.msra.mxu0 %v1945
        %1965 = vmatprep.subr.bf16.mxu0 0
        %1966 = vmatpush1.bf16.msra.mxu0 0
        %1967 = vmatprep.subr.bf16.mxu0 0
        %1968 = vmatpush1.bf16.msra.mxu0 0
        %1969 = vmatprep.subr.bf16.mxu0 0
        %1970 = vmatpush1.bf16.msra.mxu0 0
        %1971 = vmatprep.subr.bf16.mxu0 0
        %1972 = vmatpush1.bf16.msra.mxu0 0
        %1973 = vmatprep.subr.bf16.mxu0 0
        %1974 = vmatpush1.bf16.msra.mxu0 0
        %1975 = vmatprep.subr.bf16.mxu0 0
        %1976 = vmatpush1.bf16.msra.mxu0 0
        %1977 = vmatprep.subr.bf16.mxu0 0
        %1978 = vmatpush1.bf16.msra.mxu0 0
        %1979 = vmatprep.subr.bf16.mxu0 0
        %1980 = vmatpush1.bf16.msra.mxu0 0
        %1981 = vmatprep.subr.bf16.mxu0 0
        %1982 = vmatpush1.bf16.msra.mxu0 0
        %1983 = vmatprep.subr.bf16.mxu0 0
        %1984 = vmatpush1.bf16.msra.mxu0 0
        %1985 = vmatprep.subr.bf16.mxu0 0
        %1986 = vmatpush1.bf16.msra.mxu0 0
        %1987 = vmatprep.subr.bf16.mxu0 0
        %1988 = vmatpush1.bf16.msra.mxu0 0
        %1989 = vmatprep.subr.bf16.mxu0 0
        %1990 = vmatpush1.bf16.msra.mxu0 0
        %1991 = vmatprep.subr.bf16.mxu0 0
        %1992 = vmatpush1.bf16.msra.mxu0 0
        %1993 = vmatprep.mubr.bf16.mxu0 0
        %1994 = vmatmul.mubr.bf16.gmra.mrb[0].mxu0 %v1950
        %v1995 = vpop.f32.mrb[0].mxu0
        %v1996 = vadd.f32 0.0, %v1995
        %v1997 = vpop.f32.mrb[0].mxu0
        %v1998 = vpop.f32.mrb[0].mxu0
        %v1999 = vadd.f32 0.0, %v1998
        %v2000 = vpop.f32.mrb[0].mxu0
        %2001 = vmatprep.mubr.bf16.mxu0 0
        %2002 = vmatmul.mubr.bf16.gmra.mrb[0].mxu0 %v1953
        %v2003 = vpop.f32.mrb[0].mxu0
        %v2004 = vadd.f32 0.0, %v2003
        %v2005 = vpop.f32.mrb[0].mxu0
        %v2006 = vpop.f32.mrb[0].mxu0
        %v2007 = vadd.f32 0.0, %v2006
        %v2008 = vpop.f32.mrb[0].mxu0
        %2009 = vmatprep.mubr.bf16.mxu0 0
        %2010 = vmatmul.mubr.bf16.gmra.mrb[0].mxu0 %v1956
        %v2011 = vpop.f32.mrb[0].mxu0
        %v2012 = vadd.f32 0.0, %v2011
        %v2013 = vpop.f32.mrb[0].mxu0
        %v2014 = vpop.f32.mrb[0].mxu0
        %v2015 = vadd.f32 0.0, %v2014
        %v2016 = vpop.f32.mrb[0].mxu0
        %2017 = vmatprep.mubr.bf16.mxu0 0
        %2018 = vmatmul.mubr.bf16.gmra.mrb[0].mxu0 %v1959
        %v2019 = vpop.f32.mrb[0].mxu0
        %v2020 = vadd.f32 0.0, %v2019
        %v2021 = vpop.f32.mrb[0].mxu0
        %v2022 = vpop.f32.mrb[0].mxu0
        %v2023 = vadd.f32 0.0, %v2022
        %v2024 = vpop.f32.mrb[0].mxu0
        %2025 = vdwg.mxu0
        %v2026 = vadd.f32 %v1896, %v1996
        %v2027 = vadd.f32 %v1897, %v1999
        %v2028 = vadd.f32 %v1898, %v2004
        %v2029 = vadd.f32 %v1899, %v2007
        %v2030 = vadd.f32 %v1900, %v2012
        %v2031 = vadd.f32 %v1901, %v2015
        %v2032 = vadd.f32 %v1902, %v2020
        %v2033 = vadd.f32 %v1903, %v2023
        %v2034 = vld [vmem:[%s11] sm:$0x1]
        %v2036 = vlaneseq
        %v2037 = vshrl.u32 %v2036, 7
        %v2038 = vsub.s32 0, %v2037
        %v2039 = vrot.slane %v2034, %v2038
        %v2041 = vadd.f32 %v2026, %v2039
        %v2042 = vadd.f32 %v2027, %v2039
        %v2043 = vadd.f32 %v2028, %v2039
        %v2044 = vadd.f32 %v2029, %v2039
        %v2045 = vadd.f32 %v2030, %v2039
        %v2046 = vadd.f32 %v2031, %v2039
        %v2047 = vadd.f32 %v2032, %v2039
        %v2048 = vadd.f32 %v2033, %v2039
        %2049 = vst.msk [vmem:[%s573] sm:$0xff] %vm979, %v2041
        %2050 = vst.msk [vmem:[%s573 + $0x8] sm:$0xff] %vm979, %v2042
        %2051 = vst.msk [vmem:[%s573 + $0x10] sm:$0xff] %vm979, %v2043
        %2052 = vst.msk [vmem:[%s573 + $0x18] sm:$0xff] %vm979, %v2044
        %2053 = vst.msk [vmem:[%s573 + $0x20] sm:$0xff] %vm979, %v2045
        %2054 = vst.msk [vmem:[%s573 + $0x28] sm:$0xff] %vm979, %v2046
        %2055 = vst.msk [vmem:[%s573 + $0x30] sm:$0xff] %vm979, %v2047
        %2056 = vst.msk [vmem:[%s573 + $0x38] sm:$0xff] %vm979, %v2048
        %s2057 = sand.u32 %s354, 1
        %s2058 = scalar_lea.sflag [#allocation3], %s2057
        %s2059 = sand.u32 %s354, 1
        %s2060 = smul.addr %s2059, 64
        %s2061 = scalar_lea.vmem [#allocation2], %s2060
        // Predicated region
        $region69: #{resnet_block_forward.5} parent=67 // pred_check
          %p2062 = pneg %p364
        $region70: #{resnet_block_forward.5} parent=67 // pred_check_branch
          %2064 = sbr.rel (%p2062) target = $region72
        $region71: #{resnet_block_forward.5} parent=67 // pred_region
          %s2065 = smul.u32 4, %s31
          %s2067 = ssub.s32 1024, 1024
          %2068 = vsyncadd %s2058, %s2067
          %s2069 = smul.addr %s2065, 2
          %s2070 = smul.addr %s30, 32
          %s2071 = sadd.s32 %s2069, %s2070
          %s2072 = smul.addr %s2071, 128
          %s2073 = scalar_lea.hbm %s12, %s2072
          %s2074 = sshll.u32 %s2061, 4
          %s2075 = int_to_ptr.vmem [resolvable:$true] %s2074
          %2080 = dma.vmem_to_hbm [thread:$0]  %s2075, 1024, %s2073, %s2058, 128, 128, 8
        $region72: #{resnet_block_forward.5} parent=67 // pred_fallthru
          _
      $region68: #{resnet_block_forward.5} parent=5 // pred_fallthru
        _
      %p2081 = scmp.le.s32.totalorder 2, %s21
      // Predicated region
      $region73: #{resnet_block_forward.5} parent=5 // pred_check
        %p2082 = pneg %p2081
      $region74: #{resnet_block_forward.5} parent=5 // pred_check_branch
        %2084 = sbr.rel (%p2082) target = $region76
      $region75: #{resnet_block_forward.5} parent=5 // pred_region
        %s2085 = ssub.s32 %s21, 2
        // Predicated region
        $region77: #{resnet_block_forward.5} parent=75 // pred_check
          %p2086 = pneg %p370
        $region78: #{resnet_block_forward.5} parent=75 // pred_check_branch
          %2088 = sbr.rel (%p2086) target = $region80
        $region79: #{resnet_block_forward.5} parent=75 // pred_region
          %s2089 = sand.u32 %s355, 1
          %s2090 = scalar_lea.sflag [#allocation3], %s2089
          %s2091 = sand.u32 %s355, 1
          %s2092 = smul.addr %s2091, 64
          %s2093 = scalar_lea.vmem [#allocation2], %s2092
          %2094 = dma.done %s2090, 1024
        $region80: #{resnet_block_forward.5} parent=75 // pred_fallthru
          _
      $region76: #{resnet_block_forward.5} parent=5 // pred_fallthru
        _
    $region6: #{resnet_block_forward.5} parent=1 // loop_footer
      %s25 = sadd.s32 1, %s21
    $region7: #{resnet_block_forward.5} parent=1 // loop_footer_branch
      %20 = sbr.rel target = $region3
    $region8: #{resnet_block_forward.5} parent=1 // loop_exit
      _
    %2095 = vsyncpa [#allocation3], 1
    %s2096 = scalar_lea.sflag [#allocation3], 1
    %2097 = vsyncpa %s2096, 1

</llo_original>
